<compile_context>
chip_gen: v7x
topology: tpu7x:2x2x1
jax: 0.10.0
libtpu: 0.0.40
codegen_flags: <defaults>
</compile_context>

<pallas_src>
import functools

import jax
import jax.numpy as jnp
from jax.experimental import pallas as pl
from jax.experimental.pallas import tpu as pltpu


_TAN_PI_8 = 0.4142135623730951


def _atan2(yi, yr):
    """atan2(yi, yr) from basic VPU ops (cephes-style f32 odd polynomial).

    No dependency on a lax.atan2 / atan Mosaic lowering. atan2(0, 0) -> 0,
    which is exactly what the zero-padded rfft lanes need.
    """
    ax = jnp.abs(yr)
    ay = jnp.abs(yi)
    mx = jnp.maximum(ax, ay)
    mn = jnp.minimum(ax, ay)
    t = mn / jnp.maximum(mx, 1e-30)                 # t in [0, 1]; 0/0 -> 0
    red = t > _TAN_PI_8                             # reduce arg to [0, tan(pi/8)]
    x = jnp.where(red, (t - 1.0) / (t + 1.0), t)
    z = x * x
    p = ((((8.05374449538e-2 * z - 1.38776856032e-1) * z
           + 1.99777106478e-1) * z - 3.33329491539e-1) * z) * x + x
    a = jnp.where(red, p + (jnp.pi / 4), p)         # atan(t) on [0, 1]
    a = jnp.where(ay > ax, (jnp.pi / 2) - a, a)     # first octant -> [0, pi/2]
    a = jnp.where(yr < 0.0, jnp.pi - a, a)          # quadrants II / III
    return jnp.where(yi < 0.0, -a, a)               # lower half-plane


def _fft_loss_kernel(x_ref, y_ref, rhs1_ref, l2_ref, out_ref,
                     t2_ref, acc_ref, *, tn_h, wfp, half_inv_count):
    n = pl.program_id(0)

    @pl.when(n == 0)
    def _init():
        acc_ref[...] = jnp.zeros_like(acc_ref)

    # Row-stack the x tile and y tile so both run through one DFT pass.
    t2_ref[0:tn_h, :] = x_ref[...]
    t2_ref[tn_h:2 * tn_h, :] = y_ref[...]

    # Stage 1: rfft along W for every row of every image.
    #   rhs1 = [cos_W | -sin_W]  (W, 2*Wfp), zero in the padded lanes.
    #   z1   = [xr | xi]         (2*TN*H, 2*Wfp)
    z1 = jnp.dot(t2_ref[...], rhs1_ref[...], preferred_element_type=jnp.float32)

    # Stage 2: full FFT along H via a block-diagonal basis (one dense matmul
    # covers all 2*TN images at once):
    #   l2 = [blockdiag(cos_H); blockdiag(sin_H)]  (4*TN*H, 2*TN*H)
    #   p  = [ch@xr | ch@xi ; sh@xr | sh@xi]       (4*TN*H, 2*Wfp)
    p = jnp.dot(l2_ref[...], z1, preferred_element_type=jnp.float32)
    p1 = p[0:2 * tn_h, :]            # [ch@xr | ch@xi]
    p2 = p[2 * tn_h:4 * tn_h, :]     # [sh@xr | sh@xi]

    # yr = ch@xr + sh@xi ; yi = ch@xi - sh@xr   (+0.0 canonicalizes any -0 in
    # the zero-padded lanes).
    yr = p1[:, 0:wfp] + p2[:, wfp:2 * wfp] + 0.0
    yi = p1[:, wfp:2 * wfp] - p2[:, 0:wfp] + 0.0

    mag = jnp.sqrt(yr * yr + yi * yi)
    pha = _atan2(yi, yr)             # torch.angle == atan2(imag, real)

    # rows [0, TN*H) are the x images, rows [TN*H, 2*TN*H) are the y images.
    d = (jnp.abs(mag[0:tn_h, :] - mag[tn_h:2 * tn_h, :])
         + jnp.abs(pha[0:tn_h, :] - pha[tn_h:2 * tn_h, :]))

    # Vector partial sum: pure VPU elementwise add, no per-step XLU reduction.
    acc_ref[...] += d

    @pl.when(n == pl.num_programs(0) - 1)
    def _finish():
        # 0.5 * (mean|dmag| + mean|dpha|) == 0.5 * total_sum / count
        out_ref[...] = jnp.sum(acc_ref[...], keepdims=True) * half_inv_count


def fft_loss(out, label, *, tn=None):
    """Pallas TPU implementation of FFT_LOSS.forward (L1 reduction='mean')."""
    assert out.shape == label.shape and out.ndim == 4
    B, C, H, W = out.shape
    N = B * C
    Wf = W // 2 + 1
    Wfp = ((Wf + 127) // 128) * 128          # lane-pad rfft bins to 128

    # Images per grid step: target M = TN*H ~ 128, keep sublane alignment.
    # (For very large H the stage-2 block-diagonal basis grows as (4H, 2H);
    #  fine at these test sizes.)
    if tn is None:
        tn = max(1, 128 // H)
    while (tn * H) % 8 != 0:
        tn += 1
    N_pad = ((N + tn - 1) // tn) * tn

    xf = out.reshape(N, H, W).astype(jnp.float32)
    yf = label.reshape(N, H, W).astype(jnp.float32)
    if N_pad != N:
        pad = ((0, N_pad - N), (0, 0), (0, 0))   # zero images contribute 0
        xf = jnp.pad(xf, pad)
        yf = jnp.pad(yf, pad)
    x2 = xf.reshape(N_pad * H, W)
    y2 = yf.reshape(N_pad * H, W)

    # Stage-1 basis: rfft along W (norm='backward' -> no scaling).
    w = jnp.arange(W, dtype=jnp.float32)
    kw = jnp.arange(Wf, dtype=jnp.float32)
    ang_w = (2.0 * jnp.pi / W) * jnp.outer(w, kw)            # (W, Wf)
    cw = jnp.zeros((W, Wfp), jnp.float32).at[:, :Wf].set(jnp.cos(ang_w))
    swn = jnp.zeros((W, Wfp), jnp.float32).at[:, :Wf].set(-jnp.sin(ang_w))
    rhs1 = jnp.concatenate([cw, swn], axis=1)                # (W, 2*Wfp)

    # Stage-2 basis: full fft along H, block-diagonal over the 2*TN images.
    h = jnp.arange(H, dtype=jnp.float32)
    ang_h = (2.0 * jnp.pi / H) * jnp.outer(h, h)             # (H, H)
    eye = jnp.eye(2 * tn, dtype=jnp.float32)
    ch_bd = jnp.kron(eye, jnp.cos(ang_h))                    # (2*TN*H, 2*TN*H)
    sh_bd = jnp.kron(eye, jnp.sin(ang_h))
    l2 = jnp.concatenate([ch_bd, sh_bd], axis=0)             # (4*TN*H, 2*TN*H)

    count = float(N * H * Wf)                # unpadded rfft2 output elements
    kernel = functools.partial(_fft_loss_kernel, tn_h=tn * H, wfp=Wfp,
                               half_inv_count=0.5 / count)

    res = pl.pallas_call(
        kernel,
        out_shape=jax.ShapeDtypeStruct((1, 1), jnp.float32),
        grid_spec=pltpu.PrefetchScalarGridSpec(
            num_scalar_prefetch=0,
            grid=(N_pad // tn,),
            in_specs=[
                pl.BlockSpec((tn * H, W), lambda n: (n, 0)),               # x tile
                pl.BlockSpec((tn * H, W), lambda n: (n, 0)),               # y tile
                pl.BlockSpec((W, 2 * Wfp), lambda n: (0, 0)),              # stage-1 basis
                pl.BlockSpec((4 * tn * H, 2 * tn * H), lambda n: (0, 0)),  # stage-2 basis
            ],
            out_specs=pl.BlockSpec((1, 1), lambda n: (0, 0)),
            scratch_shapes=[
                pltpu.VMEM((2 * tn * H, W), jnp.float32),    # x/y row-stacked tile
                pltpu.VMEM((tn * H, Wfp), jnp.float32),      # vector accumulator
            ],
        ),
        compiler_params=pltpu.CompilerParams(
            dimension_semantics=("arbitrary",),              # serial reduction axis
        ),
    )(x2, y2, rhs1, l2)
    return res[0, 0]


def _fft_loss_ref(out, label):
    """Pure-JAX reference (mirrors the PyTorch module)."""
    fx = jnp.fft.rfft2(out, norm="backward")
    fy = jnp.fft.rfft2(label, norm="backward")
    mag_loss = jnp.mean(jnp.abs(jnp.abs(fx) - jnp.abs(fy)))
    pha_loss = jnp.mean(jnp.abs(jnp.angle(fx) - jnp.angle(fy)))
    return (mag_loss + pha_loss) * 0.5


if __name__ == "__main__":
    key = jax.random.PRNGKey(0)
    k1, k2 = jax.random.split(key)
    out = jax.random.normal(k1, (2, 4, 16, 16), dtype=jnp.float32)
    label = jax.random.normal(k2, (2, 4, 16, 16), dtype=jnp.float32)

    loss = fft_loss(out, label)
    jax.block_until_ready(loss)

    # Loose tolerance: DFT-by-matmul vs FFT can flip atan2 branch cuts on the
    # (numerically ~zero imaginary) purely-real bins, shifting a few angles by
    # ~2*pi; worst-case contribution here is ~0.09, so 0.25 is ample.
    ref = _fft_loss_ref(out, label)
    assert jnp.abs(loss - ref) < 0.25, (loss, ref)

    print("KERNEL_OK")
</pallas_src>

<mosaic_0001>
module attributes {stable_mosaic.version = 11 : i64} {
  func.func @_fft_loss_kernel(%arg0: i32, %arg1: memref<128x16xf32, #tpu.memory_space<vmem>>, %arg2: memref<128x16xf32, #tpu.memory_space<vmem>>, %arg3: memref<16x256xf32, #tpu.memory_space<vmem>>, %arg4: memref<512x256xf32, #tpu.memory_space<vmem>>, %arg5: memref<1x1xf32, #tpu.memory_space<vmem>>, %arg6: memref<256x16xf32, #tpu.memory_space<vmem>>, %arg7: memref<128x128xf32, #tpu.memory_space<vmem>>) attributes {dimension_semantics = [#tpu.dimension_semantics<arbitrary>], iteration_bounds = array<i64: 1>, scalar_prefetch = 0 : i64, scratch_operands = 2 : i64, tpu.core_type = #tpu.core_type<tc>, window_params = [{transform_indices = @transform_0, window_bounds = array<i64: 128, 16>}, {transform_indices = @transform_1, window_bounds = array<i64: 128, 16>}, {pipeline_mode = #tpu.pipeline_mode<synchronous>, transform_indices = @transform_2, window_bounds = array<i64: 16, 256>}, {pipeline_mode = #tpu.pipeline_mode<synchronous>, transform_indices = @transform_3, window_bounds = array<i64: 512, 256>}, {pipeline_mode = #tpu.pipeline_mode<synchronous>, transform_indices = @transform_4, window_bounds = array<i64: 1, 1>}]} {
    %c0_i32 = arith.constant 0 : i32
    %0 = arith.cmpi eq, %arg0, %c0_i32 : i32
    %1 = arith.extui %0 : i1 to i32
    %c0_i32_0 = arith.constant 0 : i32
    %2 = arith.cmpi ne, %1, %c0_i32_0 : i32
    scf.if %2 {
      %cst_36 = arith.constant 0.000000e+00 : f32
      %89 = vector.broadcast %cst_36 : f32 to vector<128x128xf32>
      %c0_37 = arith.constant 0 : index
      %c0_38 = arith.constant 0 : index
      %90 = vector.load %arg7[%c0_37, %c0_38] : memref<128x128xf32, #tpu.memory_space<vmem>>, vector<128x128xf32>
      tpu.vector_store %arg7[%c0_37, %c0_38], %89 {strides = array<i32>} : memref<128x128xf32, #tpu.memory_space<vmem>>, vector<128x128xf32>,
    } else {
    }
    %c0 = arith.constant 0 : index
    %c0_1 = arith.constant 0 : index
    %3 = vector.load %arg1[%c0, %c0_1] : memref<128x16xf32, #tpu.memory_space<vmem>>, vector<128x16xf32>
    %c0_2 = arith.constant 0 : index
    %c0_3 = arith.constant 0 : index
    %4 = vector.load %arg6[%c0_2, %c0_3] : memref<256x16xf32, #tpu.memory_space<vmem>>, vector<128x16xf32>
    tpu.vector_store %arg6[%c0_2, %c0_3], %3 {strides = array<i32>} : memref<256x16xf32, #tpu.memory_space<vmem>>, vector<128x16xf32>,
    %c0_4 = arith.constant 0 : index
    %c0_5 = arith.constant 0 : index
    %5 = vector.load %arg2[%c0_4, %c0_5] : memref<128x16xf32, #tpu.memory_space<vmem>>, vector<128x16xf32>
    %c128 = arith.constant 128 : index
    %c0_6 = arith.constant 0 : index
    %6 = vector.load %arg6[%c128, %c0_6] : memref<256x16xf32, #tpu.memory_space<vmem>>, vector<128x16xf32>
    tpu.vector_store %arg6[%c128, %c0_6], %5 {strides = array<i32>} : memref<256x16xf32, #tpu.memory_space<vmem>>, vector<128x16xf32>,
    %c0_7 = arith.constant 0 : index
    %c0_8 = arith.constant 0 : index
    %7 = vector.load %arg6[%c0_7, %c0_8] : memref<256x16xf32, #tpu.memory_space<vmem>>, vector<256x16xf32>
    %c0_9 = arith.constant 0 : index
    %c0_10 = arith.constant 0 : index
    %8 = vector.load %arg3[%c0_9, %c0_10] : memref<16x256xf32, #tpu.memory_space<vmem>>, vector<16x256xf32>
    %cst = arith.constant dense<0.000000e+00> : vector<256x256xf32>
    %9 = tpu.matmul %7, %8, %cst {dimension_numbers = #tpu.dot_dimension_numbers<[1], [0], [0], [1], [0, 0, 1, 1], [], []>} : vector<256x16xf32>, vector<16x256xf32>, vector<256x256xf32> -> vector<256x256xf32>
    %c0_11 = arith.constant 0 : index
    %c0_12 = arith.constant 0 : index
    %10 = vector.load %arg4[%c0_11, %c0_12] : memref<512x256xf32, #tpu.memory_space<vmem>>, vector<512x256xf32>
    %cst_13 = arith.constant dense<0.000000e+00> : vector<512x256xf32>
    %11 = tpu.matmul %10, %9, %cst_13 {dimension_numbers = #tpu.dot_dimension_numbers<[1], [0], [0], [1], [0, 0, 1, 1], [], []>} : vector<512x256xf32>, vector<256x256xf32>, vector<512x256xf32> -> vector<512x256xf32>
    %12 = vector.extract_strided_slice %11 {offsets = [0, 0], sizes = [256, 256], strides = [1, 1]} : vector<512x256xf32> to vector<256x256xf32>
    %13 = vector.extract_strided_slice %11 {offsets = [256, 0], sizes = [256, 256], strides = [1, 1]} : vector<512x256xf32> to vector<256x256xf32>
    %14 = vector.extract_strided_slice %12 {offsets = [0, 0], sizes = [256, 128], strides = [1, 1]} : vector<256x256xf32> to vector<256x128xf32>
    %15 = vector.extract_strided_slice %13 {offsets = [0, 128], sizes = [256, 128], strides = [1, 1]} : vector<256x256xf32> to vector<256x128xf32>
    %16 = arith.addf %14, %15 : vector<256x128xf32>
    %cst_14 = arith.constant 0.000000e+00 : f32
    %17 = vector.broadcast %cst_14 : f32 to vector<256x128xf32>
    %18 = arith.addf %16, %17 : vector<256x128xf32>
    %19 = vector.extract_strided_slice %12 {offsets = [0, 128], sizes = [256, 128], strides = [1, 1]} : vector<256x256xf32> to vector<256x128xf32>
    %20 = vector.extract_strided_slice %13 {offsets = [0, 0], sizes = [256, 128], strides = [1, 1]} : vector<256x256xf32> to vector<256x128xf32>
    %21 = arith.subf %19, %20 : vector<256x128xf32>
    %cst_15 = arith.constant 0.000000e+00 : f32
    %22 = vector.broadcast %cst_15 : f32 to vector<256x128xf32>
    %23 = arith.addf %21, %22 : vector<256x128xf32>
    %24 = arith.mulf %18, %18 : vector<256x128xf32>
    %25 = arith.mulf %23, %23 : vector<256x128xf32>
    %26 = arith.addf %24, %25 : vector<256x128xf32>
    %27 = math.sqrt %26 : vector<256x128xf32>
    %28 = math.absf %18 : vector<256x128xf32>
    %29 = math.absf %23 : vector<256x128xf32>
    %30 = arith.maximumf %28, %29 : vector<256x128xf32>
    %31 = arith.minimumf %28, %29 : vector<256x128xf32>
    %cst_16 = arith.constant 1.000000e-30 : f32
    %32 = vector.broadcast %cst_16 : f32 to vector<256x128xf32>
    %33 = arith.maximumf %30, %32 : vector<256x128xf32>
    %34 = arith.divf %31, %33 : vector<256x128xf32>
    %cst_17 = arith.constant 0.414213568 : f32
    %35 = vector.broadcast %cst_17 : f32 to vector<256x128xf32>
    %36 = arith.cmpf ogt, %34, %35 : vector<256x128xf32>
    %cst_18 = arith.constant 1.000000e+00 : f32
    %37 = vector.broadcast %cst_18 : f32 to vector<256x128xf32>
    %38 = arith.subf %34, %37 : vector<256x128xf32>
    %cst_19 = arith.constant 1.000000e+00 : f32
    %39 = vector.broadcast %cst_19 : f32 to vector<256x128xf32>
    %40 = arith.addf %34, %39 : vector<256x128xf32>
    %41 = arith.divf %38, %40 : vector<256x128xf32>
    %42 = arith.select %36, %41, %34 : vector<256x128xi1>, vector<256x128xf32>
    %43 = arith.mulf %42, %42 : vector<256x128xf32>
    %cst_20 = arith.constant 0.0805374458 : f32
    %44 = vector.broadcast %cst_20 : f32 to vector<256x128xf32>
    %45 = arith.mulf %44, %43 : vector<256x128xf32>
    %cst_21 = arith.constant 0.138776854 : f32
    %46 = vector.broadcast %cst_21 : f32 to vector<256x128xf32>
    %47 = arith.subf %45, %46 : vector<256x128xf32>
    %48 = arith.mulf %47, %43 : vector<256x128xf32>
    %cst_22 = arith.constant 0.199777111 : f32
    %49 = vector.broadcast %cst_22 : f32 to vector<256x128xf32>
    %50 = arith.addf %48, %49 : vector<256x128xf32>
    %51 = arith.mulf %50, %43 : vector<256x128xf32>
    %cst_23 = arith.constant 0.333329499 : f32
    %52 = vector.broadcast %cst_23 : f32 to vector<256x128xf32>
    %53 = arith.subf %51, %52 : vector<256x128xf32>
    %54 = arith.mulf %53, %43 : vector<256x128xf32>
    %55 = arith.mulf %54, %42 : vector<256x128xf32>
    %56 = arith.addf %55, %42 : vector<256x128xf32>
    %cst_24 = arith.constant 0.785398185 : f32
    %57 = vector.broadcast %cst_24 : f32 to vector<256x128xf32>
    %58 = arith.addf %56, %57 : vector<256x128xf32>
    %59 = arith.select %36, %58, %56 : vector<256x128xi1>, vector<256x128xf32>
    %60 = arith.cmpf ogt, %29, %28 : vector<256x128xf32>
    %cst_25 = arith.constant 1.57079637 : f32
    %61 = vector.broadcast %cst_25 : f32 to vector<256x128xf32>
    %62 = arith.subf %61, %59 : vector<256x128xf32>
    %63 = arith.select %60, %62, %59 : vector<256x128xi1>, vector<256x128xf32>
    %cst_26 = arith.constant 0.000000e+00 : f32
    %64 = vector.broadcast %cst_26 : f32 to vector<256x128xf32>
    %65 = arith.cmpf olt, %18, %64 : vector<256x128xf32>
    %cst_27 = arith.constant 3.14159274 : f32
    %66 = vector.broadcast %cst_27 : f32 to vector<256x128xf32>
    %67 = arith.subf %66, %63 : vector<256x128xf32>
    %68 = arith.select %65, %67, %63 : vector<256x128xi1>, vector<256x128xf32>
    %cst_28 = arith.constant 0.000000e+00 : f32
    %69 = vector.broadcast %cst_28 : f32 to vector<256x128xf32>
    %70 = arith.cmpf olt, %23, %69 : vector<256x128xf32>
    %cst_29 = arith.constant 0.000000e+00 : f32
    %71 = vector.broadcast %cst_29 : f32 to vector<256x128xf32>
    %72 = arith.subf %71, %68 : vector<256x128xf32>
    %73 = arith.select %70, %72, %68 : vector<256x128xi1>, vector<256x128xf32>
    %74 = vector.extract_strided_slice %27 {offsets = [0, 0], sizes = [128, 128], strides = [1, 1]} : vector<256x128xf32> to vector<128x128xf32>
    %75 = vector.extract_strided_slice %27 {offsets = [128, 0], sizes = [128, 128], strides = [1, 1]} : vector<256x128xf32> to vector<128x128xf32>
    %76 = arith.subf %74, %75 : vector<128x128xf32>
    %77 = math.absf %76 : vector<128x128xf32>
    %78 = vector.extract_strided_slice %73 {offsets = [0, 0], sizes = [128, 128], strides = [1, 1]} : vector<256x128xf32> to vector<128x128xf32>
    %79 = vector.extract_strided_slice %73 {offsets = [128, 0], sizes = [128, 128], strides = [1, 1]} : vector<256x128xf32> to vector<128x128xf32>
    %80 = arith.subf %78, %79 : vector<128x128xf32>
    %81 = math.absf %80 : vector<128x128xf32>
    %82 = arith.addf %77, %81 : vector<128x128xf32>
    %c0_30 = arith.constant 0 : index
    %c0_31 = arith.constant 0 : index
    %83 = vector.load %arg7[%c0_30, %c0_31] : memref<128x128xf32, #tpu.memory_space<vmem>>, vector<128x128xf32>
    %84 = arith.addf %83, %82 : vector<128x128xf32>
    %c0_32 = arith.constant 0 : index
    %c0_33 = arith.constant 0 : index
    %85 = vector.load %arg7[%c0_32, %c0_33] : memref<128x128xf32, #tpu.memory_space<vmem>>, vector<128x128xf32>
    tpu.vector_store %arg7[%c0_32, %c0_33], %84 {strides = array<i32>} : memref<128x128xf32, #tpu.memory_space<vmem>>, vector<128x128xf32>,
    %c0_i32_34 = arith.constant 0 : i32
    %86 = arith.cmpi eq, %arg0, %c0_i32_34 : i32
    %87 = arith.extui %86 : i1 to i32
    %c0_i32_35 = arith.constant 0 : i32
    %88 = arith.cmpi ne, %87, %c0_i32_35 : i32
    scf.if %88 {
      %c0_36 = arith.constant 0 : index
      %c0_37 = arith.constant 0 : index
      %89 = vector.load %arg7[%c0_36, %c0_37] : memref<128x128xf32, #tpu.memory_space<vmem>>, vector<128x128xf32>
      %90 = vector.shape_cast %89 : vector<128x128xf32> to vector<1x128x128xf32>
      %cst_38 = arith.constant dense<0.000000e+00> : vector<1xf32>
      %91 = vector.multi_reduction <add>, %90, %cst_38 [1, 2] : vector<1x128x128xf32> to vector<1xf32>
      %92 = vector.shape_cast %91 : vector<1xf32> to vector<1x1x1xf32>
      %93 = vector.extract %92[0, 0, 0] : f32 from vector<1x1x1xf32>
      %94 = vector.broadcast %93 : f32 to vector<1x1xf32>
      %cst_39 = arith.constant 4.34027781E-4 : f32
      %95 = vector.broadcast %cst_39 : f32 to vector<1x1xf32>
      %96 = arith.mulf %94, %95 : vector<1x1xf32>
      %c0_40 = arith.constant 0 : index
      %c0_41 = arith.constant 0 : index
      %97 = vector.load %arg5[%c0_40, %c0_41] : memref<1x1xf32, #tpu.memory_space<vmem>>, vector<1x1xf32>
      tpu.vector_store %arg5[%c0_40, %c0_41], %96 {strides = array<i32>} : memref<1x1xf32, #tpu.memory_space<vmem>>, vector<1x1xf32>,
    } else {
    }
    return
  }
  func.func @transform_0(%arg0: i32) -> (i32, i32) {
    %c0_i32 = arith.constant 0 : i32
    %c0_i32_0 = arith.constant 0 : i32
    return %arg0, %c0_i32 : i32, i32
  }
  func.func @transform_1(%arg0: i32) -> (i32, i32) {
    %c0_i32 = arith.constant 0 : i32
    %c0_i32_0 = arith.constant 0 : i32
    return %arg0, %c0_i32 : i32, i32
  }
  func.func @transform_2(%arg0: i32) -> (i32, i32) {
    %c0_i32 = arith.constant 0 : i32
    %c0_i32_0 = arith.constant 0 : i32
    %c0_i32_1 = arith.constant 0 : i32
    return %c0_i32, %c0_i32_0 : i32, i32
  }
  func.func @transform_3(%arg0: i32) -> (i32, i32) {
    %c0_i32 = arith.constant 0 : i32
    %c0_i32_0 = arith.constant 0 : i32
    %c0_i32_1 = arith.constant 0 : i32
    return %c0_i32, %c0_i32_0 : i32, i32
  }
  func.func @transform_4(%arg0: i32) -> (i32, i32) {
    %c0_i32 = arith.constant 0 : i32
    %c0_i32_0 = arith.constant 0 : i32
    %c0_i32_1 = arith.constant 0 : i32
    return %c0_i32, %c0_i32_0 : i32, i32
  }
}

</mosaic_0001>

<llo_original>
// kernel: tpu_custom_call.1
$region0: #{tpu_custom_call.1}
  #allocation0 [shape = 'u32[]', space=smem, size = 0x4, offset = 0x4, fixed_abs, tag = 'smem constant byte address 0x4 - core index']
  #allocation1 [shape = 'u32[144,128]{1,0:T(1,128)}', space=vmem, size = 0x12000, scoped, tag = 'internal scratch']
  #allocation2 [shape = 'f32[256,16]{1,0:T(8,128)}', space=vmem, size = 0x20000, scoped, tag = 'scratch operand']
  #allocation3 [shape = 'f32[128,128]{1,0:T(8,128)}', space=vmem, size = 0x10000, scoped, tag = 'scratch operand']
  %s0 = inlined_call_operand.vmem [shape: f32[128,16], index: 0, kind: input, shape index: {}]
  %s1 = inlined_call_operand.vmem [shape: f32[128,16], index: 1, kind: input, shape index: {}]
  %s2 = inlined_call_operand.vmem [shape: f32[16,256], index: 2, kind: input, shape index: {}]
  %s3 = inlined_call_operand.hbm [shape: f32[512,256], index: 3, kind: input, shape index: {}]
  %s4 = inlined_call_operand.hbm [shape: f32[1,1], index: 4, kind: output, shape index: {}]
  %s5 = sld [smem:[#allocation0]]
  $region38: #{tpu_custom_call.1} parent=0
    _
  %s7 = ssub.s32 1, %s5
  %s8 = scalar_select 0, %s7, %s5
  $region1: #{tpu_custom_call.1} parent=0
    #allocation4 [shape = 'u8[524288]{0}', space=vmem, size = 0x80000, scoped, tag = 'input window, operand 3, single buffered']
    #allocation5 [shape = 's32[1]{0}', space=sflag, size = 0x4, scoped, tag = 'scoped memory for tpu_custom_call.1']
    #allocation6 [shape = 's32[1]{0}', space=sflag, size = 0x4, scoped, tag = 'scoped memory for tpu_custom_call.1']
    #allocation7 [shape = 'u8[512]{0}', space=vmem, size = 0x400, scoped, tag = 'output window, operand 0, single buffered']
    %9 = vsyncpa [#allocation5], 0
    %10 = vsyncpa [#allocation6], 0
    // Predicated region
    $region2: #{tpu_custom_call.1} parent=1 // pred_check
      _
    $region3: #{tpu_custom_call.1} parent=1 // pred_check_branch
      %12 = sbr.rel (0) target = $region5
    $region4: #{tpu_custom_call.1} parent=1 // pred_region
      _
    $region5: #{tpu_custom_call.1} parent=1 // pred_fallthru
      _
    // Predicated region
    $region6: #{tpu_custom_call.1} parent=1 // pred_check
      _
    $region7: #{tpu_custom_call.1} parent=1 // pred_check_branch
      %14 = sbr.rel (0) target = $region9
    $region8: #{tpu_custom_call.1} parent=1 // pred_region
      _
    $region9: #{tpu_custom_call.1} parent=1 // pred_fallthru
      _
    // Predicated region
    $region10: #{tpu_custom_call.1} parent=1 // pred_check
      _
    $region11: #{tpu_custom_call.1} parent=1 // pred_check_branch
      %16 = sbr.rel (0) target = $region13
    $region12: #{tpu_custom_call.1} parent=1 // pred_region
      _
    $region13: #{tpu_custom_call.1} parent=1 // pred_fallthru
      _
    // Predicated region
    $region14: #{tpu_custom_call.1} parent=1 // pred_check
      _
    $region15: #{tpu_custom_call.1} parent=1 // pred_check_branch
      %18 = sbr.rel (0) target = $region17
    $region16: #{tpu_custom_call.1} parent=1 // pred_region
      %s20 = ssub.s32 16384, 16384
      %21 = vsyncadd [#allocation5], %s20
      %s22 = sshll.u32 [#allocation4], 4
      %s23 = int_to_ptr.vmem [resolvable:$true] %s22
      %28 = dma.hbm_to_vmem [thread:$0]  %s3, 16384, %s23, [#allocation5], 256, 256, 16
    $region17: #{tpu_custom_call.1} parent=1 // pred_fallthru
      _
    // Predicated region
    $region18: #{tpu_custom_call.1} parent=1 // pred_check
      _
    $region19: #{tpu_custom_call.1} parent=1 // pred_check_branch
      %30 = sbr.rel (0) target = $region21
    $region20: #{tpu_custom_call.1} parent=1 // pred_region
      %31 = dma.done [#allocation5], 16384
    $region21: #{tpu_custom_call.1} parent=1 // pred_fallthru
      _
    %p32 = scmp.eq.s32.totalorder 0, 0
    // Predicated region
    $region22: #{tpu_custom_call.1} parent=1 // pred_check
      %p33 = pneg %p32
    $region23: #{tpu_custom_call.1} parent=1 // pred_check_branch
      %35 = sbr.rel (%p33) target = $region25
    $region24: #{tpu_custom_call.1} parent=1 // pred_region
      %36 = vst [vmem:[#allocation3] sm:$0xff] 0.0
      %37 = vst [vmem:[#allocation3 + $0x8] sm:$0xff] 0.0
      %38 = vst [vmem:[#allocation3 + $0x10] sm:$0xff] 0.0
      %39 = vst [vmem:[#allocation3 + $0x18] sm:$0xff] 0.0
      %40 = vst [vmem:[#allocation3 + $0x20] sm:$0xff] 0.0
      %41 = vst [vmem:[#allocation3 + $0x28] sm:$0xff] 0.0
      %42 = vst [vmem:[#allocation3 + $0x30] sm:$0xff] 0.0
      %43 = vst [vmem:[#allocation3 + $0x38] sm:$0xff] 0.0
      %44 = vst [vmem:[#allocation3 + $0x40] sm:$0xff] 0.0
      %45 = vst [vmem:[#allocation3 + $0x48] sm:$0xff] 0.0
      %46 = vst [vmem:[#allocation3 + $0x50] sm:$0xff] 0.0
      %47 = vst [vmem:[#allocation3 + $0x58] sm:$0xff] 0.0
      %48 = vst [vmem:[#allocation3 + $0x60] sm:$0xff] 0.0
      %49 = vst [vmem:[#allocation3 + $0x68] sm:$0xff] 0.0
      %50 = vst [vmem:[#allocation3 + $0x70] sm:$0xff] 0.0
      %51 = vst [vmem:[#allocation3 + $0x78] sm:$0xff] 0.0
    $region25: #{tpu_custom_call.1} parent=1 // pred_fallthru
      _
    %v52 = vld [vmem:[%s0] sm:$0xff]
    %v53 = vld [vmem:[%s0 + $0x8] sm:$0xff]
    %v54 = vld [vmem:[%s0 + $0x10] sm:$0xff]
    %v55 = vld [vmem:[%s0 + $0x18] sm:$0xff]
    %v56 = vld [vmem:[%s0 + $0x20] sm:$0xff]
    %v57 = vld [vmem:[%s0 + $0x28] sm:$0xff]
    %v58 = vld [vmem:[%s0 + $0x30] sm:$0xff]
    %v59 = vld [vmem:[%s0 + $0x38] sm:$0xff]
    %v60 = vld [vmem:[%s0 + $0x40] sm:$0xff]
    %v61 = vld [vmem:[%s0 + $0x48] sm:$0xff]
    %v62 = vld [vmem:[%s0 + $0x50] sm:$0xff]
    %v63 = vld [vmem:[%s0 + $0x58] sm:$0xff]
    %v64 = vld [vmem:[%s0 + $0x60] sm:$0xff]
    %v65 = vld [vmem:[%s0 + $0x68] sm:$0xff]
    %v66 = vld [vmem:[%s0 + $0x70] sm:$0xff]
    %v67 = vld [vmem:[%s0 + $0x78] sm:$0xff]
    %vm68 = vcmask 130048
    %69 = vst.msk [vmem:[#allocation2] sm:$0xff] %vm68, %v52
    %70 = vst.msk [vmem:[#allocation2 + $0x8] sm:$0xff] %vm68, %v53
    %71 = vst.msk [vmem:[#allocation2 + $0x10] sm:$0xff] %vm68, %v54
    %72 = vst.msk [vmem:[#allocation2 + $0x18] sm:$0xff] %vm68, %v55
    %73 = vst.msk [vmem:[#allocation2 + $0x20] sm:$0xff] %vm68, %v56
    %74 = vst.msk [vmem:[#allocation2 + $0x28] sm:$0xff] %vm68, %v57
    %75 = vst.msk [vmem:[#allocation2 + $0x30] sm:$0xff] %vm68, %v58
    %76 = vst.msk [vmem:[#allocation2 + $0x38] sm:$0xff] %vm68, %v59
    %77 = vst.msk [vmem:[#allocation2 + $0x40] sm:$0xff] %vm68, %v60
    %78 = vst.msk [vmem:[#allocation2 + $0x48] sm:$0xff] %vm68, %v61
    %79 = vst.msk [vmem:[#allocation2 + $0x50] sm:$0xff] %vm68, %v62
    %80 = vst.msk [vmem:[#allocation2 + $0x58] sm:$0xff] %vm68, %v63
    %81 = vst.msk [vmem:[#allocation2 + $0x60] sm:$0xff] %vm68, %v64
    %82 = vst.msk [vmem:[#allocation2 + $0x68] sm:$0xff] %vm68, %v65
    %83 = vst.msk [vmem:[#allocation2 + $0x70] sm:$0xff] %vm68, %v66
    %84 = vst.msk [vmem:[#allocation2 + $0x78] sm:$0xff] %vm68, %v67
    %v85 = vld [vmem:[%s1] sm:$0xff]
    %v86 = vld [vmem:[%s1 + $0x8] sm:$0xff]
    %v87 = vld [vmem:[%s1 + $0x10] sm:$0xff]
    %v88 = vld [vmem:[%s1 + $0x18] sm:$0xff]
    %v89 = vld [vmem:[%s1 + $0x20] sm:$0xff]
    %v90 = vld [vmem:[%s1 + $0x28] sm:$0xff]
    %v91 = vld [vmem:[%s1 + $0x30] sm:$0xff]
    %v92 = vld [vmem:[%s1 + $0x38] sm:$0xff]
    %v93 = vld [vmem:[%s1 + $0x40] sm:$0xff]
    %v94 = vld [vmem:[%s1 + $0x48] sm:$0xff]
    %v95 = vld [vmem:[%s1 + $0x50] sm:$0xff]
    %v96 = vld [vmem:[%s1 + $0x58] sm:$0xff]
    %v97 = vld [vmem:[%s1 + $0x60] sm:$0xff]
    %v98 = vld [vmem:[%s1 + $0x68] sm:$0xff]
    %v99 = vld [vmem:[%s1 + $0x70] sm:$0xff]
    %v100 = vld [vmem:[%s1 + $0x78] sm:$0xff]
    %101 = vst.msk [vmem:[#allocation2 + $0x80] sm:$0xff] %vm68, %v85
    %102 = vst.msk [vmem:[#allocation2 + $0x88] sm:$0xff] %vm68, %v86
    %103 = vst.msk [vmem:[#allocation2 + $0x90] sm:$0xff] %vm68, %v87
    %104 = vst.msk [vmem:[#allocation2 + $0x98] sm:$0xff] %vm68, %v88
    %105 = vst.msk [vmem:[#allocation2 + $0xa0] sm:$0xff] %vm68, %v89
    %106 = vst.msk [vmem:[#allocation2 + $0xa8] sm:$0xff] %vm68, %v90
    %107 = vst.msk [vmem:[#allocation2 + $0xb0] sm:$0xff] %vm68, %v91
    %108 = vst.msk [vmem:[#allocation2 + $0xb8] sm:$0xff] %vm68, %v92
    %109 = vst.msk [vmem:[#allocation2 + $0xc0] sm:$0xff] %vm68, %v93
    %110 = vst.msk [vmem:[#allocation2 + $0xc8] sm:$0xff] %vm68, %v94
    %111 = vst.msk [vmem:[#allocation2 + $0xd0] sm:$0xff] %vm68, %v95
    %112 = vst.msk [vmem:[#allocation2 + $0xd8] sm:$0xff] %vm68, %v96
    %113 = vst.msk [vmem:[#allocation2 + $0xe0] sm:$0xff] %vm68, %v97
    %114 = vst.msk [vmem:[#allocation2 + $0xe8] sm:$0xff] %vm68, %v98
    %115 = vst.msk [vmem:[#allocation2 + $0xf0] sm:$0xff] %vm68, %v99
    %116 = vst.msk [vmem:[#allocation2 + $0xf8] sm:$0xff] %vm68, %v100
    %v117 = vld [vmem:[#allocation2] sm:$0xff]
    %v118 = vld [vmem:[#allocation2 + $0x8] sm:$0xff]
    %v119 = vld [vmem:[#allocation2 + $0x10] sm:$0xff]
    %v120 = vld [vmem:[#allocation2 + $0x18] sm:$0xff]
    %v121 = vld [vmem:[#allocation2 + $0x20] sm:$0xff]
    %v122 = vld [vmem:[#allocation2 + $0x28] sm:$0xff]
    %v123 = vld [vmem:[#allocation2 + $0x30] sm:$0xff]
    %v124 = vld [vmem:[#allocation2 + $0x38] sm:$0xff]
    %v125 = vld [vmem:[#allocation2 + $0x40] sm:$0xff]
    %v126 = vld [vmem:[#allocation2 + $0x48] sm:$0xff]
    %v127 = vld [vmem:[#allocation2 + $0x50] sm:$0xff]
    %v128 = vld [vmem:[#allocation2 + $0x58] sm:$0xff]
    %v129 = vld [vmem:[#allocation2 + $0x60] sm:$0xff]
    %v130 = vld [vmem:[#allocation2 + $0x68] sm:$0xff]
    %v131 = vld [vmem:[#allocation2 + $0x70] sm:$0xff]
    %v132 = vld [vmem:[#allocation2 + $0x78] sm:$0xff]
    %v133 = vld [vmem:[#allocation2 + $0x80] sm:$0xff]
    %v134 = vld [vmem:[#allocation2 + $0x88] sm:$0xff]
    %v135 = vld [vmem:[#allocation2 + $0x90] sm:$0xff]
    %v136 = vld [vmem:[#allocation2 + $0x98] sm:$0xff]
    %v137 = vld [vmem:[#allocation2 + $0xa0] sm:$0xff]
    %v138 = vld [vmem:[#allocation2 + $0xa8] sm:$0xff]
    %v139 = vld [vmem:[#allocation2 + $0xb0] sm:$0xff]
    %v140 = vld [vmem:[#allocation2 + $0xb8] sm:$0xff]
    %v141 = vld [vmem:[#allocation2 + $0xc0] sm:$0xff]
    %v142 = vld [vmem:[#allocation2 + $0xc8] sm:$0xff]
    %v143 = vld [vmem:[#allocation2 + $0xd0] sm:$0xff]
    %v144 = vld [vmem:[#allocation2 + $0xd8] sm:$0xff]
    %v145 = vld [vmem:[#allocation2 + $0xe0] sm:$0xff]
    %v146 = vld [vmem:[#allocation2 + $0xe8] sm:$0xff]
    %v147 = vld [vmem:[#allocation2 + $0xf0] sm:$0xff]
    %v148 = vld [vmem:[#allocation2 + $0xf8] sm:$0xff]
    %v149 = vld [vmem:[%s2] sm:$0xff]
    %v150 = vld [vmem:[%s2 + $0x8] sm:$0xff]
    %v151 = vld [vmem:[%s2 + $0x10] sm:$0xff]
    %v152 = vld [vmem:[%s2 + $0x18] sm:$0xff]
    %v154 = vsel %vm68, %v117, 0
    %v157 = vsel %vm68, %v118, 0
    %v160 = vsel %vm68, %v119, 0
    %v163 = vsel %vm68, %v120, 0
    %v166 = vsel %vm68, %v121, 0
    %v169 = vsel %vm68, %v122, 0
    %v172 = vsel %vm68, %v123, 0
    %v175 = vsel %vm68, %v124, 0
    %v178 = vsel %vm68, %v125, 0
    %v181 = vsel %vm68, %v126, 0
    %v184 = vsel %vm68, %v127, 0
    %v187 = vsel %vm68, %v128, 0
    %v190 = vsel %vm68, %v129, 0
    %v193 = vsel %vm68, %v130, 0
    %v196 = vsel %vm68, %v131, 0
    %v199 = vsel %vm68, %v132, 0
    %v202 = vsel %vm68, %v133, 0
    %v205 = vsel %vm68, %v134, 0
    %v208 = vsel %vm68, %v135, 0
    %v211 = vsel %vm68, %v136, 0
    %v214 = vsel %vm68, %v137, 0
    %v217 = vsel %vm68, %v138, 0
    %v220 = vsel %vm68, %v139, 0
    %v223 = vsel %vm68, %v140, 0
    %v226 = vsel %vm68, %v141, 0
    %v229 = vsel %vm68, %v142, 0
    %v232 = vsel %vm68, %v143, 0
    %v235 = vsel %vm68, %v144, 0
    %v238 = vsel %vm68, %v145, 0
    %v241 = vsel %vm68, %v146, 0
    %v244 = vsel %vm68, %v147, 0
    %v247 = vsel %vm68, %v148, 0
    %249 = vmatprep.subr.mxu0 %v150
    %250 = vmatpush1.msra.mxu0 %v149
    %251 = vmatprep.subr.mxu0 %v152
    %252 = vmatpush1.msra.mxu0 %v151
    %253 = vmatprep.subr.mxu0 0.0
    %254 = vmatpush1.msra.mxu0 0.0
    %255 = vmatprep.subr.mxu0 0.0
    %256 = vmatpush1.msra.mxu0 0.0
    %257 = vmatprep.subr.mxu0 0.0
    %258 = vmatpush1.msra.mxu0 0.0
    %259 = vmatprep.subr.mxu0 0.0
    %260 = vmatpush1.msra.mxu0 0.0
    %261 = vmatprep.subr.mxu0 0.0
    %262 = vmatpush1.msra.mxu0 0.0
    %263 = vmatprep.subr.mxu0 0.0
    %264 = vmatpush1.msra.mxu0 0.0
    %265 = vmatprep.subr.mxu0 0.0
    %266 = vmatpush1.msra.mxu0 0.0
    %267 = vmatprep.subr.mxu0 0.0
    %268 = vmatpush1.msra.mxu0 0.0
    %269 = vmatprep.subr.mxu0 0.0
    %270 = vmatpush1.msra.mxu0 0.0
    %271 = vmatprep.subr.mxu0 0.0
    %272 = vmatpush1.msra.mxu0 0.0
    %273 = vmatprep.subr.mxu0 0.0
    %274 = vmatpush1.msra.mxu0 0.0
    %275 = vmatprep.subr.mxu0 0.0
    %276 = vmatpush1.msra.mxu0 0.0
    %277 = vmatprep.subr.mxu0 0.0
    %278 = vmatpush1.msra.mxu0 0.0
    %279 = vmatprep.subr.mxu0 0.0
    %280 = vmatpush1.msra.mxu0 0.0
    %281 = vmatprep.subr.mxu0 0.0
    %282 = vmatpush1.msra.mxu0 0.0
    %283 = vmatprep.subr.mxu0 0.0
    %284 = vmatpush1.msra.mxu0 0.0
    %285 = vmatprep.subr.mxu0 0.0
    %286 = vmatpush1.msra.mxu0 0.0
    %287 = vmatprep.subr.mxu0 0.0
    %288 = vmatpush1.msra.mxu0 0.0
    %289 = vmatprep.subr.mxu0 0.0
    %290 = vmatpush1.msra.mxu0 0.0
    %291 = vmatprep.subr.mxu0 0.0
    %292 = vmatpush1.msra.mxu0 0.0
    %293 = vmatprep.subr.mxu0 0.0
    %294 = vmatpush1.msra.mxu0 0.0
    %295 = vmatprep.subr.mxu0 0.0
    %296 = vmatpush1.msra.mxu0 0.0
    %297 = vmatprep.subr.mxu0 0.0
    %298 = vmatpush1.msra.mxu0 0.0
    %299 = vmatprep.subr.mxu0 0.0
    %300 = vmatpush1.msra.mxu0 0.0
    %301 = vmatprep.subr.mxu0 0.0
    %302 = vmatpush1.msra.mxu0 0.0
    %303 = vmatprep.subr.mxu0 0.0
    %304 = vmatpush1.msra.mxu0 0.0
    %305 = vmatprep.subr.mxu0 0.0
    %306 = vmatpush1.msra.mxu0 0.0
    %307 = vmatprep.subr.mxu0 0.0
    %308 = vmatpush1.msra.mxu0 0.0
    %309 = vmatprep.subr.mxu0 0.0
    %310 = vmatpush1.msra.mxu0 0.0
    %311 = vmatprep.subr.mxu0 0.0
    %312 = vmatpush1.msra.mxu0 0.0
    %313 = vmatprep.mubr.f32.mxu0 0.0
    %314 = vmatmul.mubr.f32.gmra.mrb[0].mxu0 %v154
    %v315 = vpop.f32.mrb[0].mxu0
    %v316 = vadd.f32 0.0, %v315
    %v317 = vpop.f32.mrb[0].mxu0
    %v318 = vadd.f32 0.0, %v317
    %319 = vmatprep.mubr.f32.mxu0 0.0
    %320 = vmatmul.mubr.f32.gmra.mrb[0].mxu0 %v157
    %v321 = vpop.f32.mrb[0].mxu0
    %v322 = vadd.f32 0.0, %v321
    %v323 = vpop.f32.mrb[0].mxu0
    %v324 = vadd.f32 0.0, %v323
    %325 = vmatprep.mubr.f32.mxu0 0.0
    %326 = vmatmul.mubr.f32.gmra.mrb[0].mxu0 %v160
    %v327 = vpop.f32.mrb[0].mxu0
    %v328 = vadd.f32 0.0, %v327
    %v329 = vpop.f32.mrb[0].mxu0
    %v330 = vadd.f32 0.0, %v329
    %331 = vmatprep.mubr.f32.mxu0 0.0
    %332 = vmatmul.mubr.f32.gmra.mrb[0].mxu0 %v163
    %v333 = vpop.f32.mrb[0].mxu0
    %v334 = vadd.f32 0.0, %v333
    %v335 = vpop.f32.mrb[0].mxu0
    %v336 = vadd.f32 0.0, %v335
    %337 = vmatprep.mubr.f32.mxu0 0.0
    %338 = vmatmul.mubr.f32.gmra.mrb[0].mxu0 %v166
    %v339 = vpop.f32.mrb[0].mxu0
    %v340 = vadd.f32 0.0, %v339
    %v341 = vpop.f32.mrb[0].mxu0
    %v342 = vadd.f32 0.0, %v341
    %343 = vmatprep.mubr.f32.mxu0 0.0
    %344 = vmatmul.mubr.f32.gmra.mrb[0].mxu0 %v169
    %v345 = vpop.f32.mrb[0].mxu0
    %v346 = vadd.f32 0.0, %v345
    %v347 = vpop.f32.mrb[0].mxu0
    %v348 = vadd.f32 0.0, %v347
    %349 = vmatprep.mubr.f32.mxu0 0.0
    %350 = vmatmul.mubr.f32.gmra.mrb[0].mxu0 %v172
    %v351 = vpop.f32.mrb[0].mxu0
    %v352 = vadd.f32 0.0, %v351
    %v353 = vpop.f32.mrb[0].mxu0
    %v354 = vadd.f32 0.0, %v353
    %355 = vmatprep.mubr.f32.mxu0 0.0
    %356 = vmatmul.mubr.f32.gmra.mrb[0].mxu0 %v175
    %v357 = vpop.f32.mrb[0].mxu0
    %v358 = vadd.f32 0.0, %v357
    %v359 = vpop.f32.mrb[0].mxu0
    %v360 = vadd.f32 0.0, %v359
    %361 = vmatprep.mubr.f32.mxu0 0.0
    %362 = vmatmul.mubr.f32.gmra.mrb[0].mxu0 %v178
    %v363 = vpop.f32.mrb[0].mxu0
    %v364 = vadd.f32 0.0, %v363
    %v365 = vpop.f32.mrb[0].mxu0
    %v366 = vadd.f32 0.0, %v365
    %367 = vmatprep.mubr.f32.mxu0 0.0
    %368 = vmatmul.mubr.f32.gmra.mrb[0].mxu0 %v181
    %v369 = vpop.f32.mrb[0].mxu0
    %v370 = vadd.f32 0.0, %v369
    %v371 = vpop.f32.mrb[0].mxu0
    %v372 = vadd.f32 0.0, %v371
    %373 = vmatprep.mubr.f32.mxu0 0.0
    %374 = vmatmul.mubr.f32.gmra.mrb[0].mxu0 %v184
    %v375 = vpop.f32.mrb[0].mxu0
    %v376 = vadd.f32 0.0, %v375
    %v377 = vpop.f32.mrb[0].mxu0
    %v378 = vadd.f32 0.0, %v377
    %379 = vmatprep.mubr.f32.mxu0 0.0
    %380 = vmatmul.mubr.f32.gmra.mrb[0].mxu0 %v187
    %v381 = vpop.f32.mrb[0].mxu0
    %v382 = vadd.f32 0.0, %v381
    %v383 = vpop.f32.mrb[0].mxu0
    %v384 = vadd.f32 0.0, %v383
    %385 = vmatprep.mubr.f32.mxu0 0.0
    %386 = vmatmul.mubr.f32.gmra.mrb[0].mxu0 %v190
    %v387 = vpop.f32.mrb[0].mxu0
    %v388 = vadd.f32 0.0, %v387
    %v389 = vpop.f32.mrb[0].mxu0
    %v390 = vadd.f32 0.0, %v389
    %391 = vmatprep.mubr.f32.mxu0 0.0
    %392 = vmatmul.mubr.f32.gmra.mrb[0].mxu0 %v193
    %v393 = vpop.f32.mrb[0].mxu0
    %v394 = vadd.f32 0.0, %v393
    %v395 = vpop.f32.mrb[0].mxu0
    %v396 = vadd.f32 0.0, %v395
    %397 = vmatprep.mubr.f32.mxu0 0.0
    %398 = vmatmul.mubr.f32.gmra.mrb[0].mxu0 %v196
    %v399 = vpop.f32.mrb[0].mxu0
    %v400 = vadd.f32 0.0, %v399
    %v401 = vpop.f32.mrb[0].mxu0
    %v402 = vadd.f32 0.0, %v401
    %403 = vmatprep.mubr.f32.mxu0 0.0
    %404 = vmatmul.mubr.f32.gmra.mrb[0].mxu0 %v199
    %v405 = vpop.f32.mrb[0].mxu0
    %v406 = vadd.f32 0.0, %v405
    %v407 = vpop.f32.mrb[0].mxu0
    %v408 = vadd.f32 0.0, %v407
    %409 = vmatprep.mubr.f32.mxu0 0.0
    %410 = vmatmul.mubr.f32.gmra.mrb[0].mxu0 %v202
    %v411 = vpop.f32.mrb[0].mxu0
    %v412 = vadd.f32 0.0, %v411
    %v413 = vpop.f32.mrb[0].mxu0
    %v414 = vadd.f32 0.0, %v413
    %415 = vmatprep.mubr.f32.mxu0 0.0
    %416 = vmatmul.mubr.f32.gmra.mrb[0].mxu0 %v205
    %v417 = vpop.f32.mrb[0].mxu0
    %v418 = vadd.f32 0.0, %v417
    %v419 = vpop.f32.mrb[0].mxu0
    %v420 = vadd.f32 0.0, %v419
    %421 = vmatprep.mubr.f32.mxu0 0.0
    %422 = vmatmul.mubr.f32.gmra.mrb[0].mxu0 %v208
    %v423 = vpop.f32.mrb[0].mxu0
    %v424 = vadd.f32 0.0, %v423
    %v425 = vpop.f32.mrb[0].mxu0
    %v426 = vadd.f32 0.0, %v425
    %427 = vmatprep.mubr.f32.mxu0 0.0
    %428 = vmatmul.mubr.f32.gmra.mrb[0].mxu0 %v211
    %v429 = vpop.f32.mrb[0].mxu0
    %v430 = vadd.f32 0.0, %v429
    %v431 = vpop.f32.mrb[0].mxu0
    %v432 = vadd.f32 0.0, %v431
    %433 = vmatprep.mubr.f32.mxu0 0.0
    %434 = vmatmul.mubr.f32.gmra.mrb[0].mxu0 %v214
    %v435 = vpop.f32.mrb[0].mxu0
    %v436 = vadd.f32 0.0, %v435
    %v437 = vpop.f32.mrb[0].mxu0
    %v438 = vadd.f32 0.0, %v437
    %439 = vmatprep.mubr.f32.mxu0 0.0
    %440 = vmatmul.mubr.f32.gmra.mrb[0].mxu0 %v217
    %v441 = vpop.f32.mrb[0].mxu0
    %v442 = vadd.f32 0.0, %v441
    %v443 = vpop.f32.mrb[0].mxu0
    %v444 = vadd.f32 0.0, %v443
    %445 = vmatprep.mubr.f32.mxu0 0.0
    %446 = vmatmul.mubr.f32.gmra.mrb[0].mxu0 %v220
    %v447 = vpop.f32.mrb[0].mxu0
    %v448 = vadd.f32 0.0, %v447
    %v449 = vpop.f32.mrb[0].mxu0
    %v450 = vadd.f32 0.0, %v449
    %451 = vmatprep.mubr.f32.mxu0 0.0
    %452 = vmatmul.mubr.f32.gmra.mrb[0].mxu0 %v223
    %v453 = vpop.f32.mrb[0].mxu0
    %v454 = vadd.f32 0.0, %v453
    %v455 = vpop.f32.mrb[0].mxu0
    %v456 = vadd.f32 0.0, %v455
    %457 = vmatprep.mubr.f32.mxu0 0.0
    %458 = vmatmul.mubr.f32.gmra.mrb[0].mxu0 %v226
    %v459 = vpop.f32.mrb[0].mxu0
    %v460 = vadd.f32 0.0, %v459
    %v461 = vpop.f32.mrb[0].mxu0
    %v462 = vadd.f32 0.0, %v461
    %463 = vmatprep.mubr.f32.mxu0 0.0
    %464 = vmatmul.mubr.f32.gmra.mrb[0].mxu0 %v229
    %v465 = vpop.f32.mrb[0].mxu0
    %v466 = vadd.f32 0.0, %v465
    %v467 = vpop.f32.mrb[0].mxu0
    %v468 = vadd.f32 0.0, %v467
    %469 = vmatprep.mubr.f32.mxu0 0.0
    %470 = vmatmul.mubr.f32.gmra.mrb[0].mxu0 %v232
    %v471 = vpop.f32.mrb[0].mxu0
    %v472 = vadd.f32 0.0, %v471
    %v473 = vpop.f32.mrb[0].mxu0
    %v474 = vadd.f32 0.0, %v473
    %475 = vmatprep.mubr.f32.mxu0 0.0
    %476 = vmatmul.mubr.f32.gmra.mrb[0].mxu0 %v235
    %v477 = vpop.f32.mrb[0].mxu0
    %v478 = vadd.f32 0.0, %v477
    %v479 = vpop.f32.mrb[0].mxu0
    %v480 = vadd.f32 0.0, %v479
    %481 = vmatprep.mubr.f32.mxu0 0.0
    %482 = vmatmul.mubr.f32.gmra.mrb[0].mxu0 %v238
    %v483 = vpop.f32.mrb[0].mxu0
    %v484 = vadd.f32 0.0, %v483
    %v485 = vpop.f32.mrb[0].mxu0
    %v486 = vadd.f32 0.0, %v485
    %487 = vmatprep.mubr.f32.mxu0 0.0
    %488 = vmatmul.mubr.f32.gmra.mrb[0].mxu0 %v241
    %v489 = vpop.f32.mrb[0].mxu0
    %v490 = vadd.f32 0.0, %v489
    %v491 = vpop.f32.mrb[0].mxu0
    %v492 = vadd.f32 0.0, %v491
    %493 = vmatprep.mubr.f32.mxu0 0.0
    %494 = vmatmul.mubr.f32.gmra.mrb[0].mxu0 %v244
    %v495 = vpop.f32.mrb[0].mxu0
    %v496 = vadd.f32 0.0, %v495
    %v497 = vpop.f32.mrb[0].mxu0
    %v498 = vadd.f32 0.0, %v497
    %499 = vmatprep.mubr.f32.mxu0 0.0
    %500 = vmatmul.mubr.f32.gmra.mrb[0].mxu0 %v247
    %v501 = vpop.f32.mrb[0].mxu0
    %v502 = vadd.f32 0.0, %v501
    %v503 = vpop.f32.mrb[0].mxu0
    %v504 = vadd.f32 0.0, %v503
    %505 = vdwg.mxu0
    %v506 = vld [vmem:[#allocation4] sm:$0xff]
    %v507 = vld [vmem:[#allocation4 + $0x8] sm:$0xff]
    %v508 = vld [vmem:[#allocation4 + $0x10] sm:$0xff]
    %v509 = vld [vmem:[#allocation4 + $0x18] sm:$0xff]
    %v510 = vld [vmem:[#allocation4 + $0x20] sm:$0xff]
    %v511 = vld [vmem:[#allocation4 + $0x28] sm:$0xff]
    %v512 = vld [vmem:[#allocation4 + $0x30] sm:$0xff]
    %v513 = vld [vmem:[#allocation4 + $0x38] sm:$0xff]
    %v514 = vld [vmem:[#allocation4 + $0x40] sm:$0xff]
    %v515 = vld [vmem:[#allocation4 + $0x48] sm:$0xff]
    %v516 = vld [vmem:[#allocation4 + $0x50] sm:$0xff]
    %v517 = vld [vmem:[#allocation4 + $0x58] sm:$0xff]
    %v518 = vld [vmem:[#allocation4 + $0x60] sm:$0xff]
    %v519 = vld [vmem:[#allocation4 + $0x68] sm:$0xff]
    %v520 = vld [vmem:[#allocation4 + $0x70] sm:$0xff]
    %v521 = vld [vmem:[#allocation4 + $0x78] sm:$0xff]
    %v522 = vld [vmem:[#allocation4 + $0x80] sm:$0xff]
    %v523 = vld [vmem:[#allocation4 + $0x88] sm:$0xff]
    %v524 = vld [vmem:[#allocation4 + $0x90] sm:$0xff]
    %v525 = vld [vmem:[#allocation4 + $0x98] sm:$0xff]
    %v526 = vld [vmem:[#allocation4 + $0xa0] sm:$0xff]
    %v527 = vld [vmem:[#allocation4 + $0xa8] sm:$0xff]
    %v528 = vld [vmem:[#allocation4 + $0xb0] sm:$0xff]
    %v529 = vld [vmem:[#allocation4 + $0xb8] sm:$0xff]
    %v530 = vld [vmem:[#allocation4 + $0xc0] sm:$0xff]
    %v531 = vld [vmem:[#allocation4 + $0xc8] sm:$0xff]
    %v532 = vld [vmem:[#allocation4 + $0xd0] sm:$0xff]
    %v533 = vld [vmem:[#allocation4 + $0xd8] sm:$0xff]
    %v534 = vld [vmem:[#allocation4 + $0xe0] sm:$0xff]
    %v535 = vld [vmem:[#allocation4 + $0xe8] sm:$0xff]
    %v536 = vld [vmem:[#allocation4 + $0xf0] sm:$0xff]
    %v537 = vld [vmem:[#allocation4 + $0xf8] sm:$0xff]
    %v538 = vld [vmem:[#allocation4 + $0x100] sm:$0xff]
    %v539 = vld [vmem:[#allocation4 + $0x108] sm:$0xff]
    %v540 = vld [vmem:[#allocation4 + $0x110] sm:$0xff]
    %v541 = vld [vmem:[#allocation4 + $0x118] sm:$0xff]
    %v542 = vld [vmem:[#allocation4 + $0x120] sm:$0xff]
    %v543 = vld [vmem:[#allocation4 + $0x128] sm:$0xff]
    %v544 = vld [vmem:[#allocation4 + $0x130] sm:$0xff]
    %v545 = vld [vmem:[#allocation4 + $0x138] sm:$0xff]
    %v546 = vld [vmem:[#allocation4 + $0x140] sm:$0xff]
    %v547 = vld [vmem:[#allocation4 + $0x148] sm:$0xff]
    %v548 = vld [vmem:[#allocation4 + $0x150] sm:$0xff]
    %v549 = vld [vmem:[#allocation4 + $0x158] sm:$0xff]
    %v550 = vld [vmem:[#allocation4 + $0x160] sm:$0xff]
    %v551 = vld [vmem:[#allocation4 + $0x168] sm:$0xff]
    %v552 = vld [vmem:[#allocation4 + $0x170] sm:$0xff]
    %v553 = vld [vmem:[#allocation4 + $0x178] sm:$0xff]
    %v554 = vld [vmem:[#allocation4 + $0x180] sm:$0xff]
    %v555 = vld [vmem:[#allocation4 + $0x188] sm:$0xff]
    %v556 = vld [vmem:[#allocation4 + $0x190] sm:$0xff]
    %v557 = vld [vmem:[#allocation4 + $0x198] sm:$0xff]
    %v558 = vld [vmem:[#allocation4 + $0x1a0] sm:$0xff]
    %v559 = vld [vmem:[#allocation4 + $0x1a8] sm:$0xff]
    %v560 = vld [vmem:[#allocation4 + $0x1b0] sm:$0xff]
    %v561 = vld [vmem:[#allocation4 + $0x1b8] sm:$0xff]
    %v562 = vld [vmem:[#allocation4 + $0x1c0] sm:$0xff]
    %v563 = vld [vmem:[#allocation4 + $0x1c8] sm:$0xff]
    %v564 = vld [vmem:[#allocation4 + $0x1d0] sm:$0xff]
    %v565 = vld [vmem:[#allocation4 + $0x1d8] sm:$0xff]
    %v566 = vld [vmem:[#allocation4 + $0x1e0] sm:$0xff]
    %v567 = vld [vmem:[#allocation4 + $0x1e8] sm:$0xff]
    %v568 = vld [vmem:[#allocation4 + $0x1f0] sm:$0xff]
    %v569 = vld [vmem:[#allocation4 + $0x1f8] sm:$0xff]
    %v570 = vld [vmem:[#allocation4 + $0x200] sm:$0xff]
    %v571 = vld [vmem:[#allocation4 + $0x208] sm:$0xff]
    %v572 = vld [vmem:[#allocation4 + $0x210] sm:$0xff]
    %v573 = vld [vmem:[#allocation4 + $0x218] sm:$0xff]
    %v574 = vld [vmem:[#allocation4 + $0x220] sm:$0xff]
    %v575 = vld [vmem:[#allocation4 + $0x228] sm:$0xff]
    %v576 = vld [vmem:[#allocation4 + $0x230] sm:$0xff]
    %v577 = vld [vmem:[#allocation4 + $0x238] sm:$0xff]
    %v578 = vld [vmem:[#allocation4 + $0x240] sm:$0xff]
    %v579 = vld [vmem:[#allocation4 + $0x248] sm:$0xff]
    %v580 = vld [vmem:[#allocation4 + $0x250] sm:$0xff]
    %v581 = vld [vmem:[#allocation4 + $0x258] sm:$0xff]
    %v582 = vld [vmem:[#allocation4 + $0x260] sm:$0xff]
    %v583 = vld [vmem:[#allocation4 + $0x268] sm:$0xff]
    %v584 = vld [vmem:[#allocation4 + $0x270] sm:$0xff]
    %v585 = vld [vmem:[#allocation4 + $0x278] sm:$0xff]
    %v586 = vld [vmem:[#allocation4 + $0x280] sm:$0xff]
    %v587 = vld [vmem:[#allocation4 + $0x288] sm:$0xff]
    %v588 = vld [vmem:[#allocation4 + $0x290] sm:$0xff]
    %v589 = vld [vmem:[#allocation4 + $0x298] sm:$0xff]
    %v590 = vld [vmem:[#allocation4 + $0x2a0] sm:$0xff]
    %v591 = vld [vmem:[#allocation4 + $0x2a8] sm:$0xff]
    %v592 = vld [vmem:[#allocation4 + $0x2b0] sm:$0xff]
    %v593 = vld [vmem:[#allocation4 + $0x2b8] sm:$0xff]
    %v594 = vld [vmem:[#allocation4 + $0x2c0] sm:$0xff]
    %v595 = vld [vmem:[#allocation4 + $0x2c8] sm:$0xff]
    %v596 = vld [vmem:[#allocation4 + $0x2d0] sm:$0xff]
    %v597 = vld [vmem:[#allocation4 + $0x2d8] sm:$0xff]
    %v598 = vld [vmem:[#allocation4 + $0x2e0] sm:$0xff]
    %v599 = vld [vmem:[#allocation4 + $0x2e8] sm:$0xff]
    %v600 = vld [vmem:[#allocation4 + $0x2f0] sm:$0xff]
    %v601 = vld [vmem:[#allocation4 + $0x2f8] sm:$0xff]
    %v602 = vld [vmem:[#allocation4 + $0x300] sm:$0xff]
    %v603 = vld [vmem:[#allocation4 + $0x308] sm:$0xff]
    %v604 = vld [vmem:[#allocation4 + $0x310] sm:$0xff]
    %v605 = vld [vmem:[#allocation4 + $0x318] sm:$0xff]
    %v606 = vld [vmem:[#allocation4 + $0x320] sm:$0xff]
    %v607 = vld [vmem:[#allocation4 + $0x328] sm:$0xff]
    %v608 = vld [vmem:[#allocation4 + $0x330] sm:$0xff]
    %v609 = vld [vmem:[#allocation4 + $0x338] sm:$0xff]
    %v610 = vld [vmem:[#allocation4 + $0x340] sm:$0xff]
    %v611 = vld [vmem:[#allocation4 + $0x348] sm:$0xff]
    %v612 = vld [vmem:[#allocation4 + $0x350] sm:$0xff]
    %v613 = vld [vmem:[#allocation4 + $0x358] sm:$0xff]
    %v614 = vld [vmem:[#allocation4 + $0x360] sm:$0xff]
    %v615 = vld [vmem:[#allocation4 + $0x368] sm:$0xff]
    %v616 = vld [vmem:[#allocation4 + $0x370] sm:$0xff]
    %v617 = vld [vmem:[#allocation4 + $0x378] sm:$0xff]
    %v618 = vld [vmem:[#allocation4 + $0x380] sm:$0xff]
    %v619 = vld [vmem:[#allocation4 + $0x388] sm:$0xff]
    %v620 = vld [vmem:[#allocation4 + $0x390] sm:$0xff]
    %v621 = vld [vmem:[#allocation4 + $0x398] sm:$0xff]
    %v622 = vld [vmem:[#allocation4 + $0x3a0] sm:$0xff]
    %v623 = vld [vmem:[#allocation4 + $0x3a8] sm:$0xff]
    %v624 = vld [vmem:[#allocation4 + $0x3b0] sm:$0xff]
    %v625 = vld [vmem:[#allocation4 + $0x3b8] sm:$0xff]
    %v626 = vld [vmem:[#allocation4 + $0x3c0] sm:$0xff]
    %v627 = vld [vmem:[#allocation4 + $0x3c8] sm:$0xff]
    %v628 = vld [vmem:[#allocation4 + $0x3d0] sm:$0xff]
    %v629 = vld [vmem:[#allocation4 + $0x3d8] sm:$0xff]
    %v630 = vld [vmem:[#allocation4 + $0x3e0] sm:$0xff]
    %v631 = vld [vmem:[#allocation4 + $0x3e8] sm:$0xff]
    %v632 = vld [vmem:[#allocation4 + $0x3f0] sm:$0xff]
    %v633 = vld [vmem:[#allocation4 + $0x3f8] sm:$0xff]
    %634 = vmatprep.subr.mxu0 %v318
    %635 = vmatpush1.msra.mxu0 %v316
    %636 = vmatprep.subr.mxu0 %v324
    %637 = vmatpush1.msra.mxu0 %v322
    %638 = vmatprep.subr.mxu0 %v330
    %639 = vmatpush1.msra.mxu0 %v328
    %640 = vmatprep.subr.mxu0 %v336
    %641 = vmatpush1.msra.mxu0 %v334
    %642 = vmatprep.subr.mxu0 %v342
    %643 = vmatpush1.msra.mxu0 %v340
    %644 = vmatprep.subr.mxu0 %v348
    %645 = vmatpush1.msra.mxu0 %v346
    %646 = vmatprep.subr.mxu0 %v354
    %647 = vmatpush1.msra.mxu0 %v352
    %648 = vmatprep.subr.mxu0 %v360
    %649 = vmatpush1.msra.mxu0 %v358
    %650 = vmatprep.subr.mxu0 %v366
    %651 = vmatpush1.msra.mxu0 %v364
    %652 = vmatprep.subr.mxu0 %v372
    %653 = vmatpush1.msra.mxu0 %v370
    %654 = vmatprep.subr.mxu0 %v378
    %655 = vmatpush1.msra.mxu0 %v376
    %656 = vmatprep.subr.mxu0 %v384
    %657 = vmatpush1.msra.mxu0 %v382
    %658 = vmatprep.subr.mxu0 %v390
    %659 = vmatpush1.msra.mxu0 %v388
    %660 = vmatprep.subr.mxu0 %v396
    %661 = vmatpush1.msra.mxu0 %v394
    %662 = vmatprep.subr.mxu0 %v402
    %663 = vmatpush1.msra.mxu0 %v400
    %664 = vmatprep.subr.mxu0 %v408
    %665 = vmatpush1.msra.mxu0 %v406
    %666 = vmatprep.subr.mxu0 %v414
    %667 = vmatpush1.msra.mxu0 %v412
    %668 = vmatprep.subr.mxu0 %v420
    %669 = vmatpush1.msra.mxu0 %v418
    %670 = vmatprep.subr.mxu0 %v426
    %671 = vmatpush1.msra.mxu0 %v424
    %672 = vmatprep.subr.mxu0 %v432
    %673 = vmatpush1.msra.mxu0 %v430
    %674 = vmatprep.subr.mxu0 %v438
    %675 = vmatpush1.msra.mxu0 %v436
    %676 = vmatprep.subr.mxu0 %v444
    %677 = vmatpush1.msra.mxu0 %v442
    %678 = vmatprep.subr.mxu0 %v450
    %679 = vmatpush1.msra.mxu0 %v448
    %680 = vmatprep.subr.mxu0 %v456
    %681 = vmatpush1.msra.mxu0 %v454
    %682 = vmatprep.subr.mxu0 %v462
    %683 = vmatpush1.msra.mxu0 %v460
    %684 = vmatprep.subr.mxu0 %v468
    %685 = vmatpush1.msra.mxu0 %v466
    %686 = vmatprep.subr.mxu0 %v474
    %687 = vmatpush1.msra.mxu0 %v472
    %688 = vmatprep.subr.mxu0 %v480
    %689 = vmatpush1.msra.mxu0 %v478
    %690 = vmatprep.subr.mxu0 %v486
    %691 = vmatpush1.msra.mxu0 %v484
    %692 = vmatprep.subr.mxu0 %v492
    %693 = vmatpush1.msra.mxu0 %v490
    %694 = vmatprep.subr.mxu0 %v498
    %695 = vmatpush1.msra.mxu0 %v496
    %696 = vmatprep.subr.mxu0 %v504
    %697 = vmatpush1.msra.mxu0 %v502
    %698 = vmatprep.mubr.f32.mxu0 %v507
    %699 = vmatmul.mubr.f32.gmra.mrb[0].mxu0 %v506
    %v700 = vpop.f32.mrb[0].mxu0
    %v701 = vadd.f32 0.0, %v700
    %v702 = vpop.f32.mrb[0].mxu0
    %v703 = vadd.f32 0.0, %v702
    %704 = vmatprep.mubr.f32.mxu0 %v509
    %705 = vmatmul.mubr.f32.gmra.mrb[0].mxu0 %v508
    %v706 = vpop.f32.mrb[0].mxu0
    %v707 = vadd.f32 0.0, %v706
    %v708 = vpop.f32.mrb[0].mxu0
    %v709 = vadd.f32 0.0, %v708
    %710 = vmatprep.mubr.f32.mxu0 %v511
    %711 = vmatmul.mubr.f32.gmra.mrb[0].mxu0 %v510
    %v712 = vpop.f32.mrb[0].mxu0
    %v713 = vadd.f32 0.0, %v712
    %v714 = vpop.f32.mrb[0].mxu0
    %v715 = vadd.f32 0.0, %v714
    %716 = vmatprep.mubr.f32.mxu0 %v513
    %717 = vmatmul.mubr.f32.gmra.mrb[0].mxu0 %v512
    %v718 = vpop.f32.mrb[0].mxu0
    %v719 = vadd.f32 0.0, %v718
    %v720 = vpop.f32.mrb[0].mxu0
    %v721 = vadd.f32 0.0, %v720
    %722 = vmatprep.mubr.f32.mxu0 %v515
    %723 = vmatmul.mubr.f32.gmra.mrb[0].mxu0 %v514
    %v724 = vpop.f32.mrb[0].mxu0
    %v725 = vadd.f32 0.0, %v724
    %v726 = vpop.f32.mrb[0].mxu0
    %v727 = vadd.f32 0.0, %v726
    %728 = vmatprep.mubr.f32.mxu0 %v517
    %729 = vmatmul.mubr.f32.gmra.mrb[0].mxu0 %v516
    %v730 = vpop.f32.mrb[0].mxu0
    %v731 = vadd.f32 0.0, %v730
    %v732 = vpop.f32.mrb[0].mxu0
    %v733 = vadd.f32 0.0, %v732
    %734 = vmatprep.mubr.f32.mxu0 %v519
    %735 = vmatmul.mubr.f32.gmra.mrb[0].mxu0 %v518
    %v736 = vpop.f32.mrb[0].mxu0
    %v737 = vadd.f32 0.0, %v736
    %v738 = vpop.f32.mrb[0].mxu0
    %v739 = vadd.f32 0.0, %v738
    %740 = vmatprep.mubr.f32.mxu0 %v521
    %741 = vmatmul.mubr.f32.gmra.mrb[0].mxu0 %v520
    %v742 = vpop.f32.mrb[0].mxu0
    %v743 = vadd.f32 0.0, %v742
    %v744 = vpop.f32.mrb[0].mxu0
    %v745 = vadd.f32 0.0, %v744
    %746 = vmatprep.mubr.f32.mxu0 %v523
    %747 = vmatmul.mubr.f32.gmra.mrb[0].mxu0 %v522
    %v748 = vpop.f32.mrb[0].mxu0
    %v749 = vadd.f32 0.0, %v748
    %v750 = vpop.f32.mrb[0].mxu0
    %v751 = vadd.f32 0.0, %v750
    %752 = vmatprep.mubr.f32.mxu0 %v525
    %753 = vmatmul.mubr.f32.gmra.mrb[0].mxu0 %v524
    %v754 = vpop.f32.mrb[0].mxu0
    %v755 = vadd.f32 0.0, %v754
    %v756 = vpop.f32.mrb[0].mxu0
    %v757 = vadd.f32 0.0, %v756
    %758 = vmatprep.mubr.f32.mxu0 %v527
    %759 = vmatmul.mubr.f32.gmra.mrb[0].mxu0 %v526
    %v760 = vpop.f32.mrb[0].mxu0
    %v761 = vadd.f32 0.0, %v760
    %v762 = vpop.f32.mrb[0].mxu0
    %v763 = vadd.f32 0.0, %v762
    %764 = vmatprep.mubr.f32.mxu0 %v529
    %765 = vmatmul.mubr.f32.gmra.mrb[0].mxu0 %v528
    %v766 = vpop.f32.mrb[0].mxu0
    %v767 = vadd.f32 0.0, %v766
    %v768 = vpop.f32.mrb[0].mxu0
    %v769 = vadd.f32 0.0, %v768
    %770 = vmatprep.mubr.f32.mxu0 %v531
    %771 = vmatmul.mubr.f32.gmra.mrb[0].mxu0 %v530
    %v772 = vpop.f32.mrb[0].mxu0
    %v773 = vadd.f32 0.0, %v772
    %v774 = vpop.f32.mrb[0].mxu0
    %v775 = vadd.f32 0.0, %v774
    %776 = vmatprep.mubr.f32.mxu0 %v533
    %777 = vmatmul.mubr.f32.gmra.mrb[0].mxu0 %v532
    %v778 = vpop.f32.mrb[0].mxu0
    %v779 = vadd.f32 0.0, %v778
    %v780 = vpop.f32.mrb[0].mxu0
    %v781 = vadd.f32 0.0, %v780
    %782 = vmatprep.mubr.f32.mxu0 %v535
    %783 = vmatmul.mubr.f32.gmra.mrb[0].mxu0 %v534
    %v784 = vpop.f32.mrb[0].mxu0
    %v785 = vadd.f32 0.0, %v784
    %v786 = vpop.f32.mrb[0].mxu0
    %v787 = vadd.f32 0.0, %v786
    %788 = vmatprep.mubr.f32.mxu0 %v537
    %789 = vmatmul.mubr.f32.gmra.mrb[0].mxu0 %v536
    %v790 = vpop.f32.mrb[0].mxu0
    %v791 = vadd.f32 0.0, %v790
    %v792 = vpop.f32.mrb[0].mxu0
    %v793 = vadd.f32 0.0, %v792
    %794 = vmatprep.mubr.f32.mxu0 %v539
    %795 = vmatmul.mubr.f32.gmra.mrb[0].mxu0 %v538
    %v796 = vpop.f32.mrb[0].mxu0
    %v797 = vadd.f32 0.0, %v796
    %v798 = vpop.f32.mrb[0].mxu0
    %v799 = vadd.f32 0.0, %v798
    %800 = vmatprep.mubr.f32.mxu0 %v541
    %801 = vmatmul.mubr.f32.gmra.mrb[0].mxu0 %v540
    %v802 = vpop.f32.mrb[0].mxu0
    %v803 = vadd.f32 0.0, %v802
    %v804 = vpop.f32.mrb[0].mxu0
    %v805 = vadd.f32 0.0, %v804
    %806 = vmatprep.mubr.f32.mxu0 %v543
    %807 = vmatmul.mubr.f32.gmra.mrb[0].mxu0 %v542
    %v808 = vpop.f32.mrb[0].mxu0
    %v809 = vadd.f32 0.0, %v808
    %v810 = vpop.f32.mrb[0].mxu0
    %v811 = vadd.f32 0.0, %v810
    %812 = vmatprep.mubr.f32.mxu0 %v545
    %813 = vmatmul.mubr.f32.gmra.mrb[0].mxu0 %v544
    %v814 = vpop.f32.mrb[0].mxu0
    %v815 = vadd.f32 0.0, %v814
    %v816 = vpop.f32.mrb[0].mxu0
    %v817 = vadd.f32 0.0, %v816
    %818 = vmatprep.mubr.f32.mxu0 %v547
    %819 = vmatmul.mubr.f32.gmra.mrb[0].mxu0 %v546
    %v820 = vpop.f32.mrb[0].mxu0
    %v821 = vadd.f32 0.0, %v820
    %v822 = vpop.f32.mrb[0].mxu0
    %v823 = vadd.f32 0.0, %v822
    %824 = vmatprep.mubr.f32.mxu0 %v549
    %825 = vmatmul.mubr.f32.gmra.mrb[0].mxu0 %v548
    %v826 = vpop.f32.mrb[0].mxu0
    %v827 = vadd.f32 0.0, %v826
    %v828 = vpop.f32.mrb[0].mxu0
    %v829 = vadd.f32 0.0, %v828
    %830 = vmatprep.mubr.f32.mxu0 %v551
    %831 = vmatmul.mubr.f32.gmra.mrb[0].mxu0 %v550
    %v832 = vpop.f32.mrb[0].mxu0
    %v833 = vadd.f32 0.0, %v832
    %v834 = vpop.f32.mrb[0].mxu0
    %v835 = vadd.f32 0.0, %v834
    %836 = vmatprep.mubr.f32.mxu0 %v553
    %837 = vmatmul.mubr.f32.gmra.mrb[0].mxu0 %v552
    %v838 = vpop.f32.mrb[0].mxu0
    %v839 = vadd.f32 0.0, %v838
    %v840 = vpop.f32.mrb[0].mxu0
    %v841 = vadd.f32 0.0, %v840
    %842 = vmatprep.mubr.f32.mxu0 %v555
    %843 = vmatmul.mubr.f32.gmra.mrb[0].mxu0 %v554
    %v844 = vpop.f32.mrb[0].mxu0
    %v845 = vadd.f32 0.0, %v844
    %v846 = vpop.f32.mrb[0].mxu0
    %v847 = vadd.f32 0.0, %v846
    %848 = vmatprep.mubr.f32.mxu0 %v557
    %849 = vmatmul.mubr.f32.gmra.mrb[0].mxu0 %v556
    %v850 = vpop.f32.mrb[0].mxu0
    %v851 = vadd.f32 0.0, %v850
    %v852 = vpop.f32.mrb[0].mxu0
    %v853 = vadd.f32 0.0, %v852
    %854 = vmatprep.mubr.f32.mxu0 %v559
    %855 = vmatmul.mubr.f32.gmra.mrb[0].mxu0 %v558
    %v856 = vpop.f32.mrb[0].mxu0
    %v857 = vadd.f32 0.0, %v856
    %v858 = vpop.f32.mrb[0].mxu0
    %v859 = vadd.f32 0.0, %v858
    %860 = vmatprep.mubr.f32.mxu0 %v561
    %861 = vmatmul.mubr.f32.gmra.mrb[0].mxu0 %v560
    %v862 = vpop.f32.mrb[0].mxu0
    %v863 = vadd.f32 0.0, %v862
    %v864 = vpop.f32.mrb[0].mxu0
    %v865 = vadd.f32 0.0, %v864
    %866 = vmatprep.mubr.f32.mxu0 %v563
    %867 = vmatmul.mubr.f32.gmra.mrb[0].mxu0 %v562
    %v868 = vpop.f32.mrb[0].mxu0
    %v869 = vadd.f32 0.0, %v868
    %v870 = vpop.f32.mrb[0].mxu0
    %v871 = vadd.f32 0.0, %v870
    %872 = vmatprep.mubr.f32.mxu0 %v565
    %873 = vmatmul.mubr.f32.gmra.mrb[0].mxu0 %v564
    %v874 = vpop.f32.mrb[0].mxu0
    %v875 = vadd.f32 0.0, %v874
    %v876 = vpop.f32.mrb[0].mxu0
    %v877 = vadd.f32 0.0, %v876
    %878 = vmatprep.mubr.f32.mxu0 %v567
    %879 = vmatmul.mubr.f32.gmra.mrb[0].mxu0 %v566
    %v880 = vpop.f32.mrb[0].mxu0
    %v881 = vadd.f32 0.0, %v880
    %v882 = vpop.f32.mrb[0].mxu0
    %v883 = vadd.f32 0.0, %v882
    %884 = vmatprep.mubr.f32.mxu0 %v569
    %885 = vmatmul.mubr.f32.gmra.mrb[0].mxu0 %v568
    %v886 = vpop.f32.mrb[0].mxu0
    %v887 = vadd.f32 0.0, %v886
    %v888 = vpop.f32.mrb[0].mxu0
    %v889 = vadd.f32 0.0, %v888
    %890 = vmatprep.mubr.f32.mxu0 %v571
    %891 = vmatmul.mubr.f32.gmra.mrb[0].mxu0 %v570
    %v892 = vpop.f32.mrb[0].mxu0
    %v893 = vadd.f32 0.0, %v892
    %v894 = vpop.f32.mrb[0].mxu0
    %v895 = vadd.f32 0.0, %v894
    %896 = vmatprep.mubr.f32.mxu0 %v573
    %897 = vmatmul.mubr.f32.gmra.mrb[0].mxu0 %v572
    %v898 = vpop.f32.mrb[0].mxu0
    %v899 = vadd.f32 0.0, %v898
    %v900 = vpop.f32.mrb[0].mxu0
    %v901 = vadd.f32 0.0, %v900
    %902 = vmatprep.mubr.f32.mxu0 %v575
    %903 = vmatmul.mubr.f32.gmra.mrb[0].mxu0 %v574
    %v904 = vpop.f32.mrb[0].mxu0
    %v905 = vadd.f32 0.0, %v904
    %v906 = vpop.f32.mrb[0].mxu0
    %v907 = vadd.f32 0.0, %v906
    %908 = vmatprep.mubr.f32.mxu0 %v577
    %909 = vmatmul.mubr.f32.gmra.mrb[0].mxu0 %v576
    %v910 = vpop.f32.mrb[0].mxu0
    %v911 = vadd.f32 0.0, %v910
    %v912 = vpop.f32.mrb[0].mxu0
    %v913 = vadd.f32 0.0, %v912
    %914 = vmatprep.mubr.f32.mxu0 %v579
    %915 = vmatmul.mubr.f32.gmra.mrb[0].mxu0 %v578
    %v916 = vpop.f32.mrb[0].mxu0
    %v917 = vadd.f32 0.0, %v916
    %v918 = vpop.f32.mrb[0].mxu0
    %v919 = vadd.f32 0.0, %v918
    %920 = vmatprep.mubr.f32.mxu0 %v581
    %921 = vmatmul.mubr.f32.gmra.mrb[0].mxu0 %v580
    %v922 = vpop.f32.mrb[0].mxu0
    %v923 = vadd.f32 0.0, %v922
    %v924 = vpop.f32.mrb[0].mxu0
    %v925 = vadd.f32 0.0, %v924
    %926 = vmatprep.mubr.f32.mxu0 %v583
    %927 = vmatmul.mubr.f32.gmra.mrb[0].mxu0 %v582
    %v928 = vpop.f32.mrb[0].mxu0
    %v929 = vadd.f32 0.0, %v928
    %v930 = vpop.f32.mrb[0].mxu0
    %v931 = vadd.f32 0.0, %v930
    %932 = vmatprep.mubr.f32.mxu0 %v585
    %933 = vmatmul.mubr.f32.gmra.mrb[0].mxu0 %v584
    %v934 = vpop.f32.mrb[0].mxu0
    %v935 = vadd.f32 0.0, %v934
    %v936 = vpop.f32.mrb[0].mxu0
    %v937 = vadd.f32 0.0, %v936
    %938 = vmatprep.mubr.f32.mxu0 %v587
    %939 = vmatmul.mubr.f32.gmra.mrb[0].mxu0 %v586
    %v940 = vpop.f32.mrb[0].mxu0
    %v941 = vadd.f32 0.0, %v940
    %v942 = vpop.f32.mrb[0].mxu0
    %v943 = vadd.f32 0.0, %v942
    %944 = vmatprep.mubr.f32.mxu0 %v589
    %945 = vmatmul.mubr.f32.gmra.mrb[0].mxu0 %v588
    %v946 = vpop.f32.mrb[0].mxu0
    %v947 = vadd.f32 0.0, %v946
    %v948 = vpop.f32.mrb[0].mxu0
    %v949 = vadd.f32 0.0, %v948
    %950 = vmatprep.mubr.f32.mxu0 %v591
    %951 = vmatmul.mubr.f32.gmra.mrb[0].mxu0 %v590
    %v952 = vpop.f32.mrb[0].mxu0
    %v953 = vadd.f32 0.0, %v952
    %v954 = vpop.f32.mrb[0].mxu0
    %v955 = vadd.f32 0.0, %v954
    %956 = vmatprep.mubr.f32.mxu0 %v593
    %957 = vmatmul.mubr.f32.gmra.mrb[0].mxu0 %v592
    %v958 = vpop.f32.mrb[0].mxu0
    %v959 = vadd.f32 0.0, %v958
    %v960 = vpop.f32.mrb[0].mxu0
    %v961 = vadd.f32 0.0, %v960
    %962 = vmatprep.mubr.f32.mxu0 %v595
    %963 = vmatmul.mubr.f32.gmra.mrb[0].mxu0 %v594
    %v964 = vpop.f32.mrb[0].mxu0
    %v965 = vadd.f32 0.0, %v964
    %v966 = vpop.f32.mrb[0].mxu0
    %v967 = vadd.f32 0.0, %v966
    %968 = vmatprep.mubr.f32.mxu0 %v597
    %969 = vmatmul.mubr.f32.gmra.mrb[0].mxu0 %v596
    %v970 = vpop.f32.mrb[0].mxu0
    %v971 = vadd.f32 0.0, %v970
    %v972 = vpop.f32.mrb[0].mxu0
    %v973 = vadd.f32 0.0, %v972
    %974 = vmatprep.mubr.f32.mxu0 %v599
    %975 = vmatmul.mubr.f32.gmra.mrb[0].mxu0 %v598
    %v976 = vpop.f32.mrb[0].mxu0
    %v977 = vadd.f32 0.0, %v976
    %v978 = vpop.f32.mrb[0].mxu0
    %v979 = vadd.f32 0.0, %v978
    %980 = vmatprep.mubr.f32.mxu0 %v601
    %981 = vmatmul.mubr.f32.gmra.mrb[0].mxu0 %v600
    %v982 = vpop.f32.mrb[0].mxu0
    %v983 = vadd.f32 0.0, %v982
    %v984 = vpop.f32.mrb[0].mxu0
    %v985 = vadd.f32 0.0, %v984
    %986 = vmatprep.mubr.f32.mxu0 %v603
    %987 = vmatmul.mubr.f32.gmra.mrb[0].mxu0 %v602
    %v988 = vpop.f32.mrb[0].mxu0
    %v989 = vadd.f32 0.0, %v988
    %v990 = vpop.f32.mrb[0].mxu0
    %v991 = vadd.f32 0.0, %v990
    %992 = vmatprep.mubr.f32.mxu0 %v605
    %993 = vmatmul.mubr.f32.gmra.mrb[0].mxu0 %v604
    %v994 = vpop.f32.mrb[0].mxu0
    %v995 = vadd.f32 0.0, %v994
    %v996 = vpop.f32.mrb[0].mxu0
    %v997 = vadd.f32 0.0, %v996
    %998 = vmatprep.mubr.f32.mxu0 %v607
    %999 = vmatmul.mubr.f32.gmra.mrb[0].mxu0 %v606
    %v1000 = vpop.f32.mrb[0].mxu0
    %v1001 = vadd.f32 0.0, %v1000
    %v1002 = vpop.f32.mrb[0].mxu0
    %v1003 = vadd.f32 0.0, %v1002
    %1004 = vmatprep.mubr.f32.mxu0 %v609
    %1005 = vmatmul.mubr.f32.gmra.mrb[0].mxu0 %v608
    %v1006 = vpop.f32.mrb[0].mxu0
    %v1007 = vadd.f32 0.0, %v1006
    %v1008 = vpop.f32.mrb[0].mxu0
    %v1009 = vadd.f32 0.0, %v1008
    %1010 = vmatprep.mubr.f32.mxu0 %v611
    %1011 = vmatmul.mubr.f32.gmra.mrb[0].mxu0 %v610
    %v1012 = vpop.f32.mrb[0].mxu0
    %v1013 = vadd.f32 0.0, %v1012
    %v1014 = vpop.f32.mrb[0].mxu0
    %v1015 = vadd.f32 0.0, %v1014
    %1016 = vmatprep.mubr.f32.mxu0 %v613
    %1017 = vmatmul.mubr.f32.gmra.mrb[0].mxu0 %v612
    %v1018 = vpop.f32.mrb[0].mxu0
    %v1019 = vadd.f32 0.0, %v1018
    %v1020 = vpop.f32.mrb[0].mxu0
    %v1021 = vadd.f32 0.0, %v1020
    %1022 = vmatprep.mubr.f32.mxu0 %v615
    %1023 = vmatmul.mubr.f32.gmra.mrb[0].mxu0 %v614
    %v1024 = vpop.f32.mrb[0].mxu0
    %v1025 = vadd.f32 0.0, %v1024
    %v1026 = vpop.f32.mrb[0].mxu0
    %v1027 = vadd.f32 0.0, %v1026
    %1028 = vmatprep.mubr.f32.mxu0 %v617
    %1029 = vmatmul.mubr.f32.gmra.mrb[0].mxu0 %v616
    %v1030 = vpop.f32.mrb[0].mxu0
    %v1031 = vadd.f32 0.0, %v1030
    %v1032 = vpop.f32.mrb[0].mxu0
    %v1033 = vadd.f32 0.0, %v1032
    %1034 = vmatprep.mubr.f32.mxu0 %v619
    %1035 = vmatmul.mubr.f32.gmra.mrb[0].mxu0 %v618
    %v1036 = vpop.f32.mrb[0].mxu0
    %v1037 = vadd.f32 0.0, %v1036
    %v1038 = vpop.f32.mrb[0].mxu0
    %v1039 = vadd.f32 0.0, %v1038
    %1040 = vmatprep.mubr.f32.mxu0 %v621
    %1041 = vmatmul.mubr.f32.gmra.mrb[0].mxu0 %v620
    %v1042 = vpop.f32.mrb[0].mxu0
    %v1043 = vadd.f32 0.0, %v1042
    %v1044 = vpop.f32.mrb[0].mxu0
    %v1045 = vadd.f32 0.0, %v1044
    %1046 = vmatprep.mubr.f32.mxu0 %v623
    %1047 = vmatmul.mubr.f32.gmra.mrb[0].mxu0 %v622
    %v1048 = vpop.f32.mrb[0].mxu0
    %v1049 = vadd.f32 0.0, %v1048
    %v1050 = vpop.f32.mrb[0].mxu0
    %v1051 = vadd.f32 0.0, %v1050
    %1052 = vmatprep.mubr.f32.mxu0 %v625
    %1053 = vmatmul.mubr.f32.gmra.mrb[0].mxu0 %v624
    %v1054 = vpop.f32.mrb[0].mxu0
    %v1055 = vadd.f32 0.0, %v1054
    %v1056 = vpop.f32.mrb[0].mxu0
    %v1057 = vadd.f32 0.0, %v1056
    %1058 = vmatprep.mubr.f32.mxu0 %v627
    %1059 = vmatmul.mubr.f32.gmra.mrb[0].mxu0 %v626
    %v1060 = vpop.f32.mrb[0].mxu0
    %v1061 = vadd.f32 0.0, %v1060
    %v1062 = vpop.f32.mrb[0].mxu0
    %v1063 = vadd.f32 0.0, %v1062
    %1064 = vmatprep.mubr.f32.mxu0 %v629
    %1065 = vmatmul.mubr.f32.gmra.mrb[0].mxu0 %v628
    %v1066 = vpop.f32.mrb[0].mxu0
    %v1067 = vadd.f32 0.0, %v1066
    %v1068 = vpop.f32.mrb[0].mxu0
    %v1069 = vadd.f32 0.0, %v1068
    %1070 = vmatprep.mubr.f32.mxu0 %v631
    %1071 = vmatmul.mubr.f32.gmra.mrb[0].mxu0 %v630
    %v1072 = vpop.f32.mrb[0].mxu0
    %v1073 = vadd.f32 0.0, %v1072
    %v1074 = vpop.f32.mrb[0].mxu0
    %v1075 = vadd.f32 0.0, %v1074
    %1076 = vmatprep.mubr.f32.mxu0 %v633
    %1077 = vmatmul.mubr.f32.gmra.mrb[0].mxu0 %v632
    %v1078 = vpop.f32.mrb[0].mxu0
    %v1079 = vadd.f32 0.0, %v1078
    %v1080 = vpop.f32.mrb[0].mxu0
    %v1081 = vadd.f32 0.0, %v1080
    %1082 = vdwg.mxu0
    %v1083 = vadd.f32 %v701, %v895
    %v1084 = vadd.f32 %v707, %v901
    %v1085 = vadd.f32 %v713, %v907
    %v1086 = vadd.f32 %v719, %v913
    %v1087 = vadd.f32 %v725, %v919
    %v1088 = vadd.f32 %v731, %v925
    %v1089 = vadd.f32 %v737, %v931
    %v1090 = vadd.f32 %v743, %v937
    %v1091 = vadd.f32 %v749, %v943
    %v1092 = vadd.f32 %v755, %v949
    %v1093 = vadd.f32 %v761, %v955
    %v1094 = vadd.f32 %v767, %v961
    %v1095 = vadd.f32 %v773, %v967
    %v1096 = vadd.f32 %v779, %v973
    %v1097 = vadd.f32 %v785, %v979
    %v1098 = vadd.f32 %v791, %v985
    %v1099 = vadd.f32 %v797, %v991
    %v1100 = vadd.f32 %v803, %v997
    %v1101 = vadd.f32 %v809, %v1003
    %v1102 = vadd.f32 %v815, %v1009
    %v1103 = vadd.f32 %v821, %v1015
    %v1104 = vadd.f32 %v827, %v1021
    %v1105 = vadd.f32 %v833, %v1027
    %v1106 = vadd.f32 %v839, %v1033
    %v1107 = vadd.f32 %v845, %v1039
    %v1108 = vadd.f32 %v851, %v1045
    %v1109 = vadd.f32 %v857, %v1051
    %v1110 = vadd.f32 %v863, %v1057
    %v1111 = vadd.f32 %v869, %v1063
    %v1112 = vadd.f32 %v875, %v1069
    %v1113 = vadd.f32 %v881, %v1075
    %v1114 = vadd.f32 %v887, %v1081
    %v1115 = vadd.f32 %v1083, 0.0
    %v1116 = vadd.f32 %v1084, 0.0
    %v1117 = vadd.f32 %v1085, 0.0
    %v1118 = vadd.f32 %v1086, 0.0
    %v1119 = vadd.f32 %v1087, 0.0
    %v1120 = vadd.f32 %v1088, 0.0
    %v1121 = vadd.f32 %v1089, 0.0
    %v1122 = vadd.f32 %v1090, 0.0
    %v1123 = vadd.f32 %v1091, 0.0
    %v1124 = vadd.f32 %v1092, 0.0
    %v1125 = vadd.f32 %v1093, 0.0
    %v1126 = vadd.f32 %v1094, 0.0
    %v1127 = vadd.f32 %v1095, 0.0
    %v1128 = vadd.f32 %v1096, 0.0
    %v1129 = vadd.f32 %v1097, 0.0
    %v1130 = vadd.f32 %v1098, 0.0
    %v1131 = vadd.f32 %v1099, 0.0
    %v1132 = vadd.f32 %v1100, 0.0
    %v1133 = vadd.f32 %v1101, 0.0
    %v1134 = vadd.f32 %v1102, 0.0
    %v1135 = vadd.f32 %v1103, 0.0
    %v1136 = vadd.f32 %v1104, 0.0
    %v1137 = vadd.f32 %v1105, 0.0
    %v1138 = vadd.f32 %v1106, 0.0
    %v1139 = vadd.f32 %v1107, 0.0
    %v1140 = vadd.f32 %v1108, 0.0
    %v1141 = vadd.f32 %v1109, 0.0
    %v1142 = vadd.f32 %v1110, 0.0
    %v1143 = vadd.f32 %v1111, 0.0
    %v1144 = vadd.f32 %v1112, 0.0
    %v1145 = vadd.f32 %v1113, 0.0
    %v1146 = vadd.f32 %v1114, 0.0
    %v1147 = vsub.f32 %v703, %v893
    %v1148 = vsub.f32 %v709, %v899
    %v1149 = vsub.f32 %v715, %v905
    %v1150 = vsub.f32 %v721, %v911
    %v1151 = vsub.f32 %v727, %v917
    %v1152 = vsub.f32 %v733, %v923
    %v1153 = vsub.f32 %v739, %v929
    %v1154 = vsub.f32 %v745, %v935
    %v1155 = vsub.f32 %v751, %v941
    %v1156 = vsub.f32 %v757, %v947
    %v1157 = vsub.f32 %v763, %v953
    %v1158 = vsub.f32 %v769, %v959
    %v1159 = vsub.f32 %v775, %v965
    %v1160 = vsub.f32 %v781, %v971
    %v1161 = vsub.f32 %v787, %v977
    %v1162 = vsub.f32 %v793, %v983
    %v1163 = vsub.f32 %v799, %v989
    %v1164 = vsub.f32 %v805, %v995
    %v1165 = vsub.f32 %v811, %v1001
    %v1166 = vsub.f32 %v817, %v1007
    %v1167 = vsub.f32 %v823, %v1013
    %v1168 = vsub.f32 %v829, %v1019
    %v1169 = vsub.f32 %v835, %v1025
    %v1170 = vsub.f32 %v841, %v1031
    %v1171 = vsub.f32 %v847, %v1037
    %v1172 = vsub.f32 %v853, %v1043
    %v1173 = vsub.f32 %v859, %v1049
    %v1174 = vsub.f32 %v865, %v1055
    %v1175 = vsub.f32 %v871, %v1061
    %v1176 = vsub.f32 %v877, %v1067
    %v1177 = vsub.f32 %v883, %v1073
    %v1178 = vsub.f32 %v889, %v1079
    %v1179 = vadd.f32 %v1147, 0.0
    %v1180 = vadd.f32 %v1148, 0.0
    %v1181 = vadd.f32 %v1149, 0.0
    %v1182 = vadd.f32 %v1150, 0.0
    %v1183 = vadd.f32 %v1151, 0.0
    %v1184 = vadd.f32 %v1152, 0.0
    %v1185 = vadd.f32 %v1153, 0.0
    %v1186 = vadd.f32 %v1154, 0.0
    %v1187 = vadd.f32 %v1155, 0.0
    %v1188 = vadd.f32 %v1156, 0.0
    %v1189 = vadd.f32 %v1157, 0.0
    %v1190 = vadd.f32 %v1158, 0.0
    %v1191 = vadd.f32 %v1159, 0.0
    %v1192 = vadd.f32 %v1160, 0.0
    %v1193 = vadd.f32 %v1161, 0.0
    %v1194 = vadd.f32 %v1162, 0.0
    %v1195 = vadd.f32 %v1163, 0.0
    %v1196 = vadd.f32 %v1164, 0.0
    %v1197 = vadd.f32 %v1165, 0.0
    %v1198 = vadd.f32 %v1166, 0.0
    %v1199 = vadd.f32 %v1167, 0.0
    %v1200 = vadd.f32 %v1168, 0.0
    %v1201 = vadd.f32 %v1169, 0.0
    %v1202 = vadd.f32 %v1170, 0.0
    %v1203 = vadd.f32 %v1171, 0.0
    %v1204 = vadd.f32 %v1172, 0.0
    %v1205 = vadd.f32 %v1173, 0.0
    %v1206 = vadd.f32 %v1174, 0.0
    %v1207 = vadd.f32 %v1175, 0.0
    %v1208 = vadd.f32 %v1176, 0.0
    %v1209 = vadd.f32 %v1177, 0.0
    %v1210 = vadd.f32 %v1178, 0.0
    %v1211 = vmul.f32 %v1115, %v1115
    %v1212 = vmul.f32 %v1116, %v1116
    %v1213 = vmul.f32 %v1117, %v1117
    %v1214 = vmul.f32 %v1118, %v1118
    %v1215 = vmul.f32 %v1119, %v1119
    %v1216 = vmul.f32 %v1120, %v1120
    %v1217 = vmul.f32 %v1121, %v1121
    %v1218 = vmul.f32 %v1122, %v1122
    %v1219 = vmul.f32 %v1123, %v1123
    %v1220 = vmul.f32 %v1124, %v1124
    %v1221 = vmul.f32 %v1125, %v1125
    %v1222 = vmul.f32 %v1126, %v1126
    %v1223 = vmul.f32 %v1127, %v1127
    %v1224 = vmul.f32 %v1128, %v1128
    %v1225 = vmul.f32 %v1129, %v1129
    %v1226 = vmul.f32 %v1130, %v1130
    %v1227 = vmul.f32 %v1131, %v1131
    %v1228 = vmul.f32 %v1132, %v1132
    %v1229 = vmul.f32 %v1133, %v1133
    %v1230 = vmul.f32 %v1134, %v1134
    %v1231 = vmul.f32 %v1135, %v1135
    %v1232 = vmul.f32 %v1136, %v1136
    %v1233 = vmul.f32 %v1137, %v1137
    %v1234 = vmul.f32 %v1138, %v1138
    %v1235 = vmul.f32 %v1139, %v1139
    %v1236 = vmul.f32 %v1140, %v1140
    %v1237 = vmul.f32 %v1141, %v1141
    %v1238 = vmul.f32 %v1142, %v1142
    %v1239 = vmul.f32 %v1143, %v1143
    %v1240 = vmul.f32 %v1144, %v1144
    %v1241 = vmul.f32 %v1145, %v1145
    %v1242 = vmul.f32 %v1146, %v1146
    %v1243 = vmul.f32 %v1179, %v1179
    %v1244 = vmul.f32 %v1180, %v1180
    %v1245 = vmul.f32 %v1181, %v1181
    %v1246 = vmul.f32 %v1182, %v1182
    %v1247 = vmul.f32 %v1183, %v1183
    %v1248 = vmul.f32 %v1184, %v1184
    %v1249 = vmul.f32 %v1185, %v1185
    %v1250 = vmul.f32 %v1186, %v1186
    %v1251 = vmul.f32 %v1187, %v1187
    %v1252 = vmul.f32 %v1188, %v1188
    %v1253 = vmul.f32 %v1189, %v1189
    %v1254 = vmul.f32 %v1190, %v1190
    %v1255 = vmul.f32 %v1191, %v1191
    %v1256 = vmul.f32 %v1192, %v1192
    %v1257 = vmul.f32 %v1193, %v1193
    %v1258 = vmul.f32 %v1194, %v1194
    %v1259 = vmul.f32 %v1195, %v1195
    %v1260 = vmul.f32 %v1196, %v1196
    %v1261 = vmul.f32 %v1197, %v1197
    %v1262 = vmul.f32 %v1198, %v1198
    %v1263 = vmul.f32 %v1199, %v1199
    %v1264 = vmul.f32 %v1200, %v1200
    %v1265 = vmul.f32 %v1201, %v1201
    %v1266 = vmul.f32 %v1202, %v1202
    %v1267 = vmul.f32 %v1203, %v1203
    %v1268 = vmul.f32 %v1204, %v1204
    %v1269 = vmul.f32 %v1205, %v1205
    %v1270 = vmul.f32 %v1206, %v1206
    %v1271 = vmul.f32 %v1207, %v1207
    %v1272 = vmul.f32 %v1208, %v1208
    %v1273 = vmul.f32 %v1209, %v1209
    %v1274 = vmul.f32 %v1210, %v1210
    %v1275 = vadd.f32 %v1211, %v1243
    %v1276 = vadd.f32 %v1212, %v1244
    %v1277 = vadd.f32 %v1213, %v1245
    %v1278 = vadd.f32 %v1214, %v1246
    %v1279 = vadd.f32 %v1215, %v1247
    %v1280 = vadd.f32 %v1216, %v1248
    %v1281 = vadd.f32 %v1217, %v1249
    %v1282 = vadd.f32 %v1218, %v1250
    %v1283 = vadd.f32 %v1219, %v1251
    %v1284 = vadd.f32 %v1220, %v1252
    %v1285 = vadd.f32 %v1221, %v1253
    %v1286 = vadd.f32 %v1222, %v1254
    %v1287 = vadd.f32 %v1223, %v1255
    %v1288 = vadd.f32 %v1224, %v1256
    %v1289 = vadd.f32 %v1225, %v1257
    %v1290 = vadd.f32 %v1226, %v1258
    %v1291 = vadd.f32 %v1227, %v1259
    %v1292 = vadd.f32 %v1228, %v1260
    %v1293 = vadd.f32 %v1229, %v1261
    %v1294 = vadd.f32 %v1230, %v1262
    %v1295 = vadd.f32 %v1231, %v1263
    %v1296 = vadd.f32 %v1232, %v1264
    %v1297 = vadd.f32 %v1233, %v1265
    %v1298 = vadd.f32 %v1234, %v1266
    %v1299 = vadd.f32 %v1235, %v1267
    %v1300 = vadd.f32 %v1236, %v1268
    %v1301 = vadd.f32 %v1237, %v1269
    %v1302 = vadd.f32 %v1238, %v1270
    %v1303 = vadd.f32 %v1239, %v1271
    %v1304 = vadd.f32 %v1240, %v1272
    %v1305 = vadd.f32 %v1241, %v1273
    %v1306 = vadd.f32 %v1242, %v1274
    %v1307 = vrsqrt.pop %v1275
    %v1308 = vmul.f32 %v1275, %v1307
    %vm1309 = vcmp.eq.f32.partialorder %v1275, inf
    %v1310 = vsel %vm1309, %v1275, %v1308
    %vm1311 = vcmp.eq.f32.partialorder %v1275, 0.0
    %v1312 = vand.u32 %v1275, 2147483648
    %v1313 = vsel %vm1311, %v1312, %v1310
    %v1314 = vrsqrt.pop %v1276
    %v1315 = vmul.f32 %v1276, %v1314
    %vm1316 = vcmp.eq.f32.partialorder %v1276, inf
    %v1317 = vsel %vm1316, %v1276, %v1315
    %vm1318 = vcmp.eq.f32.partialorder %v1276, 0.0
    %v1319 = vand.u32 %v1276, 2147483648
    %v1320 = vsel %vm1318, %v1319, %v1317
    %v1321 = vrsqrt.pop %v1277
    %v1322 = vmul.f32 %v1277, %v1321
    %vm1323 = vcmp.eq.f32.partialorder %v1277, inf
    %v1324 = vsel %vm1323, %v1277, %v1322
    %vm1325 = vcmp.eq.f32.partialorder %v1277, 0.0
    %v1326 = vand.u32 %v1277, 2147483648
    %v1327 = vsel %vm1325, %v1326, %v1324
    %v1328 = vrsqrt.pop %v1278
    %v1329 = vmul.f32 %v1278, %v1328
    %vm1330 = vcmp.eq.f32.partialorder %v1278, inf
    %v1331 = vsel %vm1330, %v1278, %v1329
    %vm1332 = vcmp.eq.f32.partialorder %v1278, 0.0
    %v1333 = vand.u32 %v1278, 2147483648
    %v1334 = vsel %vm1332, %v1333, %v1331
    %v1335 = vrsqrt.pop %v1279
    %v1336 = vmul.f32 %v1279, %v1335
    %vm1337 = vcmp.eq.f32.partialorder %v1279, inf
    %v1338 = vsel %vm1337, %v1279, %v1336
    %vm1339 = vcmp.eq.f32.partialorder %v1279, 0.0
    %v1340 = vand.u32 %v1279, 2147483648
    %v1341 = vsel %vm1339, %v1340, %v1338
    %v1342 = vrsqrt.pop %v1280
    %v1343 = vmul.f32 %v1280, %v1342
    %vm1344 = vcmp.eq.f32.partialorder %v1280, inf
    %v1345 = vsel %vm1344, %v1280, %v1343
    %vm1346 = vcmp.eq.f32.partialorder %v1280, 0.0
    %v1347 = vand.u32 %v1280, 2147483648
    %v1348 = vsel %vm1346, %v1347, %v1345
    %v1349 = vrsqrt.pop %v1281
    %v1350 = vmul.f32 %v1281, %v1349
    %vm1351 = vcmp.eq.f32.partialorder %v1281, inf
    %v1352 = vsel %vm1351, %v1281, %v1350
    %vm1353 = vcmp.eq.f32.partialorder %v1281, 0.0
    %v1354 = vand.u32 %v1281, 2147483648
    %v1355 = vsel %vm1353, %v1354, %v1352
    %v1356 = vrsqrt.pop %v1282
    %v1357 = vmul.f32 %v1282, %v1356
    %vm1358 = vcmp.eq.f32.partialorder %v1282, inf
    %v1359 = vsel %vm1358, %v1282, %v1357
    %vm1360 = vcmp.eq.f32.partialorder %v1282, 0.0
    %v1361 = vand.u32 %v1282, 2147483648
    %v1362 = vsel %vm1360, %v1361, %v1359
    %v1363 = vrsqrt.pop %v1283
    %v1364 = vmul.f32 %v1283, %v1363
    %vm1365 = vcmp.eq.f32.partialorder %v1283, inf
    %v1366 = vsel %vm1365, %v1283, %v1364
    %vm1367 = vcmp.eq.f32.partialorder %v1283, 0.0
    %v1368 = vand.u32 %v1283, 2147483648
    %v1369 = vsel %vm1367, %v1368, %v1366
    %v1370 = vrsqrt.pop %v1284
    %v1371 = vmul.f32 %v1284, %v1370
    %vm1372 = vcmp.eq.f32.partialorder %v1284, inf
    %v1373 = vsel %vm1372, %v1284, %v1371
    %vm1374 = vcmp.eq.f32.partialorder %v1284, 0.0
    %v1375 = vand.u32 %v1284, 2147483648
    %v1376 = vsel %vm1374, %v1375, %v1373
    %v1377 = vrsqrt.pop %v1285
    %v1378 = vmul.f32 %v1285, %v1377
    %vm1379 = vcmp.eq.f32.partialorder %v1285, inf
    %v1380 = vsel %vm1379, %v1285, %v1378
    %vm1381 = vcmp.eq.f32.partialorder %v1285, 0.0
    %v1382 = vand.u32 %v1285, 2147483648
    %v1383 = vsel %vm1381, %v1382, %v1380
    %v1384 = vrsqrt.pop %v1286
    %v1385 = vmul.f32 %v1286, %v1384
    %vm1386 = vcmp.eq.f32.partialorder %v1286, inf
    %v1387 = vsel %vm1386, %v1286, %v1385
    %vm1388 = vcmp.eq.f32.partialorder %v1286, 0.0
    %v1389 = vand.u32 %v1286, 2147483648
    %v1390 = vsel %vm1388, %v1389, %v1387
    %v1391 = vrsqrt.pop %v1287
    %v1392 = vmul.f32 %v1287, %v1391
    %vm1393 = vcmp.eq.f32.partialorder %v1287, inf
    %v1394 = vsel %vm1393, %v1287, %v1392
    %vm1395 = vcmp.eq.f32.partialorder %v1287, 0.0
    %v1396 = vand.u32 %v1287, 2147483648
    %v1397 = vsel %vm1395, %v1396, %v1394
    %v1398 = vrsqrt.pop %v1288
    %v1399 = vmul.f32 %v1288, %v1398
    %vm1400 = vcmp.eq.f32.partialorder %v1288, inf
    %v1401 = vsel %vm1400, %v1288, %v1399
    %vm1402 = vcmp.eq.f32.partialorder %v1288, 0.0
    %v1403 = vand.u32 %v1288, 2147483648
    %v1404 = vsel %vm1402, %v1403, %v1401
    %v1405 = vrsqrt.pop %v1289
    %v1406 = vmul.f32 %v1289, %v1405
    %vm1407 = vcmp.eq.f32.partialorder %v1289, inf
    %v1408 = vsel %vm1407, %v1289, %v1406
    %vm1409 = vcmp.eq.f32.partialorder %v1289, 0.0
    %v1410 = vand.u32 %v1289, 2147483648
    %v1411 = vsel %vm1409, %v1410, %v1408
    %v1412 = vrsqrt.pop %v1290
    %v1413 = vmul.f32 %v1290, %v1412
    %vm1414 = vcmp.eq.f32.partialorder %v1290, inf
    %v1415 = vsel %vm1414, %v1290, %v1413
    %vm1416 = vcmp.eq.f32.partialorder %v1290, 0.0
    %v1417 = vand.u32 %v1290, 2147483648
    %v1418 = vsel %vm1416, %v1417, %v1415
    %v1419 = vrsqrt.pop %v1291
    %v1420 = vmul.f32 %v1291, %v1419
    %vm1421 = vcmp.eq.f32.partialorder %v1291, inf
    %v1422 = vsel %vm1421, %v1291, %v1420
    %vm1423 = vcmp.eq.f32.partialorder %v1291, 0.0
    %v1424 = vand.u32 %v1291, 2147483648
    %v1425 = vsel %vm1423, %v1424, %v1422
    %v1426 = vrsqrt.pop %v1292
    %v1427 = vmul.f32 %v1292, %v1426
    %vm1428 = vcmp.eq.f32.partialorder %v1292, inf
    %v1429 = vsel %vm1428, %v1292, %v1427
    %vm1430 = vcmp.eq.f32.partialorder %v1292, 0.0
    %v1431 = vand.u32 %v1292, 2147483648
    %v1432 = vsel %vm1430, %v1431, %v1429
    %v1433 = vrsqrt.pop %v1293
    %v1434 = vmul.f32 %v1293, %v1433
    %vm1435 = vcmp.eq.f32.partialorder %v1293, inf
    %v1436 = vsel %vm1435, %v1293, %v1434
    %vm1437 = vcmp.eq.f32.partialorder %v1293, 0.0
    %v1438 = vand.u32 %v1293, 2147483648
    %v1439 = vsel %vm1437, %v1438, %v1436
    %v1440 = vrsqrt.pop %v1294
    %v1441 = vmul.f32 %v1294, %v1440
    %vm1442 = vcmp.eq.f32.partialorder %v1294, inf
    %v1443 = vsel %vm1442, %v1294, %v1441
    %vm1444 = vcmp.eq.f32.partialorder %v1294, 0.0
    %v1445 = vand.u32 %v1294, 2147483648
    %v1446 = vsel %vm1444, %v1445, %v1443
    %v1447 = vrsqrt.pop %v1295
    %v1448 = vmul.f32 %v1295, %v1447
    %vm1449 = vcmp.eq.f32.partialorder %v1295, inf
    %v1450 = vsel %vm1449, %v1295, %v1448
    %vm1451 = vcmp.eq.f32.partialorder %v1295, 0.0
    %v1452 = vand.u32 %v1295, 2147483648
    %v1453 = vsel %vm1451, %v1452, %v1450
    %v1454 = vrsqrt.pop %v1296
    %v1455 = vmul.f32 %v1296, %v1454
    %vm1456 = vcmp.eq.f32.partialorder %v1296, inf
    %v1457 = vsel %vm1456, %v1296, %v1455
    %vm1458 = vcmp.eq.f32.partialorder %v1296, 0.0
    %v1459 = vand.u32 %v1296, 2147483648
    %v1460 = vsel %vm1458, %v1459, %v1457
    %v1461 = vrsqrt.pop %v1297
    %v1462 = vmul.f32 %v1297, %v1461
    %vm1463 = vcmp.eq.f32.partialorder %v1297, inf
    %v1464 = vsel %vm1463, %v1297, %v1462
    %vm1465 = vcmp.eq.f32.partialorder %v1297, 0.0
    %v1466 = vand.u32 %v1297, 2147483648
    %v1467 = vsel %vm1465, %v1466, %v1464
    %v1468 = vrsqrt.pop %v1298
    %v1469 = vmul.f32 %v1298, %v1468
    %vm1470 = vcmp.eq.f32.partialorder %v1298, inf
    %v1471 = vsel %vm1470, %v1298, %v1469
    %vm1472 = vcmp.eq.f32.partialorder %v1298, 0.0
    %v1473 = vand.u32 %v1298, 2147483648
    %v1474 = vsel %vm1472, %v1473, %v1471
    %v1475 = vrsqrt.pop %v1299
    %v1476 = vmul.f32 %v1299, %v1475
    %vm1477 = vcmp.eq.f32.partialorder %v1299, inf
    %v1478 = vsel %vm1477, %v1299, %v1476
    %vm1479 = vcmp.eq.f32.partialorder %v1299, 0.0
    %v1480 = vand.u32 %v1299, 2147483648
    %v1481 = vsel %vm1479, %v1480, %v1478
    %v1482 = vrsqrt.pop %v1300
    %v1483 = vmul.f32 %v1300, %v1482
    %vm1484 = vcmp.eq.f32.partialorder %v1300, inf
    %v1485 = vsel %vm1484, %v1300, %v1483
    %vm1486 = vcmp.eq.f32.partialorder %v1300, 0.0
    %v1487 = vand.u32 %v1300, 2147483648
    %v1488 = vsel %vm1486, %v1487, %v1485
    %v1489 = vrsqrt.pop %v1301
    %v1490 = vmul.f32 %v1301, %v1489
    %vm1491 = vcmp.eq.f32.partialorder %v1301, inf
    %v1492 = vsel %vm1491, %v1301, %v1490
    %vm1493 = vcmp.eq.f32.partialorder %v1301, 0.0
    %v1494 = vand.u32 %v1301, 2147483648
    %v1495 = vsel %vm1493, %v1494, %v1492
    %v1496 = vrsqrt.pop %v1302
    %v1497 = vmul.f32 %v1302, %v1496
    %vm1498 = vcmp.eq.f32.partialorder %v1302, inf
    %v1499 = vsel %vm1498, %v1302, %v1497
    %vm1500 = vcmp.eq.f32.partialorder %v1302, 0.0
    %v1501 = vand.u32 %v1302, 2147483648
    %v1502 = vsel %vm1500, %v1501, %v1499
    %v1503 = vrsqrt.pop %v1303
    %v1504 = vmul.f32 %v1303, %v1503
    %vm1505 = vcmp.eq.f32.partialorder %v1303, inf
    %v1506 = vsel %vm1505, %v1303, %v1504
    %vm1507 = vcmp.eq.f32.partialorder %v1303, 0.0
    %v1508 = vand.u32 %v1303, 2147483648
    %v1509 = vsel %vm1507, %v1508, %v1506
    %v1510 = vrsqrt.pop %v1304
    %v1511 = vmul.f32 %v1304, %v1510
    %vm1512 = vcmp.eq.f32.partialorder %v1304, inf
    %v1513 = vsel %vm1512, %v1304, %v1511
    %vm1514 = vcmp.eq.f32.partialorder %v1304, 0.0
    %v1515 = vand.u32 %v1304, 2147483648
    %v1516 = vsel %vm1514, %v1515, %v1513
    %v1517 = vrsqrt.pop %v1305
    %v1518 = vmul.f32 %v1305, %v1517
    %vm1519 = vcmp.eq.f32.partialorder %v1305, inf
    %v1520 = vsel %vm1519, %v1305, %v1518
    %vm1521 = vcmp.eq.f32.partialorder %v1305, 0.0
    %v1522 = vand.u32 %v1305, 2147483648
    %v1523 = vsel %vm1521, %v1522, %v1520
    %v1524 = vrsqrt.pop %v1306
    %v1525 = vmul.f32 %v1306, %v1524
    %vm1526 = vcmp.eq.f32.partialorder %v1306, inf
    %v1527 = vsel %vm1526, %v1306, %v1525
    %vm1528 = vcmp.eq.f32.partialorder %v1306, 0.0
    %v1529 = vand.u32 %v1306, 2147483648
    %v1530 = vsel %vm1528, %v1529, %v1527
    %v1531 = vand.u32 2147483647, %v1115
    %v1532 = vand.u32 2147483647, %v1116
    %v1533 = vand.u32 2147483647, %v1117
    %v1534 = vand.u32 2147483647, %v1118
    %v1535 = vand.u32 2147483647, %v1119
    %v1536 = vand.u32 2147483647, %v1120
    %v1537 = vand.u32 2147483647, %v1121
    %v1538 = vand.u32 2147483647, %v1122
    %v1539 = vand.u32 2147483647, %v1123
    %v1540 = vand.u32 2147483647, %v1124
    %v1541 = vand.u32 2147483647, %v1125
    %v1542 = vand.u32 2147483647, %v1126
    %v1543 = vand.u32 2147483647, %v1127
    %v1544 = vand.u32 2147483647, %v1128
    %v1545 = vand.u32 2147483647, %v1129
    %v1546 = vand.u32 2147483647, %v1130
    %v1547 = vand.u32 2147483647, %v1131
    %v1548 = vand.u32 2147483647, %v1132
    %v1549 = vand.u32 2147483647, %v1133
    %v1550 = vand.u32 2147483647, %v1134
    %v1551 = vand.u32 2147483647, %v1135
    %v1552 = vand.u32 2147483647, %v1136
    %v1553 = vand.u32 2147483647, %v1137
    %v1554 = vand.u32 2147483647, %v1138
    %v1555 = vand.u32 2147483647, %v1139
    %v1556 = vand.u32 2147483647, %v1140
    %v1557 = vand.u32 2147483647, %v1141
    %v1558 = vand.u32 2147483647, %v1142
    %v1559 = vand.u32 2147483647, %v1143
    %v1560 = vand.u32 2147483647, %v1144
    %v1561 = vand.u32 2147483647, %v1145
    %v1562 = vand.u32 2147483647, %v1146
    %v1563 = vand.u32 2147483647, %v1179
    %v1564 = vand.u32 2147483647, %v1180
    %v1565 = vand.u32 2147483647, %v1181
    %v1566 = vand.u32 2147483647, %v1182
    %v1567 = vand.u32 2147483647, %v1183
    %v1568 = vand.u32 2147483647, %v1184
    %v1569 = vand.u32 2147483647, %v1185
    %v1570 = vand.u32 2147483647, %v1186
    %v1571 = vand.u32 2147483647, %v1187
    %v1572 = vand.u32 2147483647, %v1188
    %v1573 = vand.u32 2147483647, %v1189
    %v1574 = vand.u32 2147483647, %v1190
    %v1575 = vand.u32 2147483647, %v1191
    %v1576 = vand.u32 2147483647, %v1192
    %v1577 = vand.u32 2147483647, %v1193
    %v1578 = vand.u32 2147483647, %v1194
    %v1579 = vand.u32 2147483647, %v1195
    %v1580 = vand.u32 2147483647, %v1196
    %v1581 = vand.u32 2147483647, %v1197
    %v1582 = vand.u32 2147483647, %v1198
    %v1583 = vand.u32 2147483647, %v1199
    %v1584 = vand.u32 2147483647, %v1200
    %v1585 = vand.u32 2147483647, %v1201
    %v1586 = vand.u32 2147483647, %v1202
    %v1587 = vand.u32 2147483647, %v1203
    %v1588 = vand.u32 2147483647, %v1204
    %v1589 = vand.u32 2147483647, %v1205
    %v1590 = vand.u32 2147483647, %v1206
    %v1591 = vand.u32 2147483647, %v1207
    %v1592 = vand.u32 2147483647, %v1208
    %v1593 = vand.u32 2147483647, %v1209
    %v1594 = vand.u32 2147483647, %v1210
    %v1595 = vmax.f32 %v1531, %v1563
    %v1596 = vmax.f32 %v1532, %v1564
    %v1597 = vmax.f32 %v1533, %v1565
    %v1598 = vmax.f32 %v1534, %v1566
    %v1599 = vmax.f32 %v1535, %v1567
    %v1600 = vmax.f32 %v1536, %v1568
    %v1601 = vmax.f32 %v1537, %v1569
    %v1602 = vmax.f32 %v1538, %v1570
    %v1603 = vmax.f32 %v1539, %v1571
    %v1604 = vmax.f32 %v1540, %v1572
    %v1605 = vmax.f32 %v1541, %v1573
    %v1606 = vmax.f32 %v1542, %v1574
    %v1607 = vmax.f32 %v1543, %v1575
    %v1608 = vmax.f32 %v1544, %v1576
    %v1609 = vmax.f32 %v1545, %v1577
    %v1610 = vmax.f32 %v1546, %v1578
    %v1611 = vmax.f32 %v1547, %v1579
    %v1612 = vmax.f32 %v1548, %v1580
    %v1613 = vmax.f32 %v1549, %v1581
    %v1614 = vmax.f32 %v1550, %v1582
    %v1615 = vmax.f32 %v1551, %v1583
    %v1616 = vmax.f32 %v1552, %v1584
    %v1617 = vmax.f32 %v1553, %v1585
    %v1618 = vmax.f32 %v1554, %v1586
    %v1619 = vmax.f32 %v1555, %v1587
    %v1620 = vmax.f32 %v1556, %v1588
    %v1621 = vmax.f32 %v1557, %v1589
    %v1622 = vmax.f32 %v1558, %v1590
    %v1623 = vmax.f32 %v1559, %v1591
    %v1624 = vmax.f32 %v1560, %v1592
    %v1625 = vmax.f32 %v1561, %v1593
    %v1626 = vmax.f32 %v1562, %v1594
    %v1627 = vmin.f32 %v1531, %v1563
    %v1628 = vmin.f32 %v1532, %v1564
    %v1629 = vmin.f32 %v1533, %v1565
    %v1630 = vmin.f32 %v1534, %v1566
    %v1631 = vmin.f32 %v1535, %v1567
    %v1632 = vmin.f32 %v1536, %v1568
    %v1633 = vmin.f32 %v1537, %v1569
    %v1634 = vmin.f32 %v1538, %v1570
    %v1635 = vmin.f32 %v1539, %v1571
    %v1636 = vmin.f32 %v1540, %v1572
    %v1637 = vmin.f32 %v1541, %v1573
    %v1638 = vmin.f32 %v1542, %v1574
    %v1639 = vmin.f32 %v1543, %v1575
    %v1640 = vmin.f32 %v1544, %v1576
    %v1641 = vmin.f32 %v1545, %v1577
    %v1642 = vmin.f32 %v1546, %v1578
    %v1643 = vmin.f32 %v1547, %v1579
    %v1644 = vmin.f32 %v1548, %v1580
    %v1645 = vmin.f32 %v1549, %v1581
    %v1646 = vmin.f32 %v1550, %v1582
    %v1647 = vmin.f32 %v1551, %v1583
    %v1648 = vmin.f32 %v1552, %v1584
    %v1649 = vmin.f32 %v1553, %v1585
    %v1650 = vmin.f32 %v1554, %v1586
    %v1651 = vmin.f32 %v1555, %v1587
    %v1652 = vmin.f32 %v1556, %v1588
    %v1653 = vmin.f32 %v1557, %v1589
    %v1654 = vmin.f32 %v1558, %v1590
    %v1655 = vmin.f32 %v1559, %v1591
    %v1656 = vmin.f32 %v1560, %v1592
    %v1657 = vmin.f32 %v1561, %v1593
    %v1658 = vmin.f32 %v1562, %v1594
    %v1659 = vmax.f32 %v1595, 1e-30
    %v1660 = vmax.f32 %v1596, 1e-30
    %v1661 = vmax.f32 %v1597, 1e-30
    %v1662 = vmax.f32 %v1598, 1e-30
    %v1663 = vmax.f32 %v1599, 1e-30
    %v1664 = vmax.f32 %v1600, 1e-30
    %v1665 = vmax.f32 %v1601, 1e-30
    %v1666 = vmax.f32 %v1602, 1e-30
    %v1667 = vmax.f32 %v1603, 1e-30
    %v1668 = vmax.f32 %v1604, 1e-30
    %v1669 = vmax.f32 %v1605, 1e-30
    %v1670 = vmax.f32 %v1606, 1e-30
    %v1671 = vmax.f32 %v1607, 1e-30
    %v1672 = vmax.f32 %v1608, 1e-30
    %v1673 = vmax.f32 %v1609, 1e-30
    %v1674 = vmax.f32 %v1610, 1e-30
    %v1675 = vmax.f32 %v1611, 1e-30
    %v1676 = vmax.f32 %v1612, 1e-30
    %v1677 = vmax.f32 %v1613, 1e-30
    %v1678 = vmax.f32 %v1614, 1e-30
    %v1679 = vmax.f32 %v1615, 1e-30
    %v1680 = vmax.f32 %v1616, 1e-30
    %v1681 = vmax.f32 %v1617, 1e-30
    %v1682 = vmax.f32 %v1618, 1e-30
    %v1683 = vmax.f32 %v1619, 1e-30
    %v1684 = vmax.f32 %v1620, 1e-30
    %v1685 = vmax.f32 %v1621, 1e-30
    %v1686 = vmax.f32 %v1622, 1e-30
    %v1687 = vmax.f32 %v1623, 1e-30
    %v1688 = vmax.f32 %v1624, 1e-30
    %v1689 = vmax.f32 %v1625, 1e-30
    %v1690 = vmax.f32 %v1626, 1e-30
    %v1691 = vrcp.pop %v1659
    %v1692 = vmul.f32 %v1627, %v1691
    %v1693 = vrcp.pop %v1660
    %v1694 = vmul.f32 %v1628, %v1693
    %v1695 = vrcp.pop %v1661
    %v1696 = vmul.f32 %v1629, %v1695
    %v1697 = vrcp.pop %v1662
    %v1698 = vmul.f32 %v1630, %v1697
    %v1699 = vrcp.pop %v1663
    %v1700 = vmul.f32 %v1631, %v1699
    %v1701 = vrcp.pop %v1664
    %v1702 = vmul.f32 %v1632, %v1701
    %v1703 = vrcp.pop %v1665
    %v1704 = vmul.f32 %v1633, %v1703
    %v1705 = vrcp.pop %v1666
    %v1706 = vmul.f32 %v1634, %v1705
    %v1707 = vrcp.pop %v1667
    %v1708 = vmul.f32 %v1635, %v1707
    %v1709 = vrcp.pop %v1668
    %v1710 = vmul.f32 %v1636, %v1709
    %v1711 = vrcp.pop %v1669
    %v1712 = vmul.f32 %v1637, %v1711
    %v1713 = vrcp.pop %v1670
    %v1714 = vmul.f32 %v1638, %v1713
    %v1715 = vrcp.pop %v1671
    %v1716 = vmul.f32 %v1639, %v1715
    %v1717 = vrcp.pop %v1672
    %v1718 = vmul.f32 %v1640, %v1717
    %v1719 = vrcp.pop %v1673
    %v1720 = vmul.f32 %v1641, %v1719
    %v1721 = vrcp.pop %v1674
    %v1722 = vmul.f32 %v1642, %v1721
    %v1723 = vrcp.pop %v1675
    %v1724 = vmul.f32 %v1643, %v1723
    %v1725 = vrcp.pop %v1676
    %v1726 = vmul.f32 %v1644, %v1725
    %v1727 = vrcp.pop %v1677
    %v1728 = vmul.f32 %v1645, %v1727
    %v1729 = vrcp.pop %v1678
    %v1730 = vmul.f32 %v1646, %v1729
    %v1731 = vrcp.pop %v1679
    %v1732 = vmul.f32 %v1647, %v1731
    %v1733 = vrcp.pop %v1680
    %v1734 = vmul.f32 %v1648, %v1733
    %v1735 = vrcp.pop %v1681
    %v1736 = vmul.f32 %v1649, %v1735
    %v1737 = vrcp.pop %v1682
    %v1738 = vmul.f32 %v1650, %v1737
    %v1739 = vrcp.pop %v1683
    %v1740 = vmul.f32 %v1651, %v1739
    %v1741 = vrcp.pop %v1684
    %v1742 = vmul.f32 %v1652, %v1741
    %v1743 = vrcp.pop %v1685
    %v1744 = vmul.f32 %v1653, %v1743
    %v1745 = vrcp.pop %v1686
    %v1746 = vmul.f32 %v1654, %v1745
    %v1747 = vrcp.pop %v1687
    %v1748 = vmul.f32 %v1655, %v1747
    %v1749 = vrcp.pop %v1688
    %v1750 = vmul.f32 %v1656, %v1749
    %v1751 = vrcp.pop %v1689
    %v1752 = vmul.f32 %v1657, %v1751
    %v1753 = vrcp.pop %v1690
    %v1754 = vmul.f32 %v1658, %v1753
    %vm1755 = vcmp.gt.f32.partialorder %v1692, 0.41421357
    %vm1756 = vcmp.gt.f32.partialorder %v1694, 0.41421357
    %vm1757 = vcmp.gt.f32.partialorder %v1696, 0.41421357
    %vm1758 = vcmp.gt.f32.partialorder %v1698, 0.41421357
    %vm1759 = vcmp.gt.f32.partialorder %v1700, 0.41421357
    %vm1760 = vcmp.gt.f32.partialorder %v1702, 0.41421357
    %vm1761 = vcmp.gt.f32.partialorder %v1704, 0.41421357
    %vm1762 = vcmp.gt.f32.partialorder %v1706, 0.41421357
    %vm1763 = vcmp.gt.f32.partialorder %v1708, 0.41421357
    %vm1764 = vcmp.gt.f32.partialorder %v1710, 0.41421357
    %vm1765 = vcmp.gt.f32.partialorder %v1712, 0.41421357
    %vm1766 = vcmp.gt.f32.partialorder %v1714, 0.41421357
    %vm1767 = vcmp.gt.f32.partialorder %v1716, 0.41421357
    %vm1768 = vcmp.gt.f32.partialorder %v1718, 0.41421357
    %vm1769 = vcmp.gt.f32.partialorder %v1720, 0.41421357
    %vm1770 = vcmp.gt.f32.partialorder %v1722, 0.41421357
    %vm1771 = vcmp.gt.f32.partialorder %v1724, 0.41421357
    %vm1772 = vcmp.gt.f32.partialorder %v1726, 0.41421357
    %vm1773 = vcmp.gt.f32.partialorder %v1728, 0.41421357
    %vm1774 = vcmp.gt.f32.partialorder %v1730, 0.41421357
    %vm1775 = vcmp.gt.f32.partialorder %v1732, 0.41421357
    %vm1776 = vcmp.gt.f32.partialorder %v1734, 0.41421357
    %vm1777 = vcmp.gt.f32.partialorder %v1736, 0.41421357
    %vm1778 = vcmp.gt.f32.partialorder %v1738, 0.41421357
    %vm1779 = vcmp.gt.f32.partialorder %v1740, 0.41421357
    %vm1780 = vcmp.gt.f32.partialorder %v1742, 0.41421357
    %vm1781 = vcmp.gt.f32.partialorder %v1744, 0.41421357
    %vm1782 = vcmp.gt.f32.partialorder %v1746, 0.41421357
    %vm1783 = vcmp.gt.f32.partialorder %v1748, 0.41421357
    %vm1784 = vcmp.gt.f32.partialorder %v1750, 0.41421357
    %vm1785 = vcmp.gt.f32.partialorder %v1752, 0.41421357
    %vm1786 = vcmp.gt.f32.partialorder %v1754, 0.41421357
    %v1787 = vsub.f32 %v1692, 1.0
    %v1788 = vsub.f32 %v1694, 1.0
    %v1789 = vsub.f32 %v1696, 1.0
    %v1790 = vsub.f32 %v1698, 1.0
    %v1791 = vsub.f32 %v1700, 1.0
    %v1792 = vsub.f32 %v1702, 1.0
    %v1793 = vsub.f32 %v1704, 1.0
    %v1794 = vsub.f32 %v1706, 1.0
    %v1795 = vsub.f32 %v1708, 1.0
    %v1796 = vsub.f32 %v1710, 1.0
    %v1797 = vsub.f32 %v1712, 1.0
    %v1798 = vsub.f32 %v1714, 1.0
    %v1799 = vsub.f32 %v1716, 1.0
    %v1800 = vsub.f32 %v1718, 1.0
    %v1801 = vsub.f32 %v1720, 1.0
    %v1802 = vsub.f32 %v1722, 1.0
    %v1803 = vsub.f32 %v1724, 1.0
    %v1804 = vsub.f32 %v1726, 1.0
    %v1805 = vsub.f32 %v1728, 1.0
    %v1806 = vsub.f32 %v1730, 1.0
    %v1807 = vsub.f32 %v1732, 1.0
    %v1808 = vsub.f32 %v1734, 1.0
    %v1809 = vsub.f32 %v1736, 1.0
    %v1810 = vsub.f32 %v1738, 1.0
    %v1811 = vsub.f32 %v1740, 1.0
    %v1812 = vsub.f32 %v1742, 1.0
    %v1813 = vsub.f32 %v1744, 1.0
    %v1814 = vsub.f32 %v1746, 1.0
    %v1815 = vsub.f32 %v1748, 1.0
    %v1816 = vsub.f32 %v1750, 1.0
    %v1817 = vsub.f32 %v1752, 1.0
    %v1818 = vsub.f32 %v1754, 1.0
    %v1819 = vadd.f32 %v1692, 1.0
    %v1820 = vadd.f32 %v1694, 1.0
    %v1821 = vadd.f32 %v1696, 1.0
    %v1822 = vadd.f32 %v1698, 1.0
    %v1823 = vadd.f32 %v1700, 1.0
    %v1824 = vadd.f32 %v1702, 1.0
    %v1825 = vadd.f32 %v1704, 1.0
    %v1826 = vadd.f32 %v1706, 1.0
    %v1827 = vadd.f32 %v1708, 1.0
    %v1828 = vadd.f32 %v1710, 1.0
    %v1829 = vadd.f32 %v1712, 1.0
    %v1830 = vadd.f32 %v1714, 1.0
    %v1831 = vadd.f32 %v1716, 1.0
    %v1832 = vadd.f32 %v1718, 1.0
    %v1833 = vadd.f32 %v1720, 1.0
    %v1834 = vadd.f32 %v1722, 1.0
    %v1835 = vadd.f32 %v1724, 1.0
    %v1836 = vadd.f32 %v1726, 1.0
    %v1837 = vadd.f32 %v1728, 1.0
    %v1838 = vadd.f32 %v1730, 1.0
    %v1839 = vadd.f32 %v1732, 1.0
    %v1840 = vadd.f32 %v1734, 1.0
    %v1841 = vadd.f32 %v1736, 1.0
    %v1842 = vadd.f32 %v1738, 1.0
    %v1843 = vadd.f32 %v1740, 1.0
    %v1844 = vadd.f32 %v1742, 1.0
    %v1845 = vadd.f32 %v1744, 1.0
    %v1846 = vadd.f32 %v1746, 1.0
    %v1847 = vadd.f32 %v1748, 1.0
    %v1848 = vadd.f32 %v1750, 1.0
    %v1849 = vadd.f32 %v1752, 1.0
    %v1850 = vadd.f32 %v1754, 1.0
    %v1851 = vrcp.pop %v1819
    %v1852 = vmul.f32 %v1787, %v1851
    %v1853 = vrcp.pop %v1820
    %v1854 = vmul.f32 %v1788, %v1853
    %v1855 = vrcp.pop %v1821
    %v1856 = vmul.f32 %v1789, %v1855
    %v1857 = vrcp.pop %v1822
    %v1858 = vmul.f32 %v1790, %v1857
    %v1859 = vrcp.pop %v1823
    %v1860 = vmul.f32 %v1791, %v1859
    %v1861 = vrcp.pop %v1824
    %v1862 = vmul.f32 %v1792, %v1861
    %v1863 = vrcp.pop %v1825
    %v1864 = vmul.f32 %v1793, %v1863
    %v1865 = vrcp.pop %v1826
    %v1866 = vmul.f32 %v1794, %v1865
    %v1867 = vrcp.pop %v1827
    %v1868 = vmul.f32 %v1795, %v1867
    %v1869 = vrcp.pop %v1828
    %v1870 = vmul.f32 %v1796, %v1869
    %v1871 = vrcp.pop %v1829
    %v1872 = vmul.f32 %v1797, %v1871
    %v1873 = vrcp.pop %v1830
    %v1874 = vmul.f32 %v1798, %v1873
    %v1875 = vrcp.pop %v1831
    %v1876 = vmul.f32 %v1799, %v1875
    %v1877 = vrcp.pop %v1832
    %v1878 = vmul.f32 %v1800, %v1877
    %v1879 = vrcp.pop %v1833
    %v1880 = vmul.f32 %v1801, %v1879
    %v1881 = vrcp.pop %v1834
    %v1882 = vmul.f32 %v1802, %v1881
    %v1883 = vrcp.pop %v1835
    %v1884 = vmul.f32 %v1803, %v1883
    %v1885 = vrcp.pop %v1836
    %v1886 = vmul.f32 %v1804, %v1885
    %v1887 = vrcp.pop %v1837
    %v1888 = vmul.f32 %v1805, %v1887
    %v1889 = vrcp.pop %v1838
    %v1890 = vmul.f32 %v1806, %v1889
    %v1891 = vrcp.pop %v1839
    %v1892 = vmul.f32 %v1807, %v1891
    %v1893 = vrcp.pop %v1840
    %v1894 = vmul.f32 %v1808, %v1893
    %v1895 = vrcp.pop %v1841
    %v1896 = vmul.f32 %v1809, %v1895
    %v1897 = vrcp.pop %v1842
    %v1898 = vmul.f32 %v1810, %v1897
    %v1899 = vrcp.pop %v1843
    %v1900 = vmul.f32 %v1811, %v1899
    %v1901 = vrcp.pop %v1844
    %v1902 = vmul.f32 %v1812, %v1901
    %v1903 = vrcp.pop %v1845
    %v1904 = vmul.f32 %v1813, %v1903
    %v1905 = vrcp.pop %v1846
    %v1906 = vmul.f32 %v1814, %v1905
    %v1907 = vrcp.pop %v1847
    %v1908 = vmul.f32 %v1815, %v1907
    %v1909 = vrcp.pop %v1848
    %v1910 = vmul.f32 %v1816, %v1909
    %v1911 = vrcp.pop %v1849
    %v1912 = vmul.f32 %v1817, %v1911
    %v1913 = vrcp.pop %v1850
    %v1914 = vmul.f32 %v1818, %v1913
    %v1915 = vsel %vm1755, %v1852, %v1692
    %v1916 = vsel %vm1756, %v1854, %v1694
    %v1917 = vsel %vm1757, %v1856, %v1696
    %v1918 = vsel %vm1758, %v1858, %v1698
    %v1919 = vsel %vm1759, %v1860, %v1700
    %v1920 = vsel %vm1760, %v1862, %v1702
    %v1921 = vsel %vm1761, %v1864, %v1704
    %v1922 = vsel %vm1762, %v1866, %v1706
    %v1923 = vsel %vm1763, %v1868, %v1708
    %v1924 = vsel %vm1764, %v1870, %v1710
    %v1925 = vsel %vm1765, %v1872, %v1712
    %v1926 = vsel %vm1766, %v1874, %v1714
    %v1927 = vsel %vm1767, %v1876, %v1716
    %v1928 = vsel %vm1768, %v1878, %v1718
    %v1929 = vsel %vm1769, %v1880, %v1720
    %v1930 = vsel %vm1770, %v1882, %v1722
    %v1931 = vsel %vm1771, %v1884, %v1724
    %v1932 = vsel %vm1772, %v1886, %v1726
    %v1933 = vsel %vm1773, %v1888, %v1728
    %v1934 = vsel %vm1774, %v1890, %v1730
    %v1935 = vsel %vm1775, %v1892, %v1732
    %v1936 = vsel %vm1776, %v1894, %v1734
    %v1937 = vsel %vm1777, %v1896, %v1736
    %v1938 = vsel %vm1778, %v1898, %v1738
    %v1939 = vsel %vm1779, %v1900, %v1740
    %v1940 = vsel %vm1780, %v1902, %v1742
    %v1941 = vsel %vm1781, %v1904, %v1744
    %v1942 = vsel %vm1782, %v1906, %v1746
    %v1943 = vsel %vm1783, %v1908, %v1748
    %v1944 = vsel %vm1784, %v1910, %v1750
    %v1945 = vsel %vm1785, %v1912, %v1752
    %v1946 = vsel %vm1786, %v1914, %v1754
    %v1947 = vmul.f32 %v1915, %v1915
    %v1948 = vmul.f32 %v1916, %v1916
    %v1949 = vmul.f32 %v1917, %v1917
    %v1950 = vmul.f32 %v1918, %v1918
    %v1951 = vmul.f32 %v1919, %v1919
    %v1952 = vmul.f32 %v1920, %v1920
    %v1953 = vmul.f32 %v1921, %v1921
    %v1954 = vmul.f32 %v1922, %v1922
    %v1955 = vmul.f32 %v1923, %v1923
    %v1956 = vmul.f32 %v1924, %v1924
    %v1957 = vmul.f32 %v1925, %v1925
    %v1958 = vmul.f32 %v1926, %v1926
    %v1959 = vmul.f32 %v1927, %v1927
    %v1960 = vmul.f32 %v1928, %v1928
    %v1961 = vmul.f32 %v1929, %v1929
    %v1962 = vmul.f32 %v1930, %v1930
    %v1963 = vmul.f32 %v1931, %v1931
    %v1964 = vmul.f32 %v1932, %v1932
    %v1965 = vmul.f32 %v1933, %v1933
    %v1966 = vmul.f32 %v1934, %v1934
    %v1967 = vmul.f32 %v1935, %v1935
    %v1968 = vmul.f32 %v1936, %v1936
    %v1969 = vmul.f32 %v1937, %v1937
    %v1970 = vmul.f32 %v1938, %v1938
    %v1971 = vmul.f32 %v1939, %v1939
    %v1972 = vmul.f32 %v1940, %v1940
    %v1973 = vmul.f32 %v1941, %v1941
    %v1974 = vmul.f32 %v1942, %v1942
    %v1975 = vmul.f32 %v1943, %v1943
    %v1976 = vmul.f32 %v1944, %v1944
    %v1977 = vmul.f32 %v1945, %v1945
    %v1978 = vmul.f32 %v1946, %v1946
    %v1979 = vmul.f32 %v1947, 0.080537446
    %v1980 = vmul.f32 %v1948, 0.080537446
    %v1981 = vmul.f32 %v1949, 0.080537446
    %v1982 = vmul.f32 %v1950, 0.080537446
    %v1983 = vmul.f32 %v1951, 0.080537446
    %v1984 = vmul.f32 %v1952, 0.080537446
    %v1985 = vmul.f32 %v1953, 0.080537446
    %v1986 = vmul.f32 %v1954, 0.080537446
    %v1987 = vmul.f32 %v1955, 0.080537446
    %v1988 = vmul.f32 %v1956, 0.080537446
    %v1989 = vmul.f32 %v1957, 0.080537446
    %v1990 = vmul.f32 %v1958, 0.080537446
    %v1991 = vmul.f32 %v1959, 0.080537446
    %v1992 = vmul.f32 %v1960, 0.080537446
    %v1993 = vmul.f32 %v1961, 0.080537446
    %v1994 = vmul.f32 %v1962, 0.080537446
    %v1995 = vmul.f32 %v1963, 0.080537446
    %v1996 = vmul.f32 %v1964, 0.080537446
    %v1997 = vmul.f32 %v1965, 0.080537446
    %v1998 = vmul.f32 %v1966, 0.080537446
    %v1999 = vmul.f32 %v1967, 0.080537446
    %v2000 = vmul.f32 %v1968, 0.080537446
    %v2001 = vmul.f32 %v1969, 0.080537446
    %v2002 = vmul.f32 %v1970, 0.080537446
    %v2003 = vmul.f32 %v1971, 0.080537446
    %v2004 = vmul.f32 %v1972, 0.080537446
    %v2005 = vmul.f32 %v1973, 0.080537446
    %v2006 = vmul.f32 %v1974, 0.080537446
    %v2007 = vmul.f32 %v1975, 0.080537446
    %v2008 = vmul.f32 %v1976, 0.080537446
    %v2009 = vmul.f32 %v1977, 0.080537446
    %v2010 = vmul.f32 %v1978, 0.080537446
    %v2011 = vsub.f32 %v1979, 0.13877685
    %v2012 = vsub.f32 %v1980, 0.13877685
    %v2013 = vsub.f32 %v1981, 0.13877685
    %v2014 = vsub.f32 %v1982, 0.13877685
    %v2015 = vsub.f32 %v1983, 0.13877685
    %v2016 = vsub.f32 %v1984, 0.13877685
    %v2017 = vsub.f32 %v1985, 0.13877685
    %v2018 = vsub.f32 %v1986, 0.13877685
    %v2019 = vsub.f32 %v1987, 0.13877685
    %v2020 = vsub.f32 %v1988, 0.13877685
    %v2021 = vsub.f32 %v1989, 0.13877685
    %v2022 = vsub.f32 %v1990, 0.13877685
    %v2023 = vsub.f32 %v1991, 0.13877685
    %v2024 = vsub.f32 %v1992, 0.13877685
    %v2025 = vsub.f32 %v1993, 0.13877685
    %v2026 = vsub.f32 %v1994, 0.13877685
    %v2027 = vsub.f32 %v1995, 0.13877685
    %v2028 = vsub.f32 %v1996, 0.13877685
    %v2029 = vsub.f32 %v1997, 0.13877685
    %v2030 = vsub.f32 %v1998, 0.13877685
    %v2031 = vsub.f32 %v1999, 0.13877685
    %v2032 = vsub.f32 %v2000, 0.13877685
    %v2033 = vsub.f32 %v2001, 0.13877685
    %v2034 = vsub.f32 %v2002, 0.13877685
    %v2035 = vsub.f32 %v2003, 0.13877685
    %v2036 = vsub.f32 %v2004, 0.13877685
    %v2037 = vsub.f32 %v2005, 0.13877685
    %v2038 = vsub.f32 %v2006, 0.13877685
    %v2039 = vsub.f32 %v2007, 0.13877685
    %v2040 = vsub.f32 %v2008, 0.13877685
    %v2041 = vsub.f32 %v2009, 0.13877685
    %v2042 = vsub.f32 %v2010, 0.13877685
    %v2043 = vmul.f32 %v2011, %v1947
    %v2044 = vmul.f32 %v2012, %v1948
    %v2045 = vmul.f32 %v2013, %v1949
    %v2046 = vmul.f32 %v2014, %v1950
    %v2047 = vmul.f32 %v2015, %v1951
    %v2048 = vmul.f32 %v2016, %v1952
    %v2049 = vmul.f32 %v2017, %v1953
    %v2050 = vmul.f32 %v2018, %v1954
    %v2051 = vmul.f32 %v2019, %v1955
    %v2052 = vmul.f32 %v2020, %v1956
    %v2053 = vmul.f32 %v2021, %v1957
    %v2054 = vmul.f32 %v2022, %v1958
    %v2055 = vmul.f32 %v2023, %v1959
    %v2056 = vmul.f32 %v2024, %v1960
    %v2057 = vmul.f32 %v2025, %v1961
    %v2058 = vmul.f32 %v2026, %v1962
    %v2059 = vmul.f32 %v2027, %v1963
    %v2060 = vmul.f32 %v2028, %v1964
    %v2061 = vmul.f32 %v2029, %v1965
    %v2062 = vmul.f32 %v2030, %v1966
    %v2063 = vmul.f32 %v2031, %v1967
    %v2064 = vmul.f32 %v2032, %v1968
    %v2065 = vmul.f32 %v2033, %v1969
    %v2066 = vmul.f32 %v2034, %v1970
    %v2067 = vmul.f32 %v2035, %v1971
    %v2068 = vmul.f32 %v2036, %v1972
    %v2069 = vmul.f32 %v2037, %v1973
    %v2070 = vmul.f32 %v2038, %v1974
    %v2071 = vmul.f32 %v2039, %v1975
    %v2072 = vmul.f32 %v2040, %v1976
    %v2073 = vmul.f32 %v2041, %v1977
    %v2074 = vmul.f32 %v2042, %v1978
    %v2075 = vadd.f32 %v2043, 0.19977711
    %v2076 = vadd.f32 %v2044, 0.19977711
    %v2077 = vadd.f32 %v2045, 0.19977711
    %v2078 = vadd.f32 %v2046, 0.19977711
    %v2079 = vadd.f32 %v2047, 0.19977711
    %v2080 = vadd.f32 %v2048, 0.19977711
    %v2081 = vadd.f32 %v2049, 0.19977711
    %v2082 = vadd.f32 %v2050, 0.19977711
    %v2083 = vadd.f32 %v2051, 0.19977711
    %v2084 = vadd.f32 %v2052, 0.19977711
    %v2085 = vadd.f32 %v2053, 0.19977711
    %v2086 = vadd.f32 %v2054, 0.19977711
    %v2087 = vadd.f32 %v2055, 0.19977711
    %v2088 = vadd.f32 %v2056, 0.19977711
    %v2089 = vadd.f32 %v2057, 0.19977711
    %v2090 = vadd.f32 %v2058, 0.19977711
    %v2091 = vadd.f32 %v2059, 0.19977711
    %v2092 = vadd.f32 %v2060, 0.19977711
    %v2093 = vadd.f32 %v2061, 0.19977711
    %v2094 = vadd.f32 %v2062, 0.19977711
    %v2095 = vadd.f32 %v2063, 0.19977711
    %v2096 = vadd.f32 %v2064, 0.19977711
    %v2097 = vadd.f32 %v2065, 0.19977711
    %v2098 = vadd.f32 %v2066, 0.19977711
    %v2099 = vadd.f32 %v2067, 0.19977711
    %v2100 = vadd.f32 %v2068, 0.19977711
    %v2101 = vadd.f32 %v2069, 0.19977711
    %v2102 = vadd.f32 %v2070, 0.19977711
    %v2103 = vadd.f32 %v2071, 0.19977711
    %v2104 = vadd.f32 %v2072, 0.19977711
    %v2105 = vadd.f32 %v2073, 0.19977711
    %v2106 = vadd.f32 %v2074, 0.19977711
    %v2107 = vmul.f32 %v2075, %v1947
    %v2108 = vmul.f32 %v2076, %v1948
    %v2109 = vmul.f32 %v2077, %v1949
    %v2110 = vmul.f32 %v2078, %v1950
    %v2111 = vmul.f32 %v2079, %v1951
    %v2112 = vmul.f32 %v2080, %v1952
    %v2113 = vmul.f32 %v2081, %v1953
    %v2114 = vmul.f32 %v2082, %v1954
    %v2115 = vmul.f32 %v2083, %v1955
    %v2116 = vmul.f32 %v2084, %v1956
    %v2117 = vmul.f32 %v2085, %v1957
    %v2118 = vmul.f32 %v2086, %v1958
    %v2119 = vmul.f32 %v2087, %v1959
    %v2120 = vmul.f32 %v2088, %v1960
    %v2121 = vmul.f32 %v2089, %v1961
    %v2122 = vmul.f32 %v2090, %v1962
    %v2123 = vmul.f32 %v2091, %v1963
    %v2124 = vmul.f32 %v2092, %v1964
    %v2125 = vmul.f32 %v2093, %v1965
    %v2126 = vmul.f32 %v2094, %v1966
    %v2127 = vmul.f32 %v2095, %v1967
    %v2128 = vmul.f32 %v2096, %v1968
    %v2129 = vmul.f32 %v2097, %v1969
    %v2130 = vmul.f32 %v2098, %v1970
    %v2131 = vmul.f32 %v2099, %v1971
    %v2132 = vmul.f32 %v2100, %v1972
    %v2133 = vmul.f32 %v2101, %v1973
    %v2134 = vmul.f32 %v2102, %v1974
    %v2135 = vmul.f32 %v2103, %v1975
    %v2136 = vmul.f32 %v2104, %v1976
    %v2137 = vmul.f32 %v2105, %v1977
    %v2138 = vmul.f32 %v2106, %v1978
    %v2139 = vsub.f32 %v2107, 0.3333295
    %v2140 = vsub.f32 %v2108, 0.3333295
    %v2141 = vsub.f32 %v2109, 0.3333295
    %v2142 = vsub.f32 %v2110, 0.3333295
    %v2143 = vsub.f32 %v2111, 0.3333295
    %v2144 = vsub.f32 %v2112, 0.3333295
    %v2145 = vsub.f32 %v2113, 0.3333295
    %v2146 = vsub.f32 %v2114, 0.3333295
    %v2147 = vsub.f32 %v2115, 0.3333295
    %v2148 = vsub.f32 %v2116, 0.3333295
    %v2149 = vsub.f32 %v2117, 0.3333295
    %v2150 = vsub.f32 %v2118, 0.3333295
    %v2151 = vsub.f32 %v2119, 0.3333295
    %v2152 = vsub.f32 %v2120, 0.3333295
    %v2153 = vsub.f32 %v2121, 0.3333295
    %v2154 = vsub.f32 %v2122, 0.3333295
    %v2155 = vsub.f32 %v2123, 0.3333295
    %v2156 = vsub.f32 %v2124, 0.3333295
    %v2157 = vsub.f32 %v2125, 0.3333295
    %v2158 = vsub.f32 %v2126, 0.3333295
    %v2159 = vsub.f32 %v2127, 0.3333295
    %v2160 = vsub.f32 %v2128, 0.3333295
    %v2161 = vsub.f32 %v2129, 0.3333295
    %v2162 = vsub.f32 %v2130, 0.3333295
    %v2163 = vsub.f32 %v2131, 0.3333295
    %v2164 = vsub.f32 %v2132, 0.3333295
    %v2165 = vsub.f32 %v2133, 0.3333295
    %v2166 = vsub.f32 %v2134, 0.3333295
    %v2167 = vsub.f32 %v2135, 0.3333295
    %v2168 = vsub.f32 %v2136, 0.3333295
    %v2169 = vsub.f32 %v2137, 0.3333295
    %v2170 = vsub.f32 %v2138, 0.3333295
    %v2171 = vmul.f32 %v2139, %v1947
    %v2172 = vmul.f32 %v2140, %v1948
    %v2173 = vmul.f32 %v2141, %v1949
    %v2174 = vmul.f32 %v2142, %v1950
    %v2175 = vmul.f32 %v2143, %v1951
    %v2176 = vmul.f32 %v2144, %v1952
    %v2177 = vmul.f32 %v2145, %v1953
    %v2178 = vmul.f32 %v2146, %v1954
    %v2179 = vmul.f32 %v2147, %v1955
    %v2180 = vmul.f32 %v2148, %v1956
    %v2181 = vmul.f32 %v2149, %v1957
    %v2182 = vmul.f32 %v2150, %v1958
    %v2183 = vmul.f32 %v2151, %v1959
    %v2184 = vmul.f32 %v2152, %v1960
    %v2185 = vmul.f32 %v2153, %v1961
    %v2186 = vmul.f32 %v2154, %v1962
    %v2187 = vmul.f32 %v2155, %v1963
    %v2188 = vmul.f32 %v2156, %v1964
    %v2189 = vmul.f32 %v2157, %v1965
    %v2190 = vmul.f32 %v2158, %v1966
    %v2191 = vmul.f32 %v2159, %v1967
    %v2192 = vmul.f32 %v2160, %v1968
    %v2193 = vmul.f32 %v2161, %v1969
    %v2194 = vmul.f32 %v2162, %v1970
    %v2195 = vmul.f32 %v2163, %v1971
    %v2196 = vmul.f32 %v2164, %v1972
    %v2197 = vmul.f32 %v2165, %v1973
    %v2198 = vmul.f32 %v2166, %v1974
    %v2199 = vmul.f32 %v2167, %v1975
    %v2200 = vmul.f32 %v2168, %v1976
    %v2201 = vmul.f32 %v2169, %v1977
    %v2202 = vmul.f32 %v2170, %v1978
    %v2203 = vmul.f32 %v2171, %v1915
    %v2204 = vmul.f32 %v2172, %v1916
    %v2205 = vmul.f32 %v2173, %v1917
    %v2206 = vmul.f32 %v2174, %v1918
    %v2207 = vmul.f32 %v2175, %v1919
    %v2208 = vmul.f32 %v2176, %v1920
    %v2209 = vmul.f32 %v2177, %v1921
    %v2210 = vmul.f32 %v2178, %v1922
    %v2211 = vmul.f32 %v2179, %v1923
    %v2212 = vmul.f32 %v2180, %v1924
    %v2213 = vmul.f32 %v2181, %v1925
    %v2214 = vmul.f32 %v2182, %v1926
    %v2215 = vmul.f32 %v2183, %v1927
    %v2216 = vmul.f32 %v2184, %v1928
    %v2217 = vmul.f32 %v2185, %v1929
    %v2218 = vmul.f32 %v2186, %v1930
    %v2219 = vmul.f32 %v2187, %v1931
    %v2220 = vmul.f32 %v2188, %v1932
    %v2221 = vmul.f32 %v2189, %v1933
    %v2222 = vmul.f32 %v2190, %v1934
    %v2223 = vmul.f32 %v2191, %v1935
    %v2224 = vmul.f32 %v2192, %v1936
    %v2225 = vmul.f32 %v2193, %v1937
    %v2226 = vmul.f32 %v2194, %v1938
    %v2227 = vmul.f32 %v2195, %v1939
    %v2228 = vmul.f32 %v2196, %v1940
    %v2229 = vmul.f32 %v2197, %v1941
    %v2230 = vmul.f32 %v2198, %v1942
    %v2231 = vmul.f32 %v2199, %v1943
    %v2232 = vmul.f32 %v2200, %v1944
    %v2233 = vmul.f32 %v2201, %v1945
    %v2234 = vmul.f32 %v2202, %v1946
    %v2235 = vadd.f32 %v2203, %v1915
    %v2236 = vadd.f32 %v2204, %v1916
    %v2237 = vadd.f32 %v2205, %v1917
    %v2238 = vadd.f32 %v2206, %v1918
    %v2239 = vadd.f32 %v2207, %v1919
    %v2240 = vadd.f32 %v2208, %v1920
    %v2241 = vadd.f32 %v2209, %v1921
    %v2242 = vadd.f32 %v2210, %v1922
    %v2243 = vadd.f32 %v2211, %v1923
    %v2244 = vadd.f32 %v2212, %v1924
    %v2245 = vadd.f32 %v2213, %v1925
    %v2246 = vadd.f32 %v2214, %v1926
    %v2247 = vadd.f32 %v2215, %v1927
    %v2248 = vadd.f32 %v2216, %v1928
    %v2249 = vadd.f32 %v2217, %v1929
    %v2250 = vadd.f32 %v2218, %v1930
    %v2251 = vadd.f32 %v2219, %v1931
    %v2252 = vadd.f32 %v2220, %v1932
    %v2253 = vadd.f32 %v2221, %v1933
    %v2254 = vadd.f32 %v2222, %v1934
    %v2255 = vadd.f32 %v2223, %v1935
    %v2256 = vadd.f32 %v2224, %v1936
    %v2257 = vadd.f32 %v2225, %v1937
    %v2258 = vadd.f32 %v2226, %v1938
    %v2259 = vadd.f32 %v2227, %v1939
    %v2260 = vadd.f32 %v2228, %v1940
    %v2261 = vadd.f32 %v2229, %v1941
    %v2262 = vadd.f32 %v2230, %v1942
    %v2263 = vadd.f32 %v2231, %v1943
    %v2264 = vadd.f32 %v2232, %v1944
    %v2265 = vadd.f32 %v2233, %v1945
    %v2266 = vadd.f32 %v2234, %v1946
    %v2267 = vadd.f32 %v2235, 0.7853982
    %v2268 = vadd.f32 %v2236, 0.7853982
    %v2269 = vadd.f32 %v2237, 0.7853982
    %v2270 = vadd.f32 %v2238, 0.7853982
    %v2271 = vadd.f32 %v2239, 0.7853982
    %v2272 = vadd.f32 %v2240, 0.7853982
    %v2273 = vadd.f32 %v2241, 0.7853982
    %v2274 = vadd.f32 %v2242, 0.7853982
    %v2275 = vadd.f32 %v2243, 0.7853982
    %v2276 = vadd.f32 %v2244, 0.7853982
    %v2277 = vadd.f32 %v2245, 0.7853982
    %v2278 = vadd.f32 %v2246, 0.7853982
    %v2279 = vadd.f32 %v2247, 0.7853982
    %v2280 = vadd.f32 %v2248, 0.7853982
    %v2281 = vadd.f32 %v2249, 0.7853982
    %v2282 = vadd.f32 %v2250, 0.7853982
    %v2283 = vadd.f32 %v2251, 0.7853982
    %v2284 = vadd.f32 %v2252, 0.7853982
    %v2285 = vadd.f32 %v2253, 0.7853982
    %v2286 = vadd.f32 %v2254, 0.7853982
    %v2287 = vadd.f32 %v2255, 0.7853982
    %v2288 = vadd.f32 %v2256, 0.7853982
    %v2289 = vadd.f32 %v2257, 0.7853982
    %v2290 = vadd.f32 %v2258, 0.7853982
    %v2291 = vadd.f32 %v2259, 0.7853982
    %v2292 = vadd.f32 %v2260, 0.7853982
    %v2293 = vadd.f32 %v2261, 0.7853982
    %v2294 = vadd.f32 %v2262, 0.7853982
    %v2295 = vadd.f32 %v2263, 0.7853982
    %v2296 = vadd.f32 %v2264, 0.7853982
    %v2297 = vadd.f32 %v2265, 0.7853982
    %v2298 = vadd.f32 %v2266, 0.7853982
    %v2299 = vsel %vm1755, %v2267, %v2235
    %v2300 = vsel %vm1756, %v2268, %v2236
    %v2301 = vsel %vm1757, %v2269, %v2237
    %v2302 = vsel %vm1758, %v2270, %v2238
    %v2303 = vsel %vm1759, %v2271, %v2239
    %v2304 = vsel %vm1760, %v2272, %v2240
    %v2305 = vsel %vm1761, %v2273, %v2241
    %v2306 = vsel %vm1762, %v2274, %v2242
    %v2307 = vsel %vm1763, %v2275, %v2243
    %v2308 = vsel %vm1764, %v2276, %v2244
    %v2309 = vsel %vm1765, %v2277, %v2245
    %v2310 = vsel %vm1766, %v2278, %v2246
    %v2311 = vsel %vm1767, %v2279, %v2247
    %v2312 = vsel %vm1768, %v2280, %v2248
    %v2313 = vsel %vm1769, %v2281, %v2249
    %v2314 = vsel %vm1770, %v2282, %v2250
    %v2315 = vsel %vm1771, %v2283, %v2251
    %v2316 = vsel %vm1772, %v2284, %v2252
    %v2317 = vsel %vm1773, %v2285, %v2253
    %v2318 = vsel %vm1774, %v2286, %v2254
    %v2319 = vsel %vm1775, %v2287, %v2255
    %v2320 = vsel %vm1776, %v2288, %v2256
    %v2321 = vsel %vm1777, %v2289, %v2257
    %v2322 = vsel %vm1778, %v2290, %v2258
    %v2323 = vsel %vm1779, %v2291, %v2259
    %v2324 = vsel %vm1780, %v2292, %v2260
    %v2325 = vsel %vm1781, %v2293, %v2261
    %v2326 = vsel %vm1782, %v2294, %v2262
    %v2327 = vsel %vm1783, %v2295, %v2263
    %v2328 = vsel %vm1784, %v2296, %v2264
    %v2329 = vsel %vm1785, %v2297, %v2265
    %v2330 = vsel %vm1786, %v2298, %v2266
    %vm2331 = vcmp.gt.f32.partialorder %v1563, %v1531
    %vm2332 = vcmp.gt.f32.partialorder %v1564, %v1532
    %vm2333 = vcmp.gt.f32.partialorder %v1565, %v1533
    %vm2334 = vcmp.gt.f32.partialorder %v1566, %v1534
    %vm2335 = vcmp.gt.f32.partialorder %v1567, %v1535
    %vm2336 = vcmp.gt.f32.partialorder %v1568, %v1536
    %vm2337 = vcmp.gt.f32.partialorder %v1569, %v1537
    %vm2338 = vcmp.gt.f32.partialorder %v1570, %v1538
    %vm2339 = vcmp.gt.f32.partialorder %v1571, %v1539
    %vm2340 = vcmp.gt.f32.partialorder %v1572, %v1540
    %vm2341 = vcmp.gt.f32.partialorder %v1573, %v1541
    %vm2342 = vcmp.gt.f32.partialorder %v1574, %v1542
    %vm2343 = vcmp.gt.f32.partialorder %v1575, %v1543
    %vm2344 = vcmp.gt.f32.partialorder %v1576, %v1544
    %vm2345 = vcmp.gt.f32.partialorder %v1577, %v1545
    %vm2346 = vcmp.gt.f32.partialorder %v1578, %v1546
    %vm2347 = vcmp.gt.f32.partialorder %v1579, %v1547
    %vm2348 = vcmp.gt.f32.partialorder %v1580, %v1548
    %vm2349 = vcmp.gt.f32.partialorder %v1581, %v1549
    %vm2350 = vcmp.gt.f32.partialorder %v1582, %v1550
    %vm2351 = vcmp.gt.f32.partialorder %v1583, %v1551
    %vm2352 = vcmp.gt.f32.partialorder %v1584, %v1552
    %vm2353 = vcmp.gt.f32.partialorder %v1585, %v1553
    %vm2354 = vcmp.gt.f32.partialorder %v1586, %v1554
    %vm2355 = vcmp.gt.f32.partialorder %v1587, %v1555
    %vm2356 = vcmp.gt.f32.partialorder %v1588, %v1556
    %vm2357 = vcmp.gt.f32.partialorder %v1589, %v1557
    %vm2358 = vcmp.gt.f32.partialorder %v1590, %v1558
    %vm2359 = vcmp.gt.f32.partialorder %v1591, %v1559
    %vm2360 = vcmp.gt.f32.partialorder %v1592, %v1560
    %vm2361 = vcmp.gt.f32.partialorder %v1593, %v1561
    %vm2362 = vcmp.gt.f32.partialorder %v1594, %v1562
    %v2363 = vsub.f32 1.5707964, %v2299
    %v2364 = vsub.f32 1.5707964, %v2300
    %v2365 = vsub.f32 1.5707964, %v2301
    %v2366 = vsub.f32 1.5707964, %v2302
    %v2367 = vsub.f32 1.5707964, %v2303
    %v2368 = vsub.f32 1.5707964, %v2304
    %v2369 = vsub.f32 1.5707964, %v2305
    %v2370 = vsub.f32 1.5707964, %v2306
    %v2371 = vsub.f32 1.5707964, %v2307
    %v2372 = vsub.f32 1.5707964, %v2308
    %v2373 = vsub.f32 1.5707964, %v2309
    %v2374 = vsub.f32 1.5707964, %v2310
    %v2375 = vsub.f32 1.5707964, %v2311
    %v2376 = vsub.f32 1.5707964, %v2312
    %v2377 = vsub.f32 1.5707964, %v2313
    %v2378 = vsub.f32 1.5707964, %v2314
    %v2379 = vsub.f32 1.5707964, %v2315
    %v2380 = vsub.f32 1.5707964, %v2316
    %v2381 = vsub.f32 1.5707964, %v2317
    %v2382 = vsub.f32 1.5707964, %v2318
    %v2383 = vsub.f32 1.5707964, %v2319
    %v2384 = vsub.f32 1.5707964, %v2320
    %v2385 = vsub.f32 1.5707964, %v2321
    %v2386 = vsub.f32 1.5707964, %v2322
    %v2387 = vsub.f32 1.5707964, %v2323
    %v2388 = vsub.f32 1.5707964, %v2324
    %v2389 = vsub.f32 1.5707964, %v2325
    %v2390 = vsub.f32 1.5707964, %v2326
    %v2391 = vsub.f32 1.5707964, %v2327
    %v2392 = vsub.f32 1.5707964, %v2328
    %v2393 = vsub.f32 1.5707964, %v2329
    %v2394 = vsub.f32 1.5707964, %v2330
    %v2395 = vsel %vm2331, %v2363, %v2299
    %v2396 = vsel %vm2332, %v2364, %v2300
    %v2397 = vsel %vm2333, %v2365, %v2301
    %v2398 = vsel %vm2334, %v2366, %v2302
    %v2399 = vsel %vm2335, %v2367, %v2303
    %v2400 = vsel %vm2336, %v2368, %v2304
    %v2401 = vsel %vm2337, %v2369, %v2305
    %v2402 = vsel %vm2338, %v2370, %v2306
    %v2403 = vsel %vm2339, %v2371, %v2307
    %v2404 = vsel %vm2340, %v2372, %v2308
    %v2405 = vsel %vm2341, %v2373, %v2309
    %v2406 = vsel %vm2342, %v2374, %v2310
    %v2407 = vsel %vm2343, %v2375, %v2311
    %v2408 = vsel %vm2344, %v2376, %v2312
    %v2409 = vsel %vm2345, %v2377, %v2313
    %v2410 = vsel %vm2346, %v2378, %v2314
    %v2411 = vsel %vm2347, %v2379, %v2315
    %v2412 = vsel %vm2348, %v2380, %v2316
    %v2413 = vsel %vm2349, %v2381, %v2317
    %v2414 = vsel %vm2350, %v2382, %v2318
    %v2415 = vsel %vm2351, %v2383, %v2319
    %v2416 = vsel %vm2352, %v2384, %v2320
    %v2417 = vsel %vm2353, %v2385, %v2321
    %v2418 = vsel %vm2354, %v2386, %v2322
    %v2419 = vsel %vm2355, %v2387, %v2323
    %v2420 = vsel %vm2356, %v2388, %v2324
    %v2421 = vsel %vm2357, %v2389, %v2325
    %v2422 = vsel %vm2358, %v2390, %v2326
    %v2423 = vsel %vm2359, %v2391, %v2327
    %v2424 = vsel %vm2360, %v2392, %v2328
    %v2425 = vsel %vm2361, %v2393, %v2329
    %v2426 = vsel %vm2362, %v2394, %v2330
    %vm2427 = vcmp.lt.f32.partialorder %v1115, 0.0
    %vm2428 = vcmp.lt.f32.partialorder %v1116, 0.0
    %vm2429 = vcmp.lt.f32.partialorder %v1117, 0.0
    %vm2430 = vcmp.lt.f32.partialorder %v1118, 0.0
    %vm2431 = vcmp.lt.f32.partialorder %v1119, 0.0
    %vm2432 = vcmp.lt.f32.partialorder %v1120, 0.0
    %vm2433 = vcmp.lt.f32.partialorder %v1121, 0.0
    %vm2434 = vcmp.lt.f32.partialorder %v1122, 0.0
    %vm2435 = vcmp.lt.f32.partialorder %v1123, 0.0
    %vm2436 = vcmp.lt.f32.partialorder %v1124, 0.0
    %vm2437 = vcmp.lt.f32.partialorder %v1125, 0.0
    %vm2438 = vcmp.lt.f32.partialorder %v1126, 0.0
    %vm2439 = vcmp.lt.f32.partialorder %v1127, 0.0
    %vm2440 = vcmp.lt.f32.partialorder %v1128, 0.0
    %vm2441 = vcmp.lt.f32.partialorder %v1129, 0.0
    %vm2442 = vcmp.lt.f32.partialorder %v1130, 0.0
    %vm2443 = vcmp.lt.f32.partialorder %v1131, 0.0
    %vm2444 = vcmp.lt.f32.partialorder %v1132, 0.0
    %vm2445 = vcmp.lt.f32.partialorder %v1133, 0.0
    %vm2446 = vcmp.lt.f32.partialorder %v1134, 0.0
    %vm2447 = vcmp.lt.f32.partialorder %v1135, 0.0
    %vm2448 = vcmp.lt.f32.partialorder %v1136, 0.0
    %vm2449 = vcmp.lt.f32.partialorder %v1137, 0.0
    %vm2450 = vcmp.lt.f32.partialorder %v1138, 0.0
    %vm2451 = vcmp.lt.f32.partialorder %v1139, 0.0
    %vm2452 = vcmp.lt.f32.partialorder %v1140, 0.0
    %vm2453 = vcmp.lt.f32.partialorder %v1141, 0.0
    %vm2454 = vcmp.lt.f32.partialorder %v1142, 0.0
    %vm2455 = vcmp.lt.f32.partialorder %v1143, 0.0
    %vm2456 = vcmp.lt.f32.partialorder %v1144, 0.0
    %vm2457 = vcmp.lt.f32.partialorder %v1145, 0.0
    %vm2458 = vcmp.lt.f32.partialorder %v1146, 0.0
    %v2459 = vsub.f32 3.1415927, %v2395
    %v2460 = vsub.f32 3.1415927, %v2396
    %v2461 = vsub.f32 3.1415927, %v2397
    %v2462 = vsub.f32 3.1415927, %v2398
    %v2463 = vsub.f32 3.1415927, %v2399
    %v2464 = vsub.f32 3.1415927, %v2400
    %v2465 = vsub.f32 3.1415927, %v2401
    %v2466 = vsub.f32 3.1415927, %v2402
    %v2467 = vsub.f32 3.1415927, %v2403
    %v2468 = vsub.f32 3.1415927, %v2404
    %v2469 = vsub.f32 3.1415927, %v2405
    %v2470 = vsub.f32 3.1415927, %v2406
    %v2471 = vsub.f32 3.1415927, %v2407
    %v2472 = vsub.f32 3.1415927, %v2408
    %v2473 = vsub.f32 3.1415927, %v2409
    %v2474 = vsub.f32 3.1415927, %v2410
    %v2475 = vsub.f32 3.1415927, %v2411
    %v2476 = vsub.f32 3.1415927, %v2412
    %v2477 = vsub.f32 3.1415927, %v2413
    %v2478 = vsub.f32 3.1415927, %v2414
    %v2479 = vsub.f32 3.1415927, %v2415
    %v2480 = vsub.f32 3.1415927, %v2416
    %v2481 = vsub.f32 3.1415927, %v2417
    %v2482 = vsub.f32 3.1415927, %v2418
    %v2483 = vsub.f32 3.1415927, %v2419
    %v2484 = vsub.f32 3.1415927, %v2420
    %v2485 = vsub.f32 3.1415927, %v2421
    %v2486 = vsub.f32 3.1415927, %v2422
    %v2487 = vsub.f32 3.1415927, %v2423
    %v2488 = vsub.f32 3.1415927, %v2424
    %v2489 = vsub.f32 3.1415927, %v2425
    %v2490 = vsub.f32 3.1415927, %v2426
    %v2491 = vsel %vm2427, %v2459, %v2395
    %v2492 = vsel %vm2428, %v2460, %v2396
    %v2493 = vsel %vm2429, %v2461, %v2397
    %v2494 = vsel %vm2430, %v2462, %v2398
    %v2495 = vsel %vm2431, %v2463, %v2399
    %v2496 = vsel %vm2432, %v2464, %v2400
    %v2497 = vsel %vm2433, %v2465, %v2401
    %v2498 = vsel %vm2434, %v2466, %v2402
    %v2499 = vsel %vm2435, %v2467, %v2403
    %v2500 = vsel %vm2436, %v2468, %v2404
    %v2501 = vsel %vm2437, %v2469, %v2405
    %v2502 = vsel %vm2438, %v2470, %v2406
    %v2503 = vsel %vm2439, %v2471, %v2407
    %v2504 = vsel %vm2440, %v2472, %v2408
    %v2505 = vsel %vm2441, %v2473, %v2409
    %v2506 = vsel %vm2442, %v2474, %v2410
    %v2507 = vsel %vm2443, %v2475, %v2411
    %v2508 = vsel %vm2444, %v2476, %v2412
    %v2509 = vsel %vm2445, %v2477, %v2413
    %v2510 = vsel %vm2446, %v2478, %v2414
    %v2511 = vsel %vm2447, %v2479, %v2415
    %v2512 = vsel %vm2448, %v2480, %v2416
    %v2513 = vsel %vm2449, %v2481, %v2417
    %v2514 = vsel %vm2450, %v2482, %v2418
    %v2515 = vsel %vm2451, %v2483, %v2419
    %v2516 = vsel %vm2452, %v2484, %v2420
    %v2517 = vsel %vm2453, %v2485, %v2421
    %v2518 = vsel %vm2454, %v2486, %v2422
    %v2519 = vsel %vm2455, %v2487, %v2423
    %v2520 = vsel %vm2456, %v2488, %v2424
    %v2521 = vsel %vm2457, %v2489, %v2425
    %v2522 = vsel %vm2458, %v2490, %v2426
    %vm2523 = vcmp.lt.f32.partialorder %v1179, 0.0
    %vm2524 = vcmp.lt.f32.partialorder %v1180, 0.0
    %vm2525 = vcmp.lt.f32.partialorder %v1181, 0.0
    %vm2526 = vcmp.lt.f32.partialorder %v1182, 0.0
    %vm2527 = vcmp.lt.f32.partialorder %v1183, 0.0
    %vm2528 = vcmp.lt.f32.partialorder %v1184, 0.0
    %vm2529 = vcmp.lt.f32.partialorder %v1185, 0.0
    %vm2530 = vcmp.lt.f32.partialorder %v1186, 0.0
    %vm2531 = vcmp.lt.f32.partialorder %v1187, 0.0
    %vm2532 = vcmp.lt.f32.partialorder %v1188, 0.0
    %vm2533 = vcmp.lt.f32.partialorder %v1189, 0.0
    %vm2534 = vcmp.lt.f32.partialorder %v1190, 0.0
    %vm2535 = vcmp.lt.f32.partialorder %v1191, 0.0
    %vm2536 = vcmp.lt.f32.partialorder %v1192, 0.0
    %vm2537 = vcmp.lt.f32.partialorder %v1193, 0.0
    %vm2538 = vcmp.lt.f32.partialorder %v1194, 0.0
    %vm2539 = vcmp.lt.f32.partialorder %v1195, 0.0
    %vm2540 = vcmp.lt.f32.partialorder %v1196, 0.0
    %vm2541 = vcmp.lt.f32.partialorder %v1197, 0.0
    %vm2542 = vcmp.lt.f32.partialorder %v1198, 0.0
    %vm2543 = vcmp.lt.f32.partialorder %v1199, 0.0
    %vm2544 = vcmp.lt.f32.partialorder %v1200, 0.0
    %vm2545 = vcmp.lt.f32.partialorder %v1201, 0.0
    %vm2546 = vcmp.lt.f32.partialorder %v1202, 0.0
    %vm2547 = vcmp.lt.f32.partialorder %v1203, 0.0
    %vm2548 = vcmp.lt.f32.partialorder %v1204, 0.0
    %vm2549 = vcmp.lt.f32.partialorder %v1205, 0.0
    %vm2550 = vcmp.lt.f32.partialorder %v1206, 0.0
    %vm2551 = vcmp.lt.f32.partialorder %v1207, 0.0
    %vm2552 = vcmp.lt.f32.partialorder %v1208, 0.0
    %vm2553 = vcmp.lt.f32.partialorder %v1209, 0.0
    %vm2554 = vcmp.lt.f32.partialorder %v1210, 0.0
    %v2555 = vsub.f32 0.0, %v2491
    %v2556 = vsub.f32 0.0, %v2492
    %v2557 = vsub.f32 0.0, %v2493
    %v2558 = vsub.f32 0.0, %v2494
    %v2559 = vsub.f32 0.0, %v2495
    %v2560 = vsub.f32 0.0, %v2496
    %v2561 = vsub.f32 0.0, %v2497
    %v2562 = vsub.f32 0.0, %v2498
    %v2563 = vsub.f32 0.0, %v2499
    %v2564 = vsub.f32 0.0, %v2500
    %v2565 = vsub.f32 0.0, %v2501
    %v2566 = vsub.f32 0.0, %v2502
    %v2567 = vsub.f32 0.0, %v2503
    %v2568 = vsub.f32 0.0, %v2504
    %v2569 = vsub.f32 0.0, %v2505
    %v2570 = vsub.f32 0.0, %v2506
    %v2571 = vsub.f32 0.0, %v2507
    %v2572 = vsub.f32 0.0, %v2508
    %v2573 = vsub.f32 0.0, %v2509
    %v2574 = vsub.f32 0.0, %v2510
    %v2575 = vsub.f32 0.0, %v2511
    %v2576 = vsub.f32 0.0, %v2512
    %v2577 = vsub.f32 0.0, %v2513
    %v2578 = vsub.f32 0.0, %v2514
    %v2579 = vsub.f32 0.0, %v2515
    %v2580 = vsub.f32 0.0, %v2516
    %v2581 = vsub.f32 0.0, %v2517
    %v2582 = vsub.f32 0.0, %v2518
    %v2583 = vsub.f32 0.0, %v2519
    %v2584 = vsub.f32 0.0, %v2520
    %v2585 = vsub.f32 0.0, %v2521
    %v2586 = vsub.f32 0.0, %v2522
    %v2587 = vsel %vm2523, %v2555, %v2491
    %v2588 = vsel %vm2524, %v2556, %v2492
    %v2589 = vsel %vm2525, %v2557, %v2493
    %v2590 = vsel %vm2526, %v2558, %v2494
    %v2591 = vsel %vm2527, %v2559, %v2495
    %v2592 = vsel %vm2528, %v2560, %v2496
    %v2593 = vsel %vm2529, %v2561, %v2497
    %v2594 = vsel %vm2530, %v2562, %v2498
    %v2595 = vsel %vm2531, %v2563, %v2499
    %v2596 = vsel %vm2532, %v2564, %v2500
    %v2597 = vsel %vm2533, %v2565, %v2501
    %v2598 = vsel %vm2534, %v2566, %v2502
    %v2599 = vsel %vm2535, %v2567, %v2503
    %v2600 = vsel %vm2536, %v2568, %v2504
    %v2601 = vsel %vm2537, %v2569, %v2505
    %v2602 = vsel %vm2538, %v2570, %v2506
    %v2603 = vsel %vm2539, %v2571, %v2507
    %v2604 = vsel %vm2540, %v2572, %v2508
    %v2605 = vsel %vm2541, %v2573, %v2509
    %v2606 = vsel %vm2542, %v2574, %v2510
    %v2607 = vsel %vm2543, %v2575, %v2511
    %v2608 = vsel %vm2544, %v2576, %v2512
    %v2609 = vsel %vm2545, %v2577, %v2513
    %v2610 = vsel %vm2546, %v2578, %v2514
    %v2611 = vsel %vm2547, %v2579, %v2515
    %v2612 = vsel %vm2548, %v2580, %v2516
    %v2613 = vsel %vm2549, %v2581, %v2517
    %v2614 = vsel %vm2550, %v2582, %v2518
    %v2615 = vsel %vm2551, %v2583, %v2519
    %v2616 = vsel %vm2552, %v2584, %v2520
    %v2617 = vsel %vm2553, %v2585, %v2521
    %v2618 = vsel %vm2554, %v2586, %v2522
    %v2619 = vsub.f32 %v1313, %v1425
    %v2620 = vsub.f32 %v1320, %v1432
    %v2621 = vsub.f32 %v1327, %v1439
    %v2622 = vsub.f32 %v1334, %v1446
    %v2623 = vsub.f32 %v1341, %v1453
    %v2624 = vsub.f32 %v1348, %v1460
    %v2625 = vsub.f32 %v1355, %v1467
    %v2626 = vsub.f32 %v1362, %v1474
    %v2627 = vsub.f32 %v1369, %v1481
    %v2628 = vsub.f32 %v1376, %v1488
    %v2629 = vsub.f32 %v1383, %v1495
    %v2630 = vsub.f32 %v1390, %v1502
    %v2631 = vsub.f32 %v1397, %v1509
    %v2632 = vsub.f32 %v1404, %v1516
    %v2633 = vsub.f32 %v1411, %v1523
    %v2634 = vsub.f32 %v1418, %v1530
    %v2635 = vand.u32 2147483647, %v2619
    %v2636 = vand.u32 2147483647, %v2620
    %v2637 = vand.u32 2147483647, %v2621
    %v2638 = vand.u32 2147483647, %v2622
    %v2639 = vand.u32 2147483647, %v2623
    %v2640 = vand.u32 2147483647, %v2624
    %v2641 = vand.u32 2147483647, %v2625
    %v2642 = vand.u32 2147483647, %v2626
    %v2643 = vand.u32 2147483647, %v2627
    %v2644 = vand.u32 2147483647, %v2628
    %v2645 = vand.u32 2147483647, %v2629
    %v2646 = vand.u32 2147483647, %v2630
    %v2647 = vand.u32 2147483647, %v2631
    %v2648 = vand.u32 2147483647, %v2632
    %v2649 = vand.u32 2147483647, %v2633
    %v2650 = vand.u32 2147483647, %v2634
    %v2651 = vsub.f32 %v2587, %v2603
    %v2652 = vsub.f32 %v2588, %v2604
    %v2653 = vsub.f32 %v2589, %v2605
    %v2654 = vsub.f32 %v2590, %v2606
    %v2655 = vsub.f32 %v2591, %v2607
    %v2656 = vsub.f32 %v2592, %v2608
    %v2657 = vsub.f32 %v2593, %v2609
    %v2658 = vsub.f32 %v2594, %v2610
    %v2659 = vsub.f32 %v2595, %v2611
    %v2660 = vsub.f32 %v2596, %v2612
    %v2661 = vsub.f32 %v2597, %v2613
    %v2662 = vsub.f32 %v2598, %v2614
    %v2663 = vsub.f32 %v2599, %v2615
    %v2664 = vsub.f32 %v2600, %v2616
    %v2665 = vsub.f32 %v2601, %v2617
    %v2666 = vsub.f32 %v2602, %v2618
    %v2667 = vand.u32 2147483647, %v2651
    %v2668 = vand.u32 2147483647, %v2652
    %v2669 = vand.u32 2147483647, %v2653
    %v2670 = vand.u32 2147483647, %v2654
    %v2671 = vand.u32 2147483647, %v2655
    %v2672 = vand.u32 2147483647, %v2656
    %v2673 = vand.u32 2147483647, %v2657
    %v2674 = vand.u32 2147483647, %v2658
    %v2675 = vand.u32 2147483647, %v2659
    %v2676 = vand.u32 2147483647, %v2660
    %v2677 = vand.u32 2147483647, %v2661
    %v2678 = vand.u32 2147483647, %v2662
    %v2679 = vand.u32 2147483647, %v2663
    %v2680 = vand.u32 2147483647, %v2664
    %v2681 = vand.u32 2147483647, %v2665
    %v2682 = vand.u32 2147483647, %v2666
    %v2683 = vadd.f32 %v2635, %v2667
    %v2684 = vadd.f32 %v2636, %v2668
    %v2685 = vadd.f32 %v2637, %v2669
    %v2686 = vadd.f32 %v2638, %v2670
    %v2687 = vadd.f32 %v2639, %v2671
    %v2688 = vadd.f32 %v2640, %v2672
    %v2689 = vadd.f32 %v2641, %v2673
    %v2690 = vadd.f32 %v2642, %v2674
    %v2691 = vadd.f32 %v2643, %v2675
    %v2692 = vadd.f32 %v2644, %v2676
    %v2693 = vadd.f32 %v2645, %v2677
    %v2694 = vadd.f32 %v2646, %v2678
    %v2695 = vadd.f32 %v2647, %v2679
    %v2696 = vadd.f32 %v2648, %v2680
    %v2697 = vadd.f32 %v2649, %v2681
    %v2698 = vadd.f32 %v2650, %v2682
    %v2699 = vld [vmem:[#allocation3] sm:$0xff]
    %v2700 = vld [vmem:[#allocation3 + $0x8] sm:$0xff]
    %v2701 = vld [vmem:[#allocation3 + $0x10] sm:$0xff]
    %v2702 = vld [vmem:[#allocation3 + $0x18] sm:$0xff]
    %v2703 = vld [vmem:[#allocation3 + $0x20] sm:$0xff]
    %v2704 = vld [vmem:[#allocation3 + $0x28] sm:$0xff]
    %v2705 = vld [vmem:[#allocation3 + $0x30] sm:$0xff]
    %v2706 = vld [vmem:[#allocation3 + $0x38] sm:$0xff]
    %v2707 = vld [vmem:[#allocation3 + $0x40] sm:$0xff]
    %v2708 = vld [vmem:[#allocation3 + $0x48] sm:$0xff]
    %v2709 = vld [vmem:[#allocation3 + $0x50] sm:$0xff]
    %v2710 = vld [vmem:[#allocation3 + $0x58] sm:$0xff]
    %v2711 = vld [vmem:[#allocation3 + $0x60] sm:$0xff]
    %v2712 = vld [vmem:[#allocation3 + $0x68] sm:$0xff]
    %v2713 = vld [vmem:[#allocation3 + $0x70] sm:$0xff]
    %v2714 = vld [vmem:[#allocation3 + $0x78] sm:$0xff]
    %v2715 = vadd.f32 %v2699, %v2683
    %v2716 = vadd.f32 %v2700, %v2684
    %v2717 = vadd.f32 %v2701, %v2685
    %v2718 = vadd.f32 %v2702, %v2686
    %v2719 = vadd.f32 %v2703, %v2687
    %v2720 = vadd.f32 %v2704, %v2688
    %v2721 = vadd.f32 %v2705, %v2689
    %v2722 = vadd.f32 %v2706, %v2690
    %v2723 = vadd.f32 %v2707, %v2691
    %v2724 = vadd.f32 %v2708, %v2692
    %v2725 = vadd.f32 %v2709, %v2693
    %v2726 = vadd.f32 %v2710, %v2694
    %v2727 = vadd.f32 %v2711, %v2695
    %v2728 = vadd.f32 %v2712, %v2696
    %v2729 = vadd.f32 %v2713, %v2697
    %v2730 = vadd.f32 %v2714, %v2698
    %2731 = vst [vmem:[#allocation3] sm:$0xff] %v2715
    %2732 = vst [vmem:[#allocation3 + $0x8] sm:$0xff] %v2716
    %2733 = vst [vmem:[#allocation3 + $0x10] sm:$0xff] %v2717
    %2734 = vst [vmem:[#allocation3 + $0x18] sm:$0xff] %v2718
    %2735 = vst [vmem:[#allocation3 + $0x20] sm:$0xff] %v2719
    %2736 = vst [vmem:[#allocation3 + $0x28] sm:$0xff] %v2720
    %2737 = vst [vmem:[#allocation3 + $0x30] sm:$0xff] %v2721
    %2738 = vst [vmem:[#allocation3 + $0x38] sm:$0xff] %v2722
    %2739 = vst [vmem:[#allocation3 + $0x40] sm:$0xff] %v2723
    %2740 = vst [vmem:[#allocation3 + $0x48] sm:$0xff] %v2724
    %2741 = vst [vmem:[#allocation3 + $0x50] sm:$0xff] %v2725
    %2742 = vst [vmem:[#allocation3 + $0x58] sm:$0xff] %v2726
    %2743 = vst [vmem:[#allocation3 + $0x60] sm:$0xff] %v2727
    %2744 = vst [vmem:[#allocation3 + $0x68] sm:$0xff] %v2728
    %2745 = vst [vmem:[#allocation3 + $0x70] sm:$0xff] %v2729
    %2746 = vst [vmem:[#allocation3 + $0x78] sm:$0xff] %v2730
    // Predicated region
    $region26: #{tpu_custom_call.1} parent=1 // pred_check
      %p2747 = pneg %p32
    $region27: #{tpu_custom_call.1} parent=1 // pred_check_branch
      %2749 = sbr.rel (%p2747) target = $region29
    $region28: #{tpu_custom_call.1} parent=1 // pred_region
      %v2750 = vld [vmem:[#allocation3] sm:$0xff]
      %v2751 = vld [vmem:[#allocation3 + $0x8] sm:$0xff]
      %v2752 = vld [vmem:[#allocation3 + $0x10] sm:$0xff]
      %v2753 = vld [vmem:[#allocation3 + $0x18] sm:$0xff]
      %v2754 = vld [vmem:[#allocation3 + $0x20] sm:$0xff]
      %v2755 = vld [vmem:[#allocation3 + $0x28] sm:$0xff]
      %v2756 = vld [vmem:[#allocation3 + $0x30] sm:$0xff]
      %v2757 = vld [vmem:[#allocation3 + $0x38] sm:$0xff]
      %v2758 = vld [vmem:[#allocation3 + $0x40] sm:$0xff]
      %v2759 = vld [vmem:[#allocation3 + $0x48] sm:$0xff]
      %v2760 = vld [vmem:[#allocation3 + $0x50] sm:$0xff]
      %v2761 = vld [vmem:[#allocation3 + $0x58] sm:$0xff]
      %v2762 = vld [vmem:[#allocation3 + $0x60] sm:$0xff]
      %v2763 = vld [vmem:[#allocation3 + $0x68] sm:$0xff]
      %v2764 = vld [vmem:[#allocation3 + $0x70] sm:$0xff]
      %v2765 = vld [vmem:[#allocation3 + $0x78] sm:$0xff]
      %v2766 = vadd.f32 %v2750, %v2751
      %v2767 = vadd.f32 %v2766, %v2752
      %v2768 = vadd.f32 %v2767, %v2753
      %v2769 = vadd.f32 %v2768, %v2754
      %v2770 = vadd.f32 %v2769, %v2755
      %v2771 = vadd.f32 %v2770, %v2756
      %v2772 = vadd.f32 %v2771, %v2757
      %v2773 = vadd.f32 %v2772, %v2758
      %v2774 = vadd.f32 %v2773, %v2759
      %v2775 = vadd.f32 %v2774, %v2760
      %v2776 = vadd.f32 %v2775, %v2761
      %v2777 = vadd.f32 %v2776, %v2762
      %v2778 = vadd.f32 %v2777, %v2763
      %v2779 = vadd.f32 %v2778, %v2764
      %v2780 = vadd.f32 %v2779, %v2765
      %2781 = vadd.xlane.f32.xlu0 %v2780
      %v2782 = vpop.xlane.xlu0 %2781
      %v2783 = vrot.slane %v2782, 4
      %v2784 = vadd.f32 %v2782, %v2783
      %v2785 = vrot.slane %v2784, 2
      %v2786 = vadd.f32 %v2784, %v2785
      %v2787 = vrot.slane %v2786, 1
      %v2788 = vadd.f32 %v2786, %v2787
      %s2789 = vtos %v2788
      %v2790 = vstv %s2789
      %v2791 = vmul.f32 %v2790, 0.00043402778
      %vm2792 = vcmask 0
      %2793 = vst.msk [vmem:[#allocation7] sm:$0x1] %vm2792, %v2791
    $region29: #{tpu_custom_call.1} parent=1 // pred_fallthru
      _
    // Predicated region
    $region30: #{tpu_custom_call.1} parent=1 // pred_check
      _
    $region31: #{tpu_custom_call.1} parent=1 // pred_check_branch
      %2795 = sbr.rel (0) target = $region33
    $region32: #{tpu_custom_call.1} parent=1 // pred_region
      %s2797 = ssub.s32 16, 16
      %2798 = vsyncadd [#allocation6], %s2797
      %s2800 = sshll.u32 [#allocation7], 4
      %s2801 = int_to_ptr.vmem [resolvable:$true] %s2800
      %2803 = dma.vmem_to_hbm [thread:$0]  %s2801, 16, %s4, [#allocation6]
    $region33: #{tpu_custom_call.1} parent=1 // pred_fallthru
      _
    // Predicated region
    $region34: #{tpu_custom_call.1} parent=1 // pred_check
      _
    $region35: #{tpu_custom_call.1} parent=1 // pred_check_branch
      %2805 = sbr.rel (0) target = $region37
    $region36: #{tpu_custom_call.1} parent=1 // pred_region
      %2806 = dma.done [#allocation6], 16
    $region37: #{tpu_custom_call.1} parent=1 // pred_fallthru
      _
    %2807 = vsyncpa [#allocation5], 1
    %2808 = vsyncpa [#allocation6], 1

</llo_original>
